<compile_context>
chip_gen: v7x
topology: tpu7x:2x2x1
jax: 0.10.0
libtpu: 0.0.40
codegen_flags: <defaults>
</compile_context>

<pallas_src>
import jax
import jax.numpy as jnp
from jax.experimental import pallas as pl
from jax.experimental.pallas import tpu as pltpu


# Bias-slab lane offsets (each slot padded to a multiple of 128 lanes).
# flb = [fb3 | lb2] — the bias of the fused (features|labels) 128-lane head.
_B_OFF = dict(fb1=0, fb2=1024, flb=1536, lb1=1664, cb1=1792,
              cb2=2304, cb3=2560, cb4=2688, cb5=2816)
_BIAS_SLAB_LEN = 2944


def _make_attack_kernel(nc_pad):
    O = _B_OFF
    # Row offsets inside the 128-lane weight slab.
    R_LW1 = 0                  # (nc_pad,128) labels first layer
    R_FW3 = nc_pad             # (512,128): fw3 embedded in cols 0:64
    R_LW2 = nc_pad + 512       # (128,128): lw2 embedded in cols 64:128
    R_CW3 = nc_pad + 640       # (256,128)
    R_CW4 = nc_pad + 896       # (128,128): cw4 embedded in cols 0:64
    R_CW5 = nc_pad + 1024      # (128,128): cw5 embedded in rows 0:64, col 0
    f32, bf16 = jnp.float32, jnp.bfloat16

    def kernel(xl_ref, fw1_ref, w512_ref, w256_ref, w128_ref, b_ref, out_ref):

        def dot(a, w):
            return jnp.dot(a, w, preferred_element_type=f32)

        def bias(name, width):
            return b_ref[:, O[name]:O[name] + width]

        x = xl_ref[:, 0:nc_pad]                 # (TB, nc_pad) posterior, bf16
        lab = xl_ref[:, nc_pad:2 * nc_pad]      # (TB, nc_pad) one-hot label, bf16

        # features branch: nc -> 1024 -> 512
        h = jnp.maximum(dot(x, fw1_ref[...]) + bias("fb1", 1024), 0.0)
        h = jnp.maximum(dot(h.astype(bf16), w512_ref[0:1024, :])
                        + bias("fb2", 512), 0.0)
        # labels branch: nc -> 128
        g = jnp.maximum(dot(lab, w128_ref[R_LW1:R_LW1 + nc_pad, :])
                        + bias("lb1", 128), 0.0)

        # Fused heads: [features 512->64 | labels 128->64] land in one
        # (TB,128) tile == torch.cat((out_x1, out_l), 1); no 64-lane splits.
        cat = jnp.maximum(
            dot(h.astype(bf16), w128_ref[R_FW3:R_FW3 + 512, :])
            + dot(g.astype(bf16), w128_ref[R_LW2:R_LW2 + 128, :])
            + bias("flb", 128), 0.0)

        # combine: 128 -> 512 -> 256 -> 128 -> 64(pad 128) -> 1(pad 128)
        c = jnp.maximum(dot(cat.astype(bf16), w512_ref[1024:1152, :])
                        + bias("cb1", 512), 0.0)
        c = jnp.maximum(dot(c.astype(bf16), w256_ref[...])
                        + bias("cb2", 256), 0.0)
        c = jnp.maximum(dot(c.astype(bf16), w128_ref[R_CW3:R_CW3 + 256, :])
                        + bias("cb3", 128), 0.0)
        c = jnp.maximum(dot(c.astype(bf16), w128_ref[R_CW4:R_CW4 + 128, :])
                        + bias("cb4", 128), 0.0)
        logit = (dot(c.astype(bf16), w128_ref[R_CW5:R_CW5 + 128, :])
                 + bias("cb5", 128))
        # Lanes 1..127 are padding (sigmoid(0)=0.5); wrapper consumes lane 0.
        out_ref[...] = jax.nn.sigmoid(logit).astype(out_ref.dtype)

    return kernel


def init_params(key, num_classes, dtype=jnp.float32):
    """weight ~ N(0, 0.01), bias = 0.  Weights in (in, out) layout (torch^T)."""
    std = 0.01
    wdims = {
        "fw1": (num_classes, 1024), "fw2": (1024, 512), "fw3": (512, 64),
        "lw1": (num_classes, 128), "lw2": (128, 64),
        "cw1": (128, 512), "cw2": (512, 256), "cw3": (256, 128),
        "cw4": (128, 64), "cw5": (64, 1),
    }
    keys = jax.random.split(key, len(wdims))
    params = {name: (std * jax.random.normal(k, shape)).astype(dtype)
              for k, (name, shape) in zip(keys, wdims.items())}
    bdims = {"fb1": 1024, "fb2": 512, "fb3": 64, "lb1": 128, "lb2": 64,
             "cb1": 512, "cb2": 256, "cb3": 128, "cb4": 64, "cb5": 1}
    for name, d in bdims.items():
        params[name] = jnp.zeros((1, d), dtype)
    return params


def pack_params(params, num_classes):
    """bf16 weight slabs grouped by (128-padded) output width + one f32 bias slab."""
    nc_pad = ((num_classes + 127) // 128) * 128
    f32, bf16 = jnp.float32, jnp.bfloat16

    def embed(w, rows, cols, r0=0, c0=0):
        out = jnp.zeros((rows, cols), f32)
        return out.at[r0:r0 + w.shape[0], c0:c0 + w.shape[1]].set(w.astype(f32))

    fw1 = embed(params["fw1"], nc_pad, 1024).astype(bf16)                      # (nc_pad, 1024)
    w512 = jnp.concatenate([params["fw2"].astype(f32),
                            params["cw1"].astype(f32)], axis=0).astype(bf16)   # (1152, 512)
    w256 = params["cw2"].astype(bf16)                                          # (512, 256)
    w128 = jnp.concatenate([
        embed(params["lw1"], nc_pad, 128),           # rows 0:nc_pad
        embed(params["fw3"], 512, 128, c0=0),        # fw3 -> cols 0:64
        embed(params["lw2"], 128, 128, c0=64),       # lw2 -> cols 64:128
        params["cw3"].astype(f32),                   # (256,128)
        embed(params["cw4"], 128, 128, c0=0),        # cw4 -> cols 0:64
        embed(params["cw5"], 128, 128, c0=0),        # cw5 -> rows 0:64, col 0
    ], axis=0).astype(bf16)                          # (nc_pad + 1152, 128)

    def pad_b(b, lanes):
        return jnp.pad(b.astype(f32), ((0, 0), (0, lanes - b.shape[1])))

    bias = jnp.concatenate([
        params["fb1"].astype(f32), params["fb2"].astype(f32),
        params["fb3"].astype(f32), params["lb2"].astype(f32),   # -> flb slot
        params["lb1"].astype(f32), params["cb1"].astype(f32),
        params["cb2"].astype(f32), params["cb3"].astype(f32),
        pad_b(params["cb4"], 128), pad_b(params["cb5"], 128)], axis=1)  # (1, 2944)
    assert bias.shape == (1, _BIAS_SLAB_LEN)
    return dict(nc_pad=nc_pad, fw1=fw1, w512=w512, w256=w256, w128=w128,
                bias=bias)


def inference_attack_hz(x1, l, packed):
    nc_pad = packed["nc_pad"]
    B, nc = x1.shape
    assert l.shape == (B, nc)

    # Batch tiling: one tile when small; >=2 grid steps once B_pad >= 256 so
    # both v7x TensorCores run; 512-row tiles for large batches.
    B_pad = max(8, ((B + 7) // 8) * 8)
    if B_pad < 256:
        tile_b = B_pad
    elif B_pad < 1024:
        B_pad = ((B_pad + 15) // 16) * 16
        tile_b = B_pad // 2
    else:
        tile_b = 512
        B_pad = ((B_pad + tile_b - 1) // tile_b) * tile_b

    def pad_in(a):
        a = jnp.pad(a.astype(jnp.float32), ((0, B_pad - B), (0, nc_pad - nc)))
        return a.astype(jnp.bfloat16)

    # Single packed activation slab: [x1 | l]  -> one DMA per grid step.
    xl = jnp.concatenate([pad_in(x1), pad_in(l)], axis=1)   # (B_pad, 2*nc_pad)

    fw1, w512, w256, w128, bias = (packed[k] for k in
                                   ("fw1", "w512", "w256", "w128", "bias"))

    grid = (B_pad // tile_b,)
    in_spec = pl.BlockSpec((tile_b, 2 * nc_pad), lambda i: (i, 0))
    out_spec = pl.BlockSpec((tile_b, 128), lambda i: (i, 0))

    def resident(arr):
        # Constant index_map: stays in VMEM across the grid; never re-fetched,
        # so single-buffer it (saves ~1.9 MiB of VMEM vs default double-buffer).
        return pl.BlockSpec(arr.shape, lambda i: (0, 0),
                            pipeline_mode=pl.Buffered(1))

    # Advisory cost estimate (sigmoid ~ exp + reciprocal per output element).
    layer_dims = [(nc_pad, 1024), (1024, 512), (nc_pad, 128), (512, 128),
                  (128, 128), (128, 512), (512, 256), (256, 128),
                  (128, 128), (128, 128)]
    flops = 2 * B_pad * sum(a * b for a, b in layer_dims)
    bytes_accessed = sum(int(a.size) * a.dtype.itemsize
                         for a in (xl, fw1, w512, w256, w128, bias))
    bytes_accessed += B_pad * 128 * 2   # bf16 output slab
    cost = pl.CostEstimate(flops=flops, transcendentals=2 * B_pad * 128,
                           bytes_accessed=bytes_accessed)

    out = pl.pallas_call(
        _make_attack_kernel(nc_pad),
        out_shape=jax.ShapeDtypeStruct((B_pad, 128), jnp.bfloat16),
        grid=grid,
        in_specs=[in_spec, resident(fw1), resident(w512), resident(w256),
                  resident(w128), resident(bias)],
        out_specs=out_spec,
        compiler_params=pltpu.CompilerParams(
            dimension_semantics=("parallel",),
            vmem_limit_bytes=32 * 1024 * 1024),
        cost_estimate=cost,
    )(xl, fw1, w512, w256, w128, bias)

    # Only lane 0 of the padded output is the membership logit's sigmoid.
    return out[:B, 0:1].astype(jnp.float32)


def reference_forward(x1, l, params):
    """Pure-JAX f32 reference matching the PyTorch module."""
    relu = jax.nn.relu
    lin = lambda x, w, b: x @ w + b
    h = relu(lin(x1, params["fw1"], params["fb1"]))
    h = relu(lin(h, params["fw2"], params["fb2"]))
    out_x1 = relu(lin(h, params["fw3"], params["fb3"]))
    g = relu(lin(l, params["lw1"], params["lb1"]))
    out_l = relu(lin(g, params["lw2"], params["lb2"]))
    c = jnp.concatenate([out_x1, out_l], axis=1)
    c = relu(lin(c, params["cw1"], params["cb1"]))
    c = relu(lin(c, params["cw2"], params["cb2"]))
    c = relu(lin(c, params["cw3"], params["cb3"]))
    c = relu(lin(c, params["cw4"], params["cb4"]))
    return jax.nn.sigmoid(lin(c, params["cw5"], params["cb5"]))


if __name__ == "__main__":
    num_classes = 100   # CIFAR-100
    batch = 8

    key = jax.random.PRNGKey(0)
    kp, kx, kl = jax.random.split(key, 3)
    params = init_params(kp, num_classes)
    packed = pack_params(params, num_classes)

    # x1: model posterior-like vector, l: one-hot label vector
    x1 = jax.nn.softmax(jax.random.normal(kx, (batch, num_classes)), axis=-1)
    lbl_idx = jax.random.randint(kl, (batch,), 0, num_classes)
    l = jax.nn.one_hot(lbl_idx, num_classes, dtype=jnp.float32)

    out = inference_attack_hz(x1, l, packed)
    out = jax.block_until_ready(out)

    ref = reference_forward(x1, l, params)
    assert out.shape == (batch, 1) and out.dtype == jnp.float32
    assert bool(jnp.all(jnp.isfinite(out)))
    assert bool(jnp.allclose(out, ref, atol=1e-2)), (out, ref)
    print("KERNEL_OK")
</pallas_src>

<mosaic_0001>
module attributes {stable_mosaic.version = 11 : i64} {
  func.func @kernel(%arg0: i32, %arg1: memref<8x256xbf16, #tpu.memory_space<vmem>>, %arg2: memref<128x1024xbf16, #tpu.memory_space<vmem>>, %arg3: memref<1152x512xbf16, #tpu.memory_space<vmem>>, %arg4: memref<512x256xbf16, #tpu.memory_space<vmem>>, %arg5: memref<1280x128xbf16, #tpu.memory_space<vmem>>, %arg6: memref<1x2944xf32, #tpu.memory_space<vmem>>, %arg7: memref<8x128xbf16, #tpu.memory_space<vmem>>) attributes {dimension_semantics = [#tpu.dimension_semantics<parallel>], iteration_bounds = array<i64: 1>, scalar_prefetch = 0 : i64, scratch_operands = 0 : i64, tpu.core_type = #tpu.core_type<tc>, window_params = [{transform_indices = @transform_0, window_bounds = array<i64: 8, 256>}, {pipeline_mode = #tpu.pipeline_mode<synchronous>, transform_indices = @transform_1, window_bounds = array<i64: 128, 1024>}, {pipeline_mode = #tpu.pipeline_mode<synchronous>, transform_indices = @transform_2, window_bounds = array<i64: 1152, 512>}, {pipeline_mode = #tpu.pipeline_mode<synchronous>, transform_indices = @transform_3, window_bounds = array<i64: 512, 256>}, {pipeline_mode = #tpu.pipeline_mode<synchronous>, transform_indices = @transform_4, window_bounds = array<i64: 1280, 128>}, {pipeline_mode = #tpu.pipeline_mode<synchronous>, transform_indices = @transform_5, window_bounds = array<i64: 1, 2944>}, {transform_indices = @transform_6, window_bounds = array<i64: 8, 128>}]} {
    %c0 = arith.constant 0 : index
    %c0_0 = arith.constant 0 : index
    %0 = vector.load %arg1[%c0, %c0_0] : memref<8x256xbf16, #tpu.memory_space<vmem>>, vector<8x128xbf16>
    %c0_1 = arith.constant 0 : index
    %c128 = arith.constant 128 : index
    %1 = vector.load %arg1[%c0_1, %c128] : memref<8x256xbf16, #tpu.memory_space<vmem>>, vector<8x128xbf16>
    %c0_2 = arith.constant 0 : index
    %c0_3 = arith.constant 0 : index
    %2 = vector.load %arg2[%c0_2, %c0_3] : memref<128x1024xbf16, #tpu.memory_space<vmem>>, vector<128x1024xbf16>
    %cst = arith.constant dense<0.000000e+00> : vector<8x1024xf32>
    %3 = tpu.matmul %0, %2, %cst {dimension_numbers = #tpu.dot_dimension_numbers<[1], [0], [0], [1], [0, 0, 1, 1], [], []>} : vector<8x128xbf16>, vector<128x1024xbf16>, vector<8x1024xf32> -> vector<8x1024xf32>
    %c0_4 = arith.constant 0 : index
    %c0_5 = arith.constant 0 : index
    %4 = vector.load %arg6[%c0_4, %c0_5] : memref<1x2944xf32, #tpu.memory_space<vmem>>, vector<1x1024xf32>
    %5 = vector.broadcast %4 : vector<1x1024xf32> to vector<8x1024xf32>
    %6 = arith.addf %3, %5 : vector<8x1024xf32>
    %cst_6 = arith.constant 0.000000e+00 : f32
    %7 = vector.broadcast %cst_6 : f32 to vector<8x1024xf32>
    %8 = arith.maximumf %6, %7 : vector<8x1024xf32>
    %9 = arith.truncf %8 : vector<8x1024xf32> to vector<8x1024xbf16>
    %c0_7 = arith.constant 0 : index
    %c0_8 = arith.constant 0 : index
    %10 = vector.load %arg3[%c0_7, %c0_8] : memref<1152x512xbf16, #tpu.memory_space<vmem>>, vector<1024x512xbf16>
    %cst_9 = arith.constant dense<0.000000e+00> : vector<8x512xf32>
    %11 = tpu.matmul %9, %10, %cst_9 {dimension_numbers = #tpu.dot_dimension_numbers<[1], [0], [0], [1], [0, 0, 1, 1], [], []>} : vector<8x1024xbf16>, vector<1024x512xbf16>, vector<8x512xf32> -> vector<8x512xf32>
    %c0_10 = arith.constant 0 : index
    %c1024 = arith.constant 1024 : index
    %12 = vector.load %arg6[%c0_10, %c1024] : memref<1x2944xf32, #tpu.memory_space<vmem>>, vector<1x512xf32>
    %13 = vector.broadcast %12 : vector<1x512xf32> to vector<8x512xf32>
    %14 = arith.addf %11, %13 : vector<8x512xf32>
    %cst_11 = arith.constant 0.000000e+00 : f32
    %15 = vector.broadcast %cst_11 : f32 to vector<8x512xf32>
    %16 = arith.maximumf %14, %15 : vector<8x512xf32>
    %c0_12 = arith.constant 0 : index
    %c0_13 = arith.constant 0 : index
    %17 = vector.load %arg5[%c0_12, %c0_13] : memref<1280x128xbf16, #tpu.memory_space<vmem>>, vector<128x128xbf16>
    %cst_14 = arith.constant dense<0.000000e+00> : vector<8x128xf32>
    %18 = tpu.matmul %1, %17, %cst_14 {dimension_numbers = #tpu.dot_dimension_numbers<[1], [0], [0], [1], [0, 0, 1, 1], [], []>} : vector<8x128xbf16>, vector<128x128xbf16>, vector<8x128xf32> -> vector<8x128xf32>
    %c0_15 = arith.constant 0 : index
    %c1664 = arith.constant 1664 : index
    %19 = vector.load %arg6[%c0_15, %c1664] : memref<1x2944xf32, #tpu.memory_space<vmem>>, vector<1x128xf32>
    %20 = vector.broadcast %19 : vector<1x128xf32> to vector<8x128xf32>
    %21 = arith.addf %18, %20 : vector<8x128xf32>
    %cst_16 = arith.constant 0.000000e+00 : f32
    %22 = vector.broadcast %cst_16 : f32 to vector<8x128xf32>
    %23 = arith.maximumf %21, %22 : vector<8x128xf32>
    %24 = arith.truncf %16 : vector<8x512xf32> to vector<8x512xbf16>
    %c128_17 = arith.constant 128 : index
    %c0_18 = arith.constant 0 : index
    %25 = vector.load %arg5[%c128_17, %c0_18] : memref<1280x128xbf16, #tpu.memory_space<vmem>>, vector<512x128xbf16>
    %cst_19 = arith.constant dense<0.000000e+00> : vector<8x128xf32>
    %26 = tpu.matmul %24, %25, %cst_19 {dimension_numbers = #tpu.dot_dimension_numbers<[1], [0], [0], [1], [0, 0, 1, 1], [], []>} : vector<8x512xbf16>, vector<512x128xbf16>, vector<8x128xf32> -> vector<8x128xf32>
    %27 = arith.truncf %23 : vector<8x128xf32> to vector<8x128xbf16>
    %c640 = arith.constant 640 : index
    %c0_20 = arith.constant 0 : index
    %28 = vector.load %arg5[%c640, %c0_20] : memref<1280x128xbf16, #tpu.memory_space<vmem>>, vector<128x128xbf16>
    %cst_21 = arith.constant dense<0.000000e+00> : vector<8x128xf32>
    %29 = tpu.matmul %27, %28, %cst_21 {dimension_numbers = #tpu.dot_dimension_numbers<[1], [0], [0], [1], [0, 0, 1, 1], [], []>} : vector<8x128xbf16>, vector<128x128xbf16>, vector<8x128xf32> -> vector<8x128xf32>
    %30 = arith.addf %26, %29 : vector<8x128xf32>
    %c0_22 = arith.constant 0 : index
    %c1536 = arith.constant 1536 : index
    %31 = vector.load %arg6[%c0_22, %c1536] : memref<1x2944xf32, #tpu.memory_space<vmem>>, vector<1x128xf32>
    %32 = vector.broadcast %31 : vector<1x128xf32> to vector<8x128xf32>
    %33 = arith.addf %30, %32 : vector<8x128xf32>
    %cst_23 = arith.constant 0.000000e+00 : f32
    %34 = vector.broadcast %cst_23 : f32 to vector<8x128xf32>
    %35 = arith.maximumf %33, %34 : vector<8x128xf32>
    %36 = arith.truncf %35 : vector<8x128xf32> to vector<8x128xbf16>
    %c1024_24 = arith.constant 1024 : index
    %c0_25 = arith.constant 0 : index
    %37 = vector.load %arg3[%c1024_24, %c0_25] : memref<1152x512xbf16, #tpu.memory_space<vmem>>, vector<128x512xbf16>
    %cst_26 = arith.constant dense<0.000000e+00> : vector<8x512xf32>
    %38 = tpu.matmul %36, %37, %cst_26 {dimension_numbers = #tpu.dot_dimension_numbers<[1], [0], [0], [1], [0, 0, 1, 1], [], []>} : vector<8x128xbf16>, vector<128x512xbf16>, vector<8x512xf32> -> vector<8x512xf32>
    %c0_27 = arith.constant 0 : index
    %c1792 = arith.constant 1792 : index
    %39 = vector.load %arg6[%c0_27, %c1792] : memref<1x2944xf32, #tpu.memory_space<vmem>>, vector<1x512xf32>
    %40 = vector.broadcast %39 : vector<1x512xf32> to vector<8x512xf32>
    %41 = arith.addf %38, %40 : vector<8x512xf32>
    %cst_28 = arith.constant 0.000000e+00 : f32
    %42 = vector.broadcast %cst_28 : f32 to vector<8x512xf32>
    %43 = arith.maximumf %41, %42 : vector<8x512xf32>
    %44 = arith.truncf %43 : vector<8x512xf32> to vector<8x512xbf16>
    %c0_29 = arith.constant 0 : index
    %c0_30 = arith.constant 0 : index
    %45 = vector.load %arg4[%c0_29, %c0_30] : memref<512x256xbf16, #tpu.memory_space<vmem>>, vector<512x256xbf16>
    %cst_31 = arith.constant dense<0.000000e+00> : vector<8x256xf32>
    %46 = tpu.matmul %44, %45, %cst_31 {dimension_numbers = #tpu.dot_dimension_numbers<[1], [0], [0], [1], [0, 0, 1, 1], [], []>} : vector<8x512xbf16>, vector<512x256xbf16>, vector<8x256xf32> -> vector<8x256xf32>
    %c0_32 = arith.constant 0 : index
    %c2304 = arith.constant 2304 : index
    %47 = vector.load %arg6[%c0_32, %c2304] : memref<1x2944xf32, #tpu.memory_space<vmem>>, vector<1x256xf32>
    %48 = vector.broadcast %47 : vector<1x256xf32> to vector<8x256xf32>
    %49 = arith.addf %46, %48 : vector<8x256xf32>
    %cst_33 = arith.constant 0.000000e+00 : f32
    %50 = vector.broadcast %cst_33 : f32 to vector<8x256xf32>
    %51 = arith.maximumf %49, %50 : vector<8x256xf32>
    %52 = arith.truncf %51 : vector<8x256xf32> to vector<8x256xbf16>
    %c768 = arith.constant 768 : index
    %c0_34 = arith.constant 0 : index
    %53 = vector.load %arg5[%c768, %c0_34] : memref<1280x128xbf16, #tpu.memory_space<vmem>>, vector<256x128xbf16>
    %cst_35 = arith.constant dense<0.000000e+00> : vector<8x128xf32>
    %54 = tpu.matmul %52, %53, %cst_35 {dimension_numbers = #tpu.dot_dimension_numbers<[1], [0], [0], [1], [0, 0, 1, 1], [], []>} : vector<8x256xbf16>, vector<256x128xbf16>, vector<8x128xf32> -> vector<8x128xf32>
    %c0_36 = arith.constant 0 : index
    %c2560 = arith.constant 2560 : index
    %55 = vector.load %arg6[%c0_36, %c2560] : memref<1x2944xf32, #tpu.memory_space<vmem>>, vector<1x128xf32>
    %56 = vector.broadcast %55 : vector<1x128xf32> to vector<8x128xf32>
    %57 = arith.addf %54, %56 : vector<8x128xf32>
    %cst_37 = arith.constant 0.000000e+00 : f32
    %58 = vector.broadcast %cst_37 : f32 to vector<8x128xf32>
    %59 = arith.maximumf %57, %58 : vector<8x128xf32>
    %60 = arith.truncf %59 : vector<8x128xf32> to vector<8x128xbf16>
    %c1024_38 = arith.constant 1024 : index
    %c0_39 = arith.constant 0 : index
    %61 = vector.load %arg5[%c1024_38, %c0_39] : memref<1280x128xbf16, #tpu.memory_space<vmem>>, vector<128x128xbf16>
    %cst_40 = arith.constant dense<0.000000e+00> : vector<8x128xf32>
    %62 = tpu.matmul %60, %61, %cst_40 {dimension_numbers = #tpu.dot_dimension_numbers<[1], [0], [0], [1], [0, 0, 1, 1], [], []>} : vector<8x128xbf16>, vector<128x128xbf16>, vector<8x128xf32> -> vector<8x128xf32>
    %c0_41 = arith.constant 0 : index
    %c2688 = arith.constant 2688 : index
    %63 = vector.load %arg6[%c0_41, %c2688] : memref<1x2944xf32, #tpu.memory_space<vmem>>, vector<1x128xf32>
    %64 = vector.broadcast %63 : vector<1x128xf32> to vector<8x128xf32>
    %65 = arith.addf %62, %64 : vector<8x128xf32>
    %cst_42 = arith.constant 0.000000e+00 : f32
    %66 = vector.broadcast %cst_42 : f32 to vector<8x128xf32>
    %67 = arith.maximumf %65, %66 : vector<8x128xf32>
    %68 = arith.truncf %67 : vector<8x128xf32> to vector<8x128xbf16>
    %c1152 = arith.constant 1152 : index
    %c0_43 = arith.constant 0 : index
    %69 = vector.load %arg5[%c1152, %c0_43] : memref<1280x128xbf16, #tpu.memory_space<vmem>>, vector<128x128xbf16>
    %cst_44 = arith.constant dense<0.000000e+00> : vector<8x128xf32>
    %70 = tpu.matmul %68, %69, %cst_44 {dimension_numbers = #tpu.dot_dimension_numbers<[1], [0], [0], [1], [0, 0, 1, 1], [], []>} : vector<8x128xbf16>, vector<128x128xbf16>, vector<8x128xf32> -> vector<8x128xf32>
    %c0_45 = arith.constant 0 : index
    %c2816 = arith.constant 2816 : index
    %71 = vector.load %arg6[%c0_45, %c2816] : memref<1x2944xf32, #tpu.memory_space<vmem>>, vector<1x128xf32>
    %72 = vector.broadcast %71 : vector<1x128xf32> to vector<8x128xf32>
    %73 = arith.addf %70, %72 : vector<8x128xf32>
    %74 = arith.negf %73 : vector<8x128xf32>
    %75 = math.exp %74 : vector<8x128xf32>
    %cst_46 = arith.constant 1.000000e+00 : f32
    %76 = vector.broadcast %cst_46 : f32 to vector<8x128xf32>
    %77 = arith.addf %76, %75 : vector<8x128xf32>
    %78 = arith.divf %76, %77 : vector<8x128xf32>
    %79 = arith.truncf %78 : vector<8x128xf32> to vector<8x128xbf16>
    %c0_47 = arith.constant 0 : index
    %c0_48 = arith.constant 0 : index
    %80 = vector.load %arg7[%c0_47, %c0_48] : memref<8x128xbf16, #tpu.memory_space<vmem>>, vector<8x128xbf16>
    tpu.vector_store %arg7[%c0_47, %c0_48], %79 {strides = array<i32>} : memref<8x128xbf16, #tpu.memory_space<vmem>>, vector<8x128xbf16>,
    return
  }
  func.func @transform_0(%arg0: i32) -> (i32, i32) {
    %c0_i32 = arith.constant 0 : i32
    %c0_i32_0 = arith.constant 0 : i32
    return %arg0, %c0_i32 : i32, i32
  }
  func.func @transform_1(%arg0: i32) -> (i32, i32) {
    %c0_i32 = arith.constant 0 : i32
    %c0_i32_0 = arith.constant 0 : i32
    %c0_i32_1 = arith.constant 0 : i32
    return %c0_i32, %c0_i32_0 : i32, i32
  }
  func.func @transform_2(%arg0: i32) -> (i32, i32) {
    %c0_i32 = arith.constant 0 : i32
    %c0_i32_0 = arith.constant 0 : i32
    %c0_i32_1 = arith.constant 0 : i32
    return %c0_i32, %c0_i32_0 : i32, i32
  }
  func.func @transform_3(%arg0: i32) -> (i32, i32) {
    %c0_i32 = arith.constant 0 : i32
    %c0_i32_0 = arith.constant 0 : i32
    %c0_i32_1 = arith.constant 0 : i32
    return %c0_i32, %c0_i32_0 : i32, i32
  }
  func.func @transform_4(%arg0: i32) -> (i32, i32) {
    %c0_i32 = arith.constant 0 : i32
    %c0_i32_0 = arith.constant 0 : i32
    %c0_i32_1 = arith.constant 0 : i32
    return %c0_i32, %c0_i32_0 : i32, i32
  }
  func.func @transform_5(%arg0: i32) -> (i32, i32) {
    %c0_i32 = arith.constant 0 : i32
    %c0_i32_0 = arith.constant 0 : i32
    %c0_i32_1 = arith.constant 0 : i32
    return %c0_i32, %c0_i32_0 : i32, i32
  }
  func.func @transform_6(%arg0: i32) -> (i32, i32) {
    %c0_i32 = arith.constant 0 : i32
    %c0_i32_0 = arith.constant 0 : i32
    return %arg0, %c0_i32 : i32, i32
  }
}

</mosaic_0001>

<llo_original>
// kernel: tpu_custom_call.1
$region0: #{tpu_custom_call.1}
  #allocation0 [shape = 'u32[]', space=smem, size = 0x4, offset = 0x4, fixed_abs, tag = 'smem constant byte address 0x4 - core index']
  #allocation1 [shape = 'u32[144,128]{1,0:T(1,128)}', space=vmem, size = 0x12000, scoped, tag = 'internal scratch']
  %s0 = inlined_call_operand.hbm [shape: bf16[8,256], index: 0, kind: input, shape index: {}]
  %s1 = inlined_call_operand.hbm [shape: bf16[128,1024], index: 1, kind: input, shape index: {}]
  %s2 = inlined_call_operand.hbm [shape: bf16[1152,512], index: 2, kind: input, shape index: {}]
  %s3 = inlined_call_operand.hbm [shape: bf16[512,256], index: 3, kind: input, shape index: {}]
  %s4 = inlined_call_operand.hbm [shape: bf16[1280,128], index: 4, kind: input, shape index: {}]
  %s5 = inlined_call_operand.hbm [shape: f32[1,2944], index: 5, kind: input, shape index: {}]
  %s6 = inlined_call_operand.hbm [shape: bf16[8,128], index: 6, kind: output, shape index: {}]
  %s7 = sld [smem:[#allocation0]]
  $region58: #{tpu_custom_call.1} parent=0
    _
  %s9 = ssub.s32 1, %s7
  %s10 = scalar_select 0, %s9, %s7
  $region1: #{tpu_custom_call.1} parent=0
    #allocation2 [shape = 'u8[4096]{0}', space=vmem, size = 0x1000, scoped, tag = 'input window, operand 0, single buffered']
    #allocation3 [shape = 's32[1]{0}', space=sflag, size = 0x4, scoped, tag = 'scoped memory for tpu_custom_call.1']
    #allocation4 [shape = 's32[1]{0}', space=sflag, size = 0x4, scoped, tag = 'scoped memory for tpu_custom_call.1']
    #allocation5 [shape = 'u8[262144]{0}', space=vmem, size = 0x40000, scoped, tag = 'input window, operand 1, single buffered']
    #allocation6 [shape = 's32[1]{0}', space=sflag, size = 0x4, scoped, tag = 'scoped memory for tpu_custom_call.1']
    #allocation7 [shape = 'u8[1179648]{0}', space=vmem, size = 0x120000, scoped, tag = 'input window, operand 2, single buffered']
    #allocation8 [shape = 'u8[262144]{0}', space=vmem, size = 0x40000, scoped, tag = 'input window, operand 3, single buffered']
    #allocation9 [shape = 's32[1]{0}', space=sflag, size = 0x4, scoped, tag = 'scoped memory for tpu_custom_call.1']
    #allocation10 [shape = 'u8[327680]{0}', space=vmem, size = 0x50000, scoped, tag = 'input window, operand 4, single buffered']
    #allocation11 [shape = 'u8[11776]{0}', space=vmem, size = 0x3000, scoped, tag = 'input window, operand 5, single buffered']
    #allocation12 [shape = 's32[1]{0}', space=sflag, size = 0x4, scoped, tag = 'scoped memory for tpu_custom_call.1']
    #allocation13 [shape = 'u8[2048]{0}', space=vmem, size = 0x800, scoped, tag = 'output window, operand 0, single buffered']
    %11 = vsyncpa [#allocation3], 0
    %12 = vsyncpa [#allocation6], 0
    %13 = vsyncpa [#allocation9], 0
    %14 = vsyncpa [#allocation12], 0
    %15 = vsyncpa [#allocation4], 0
    // Predicated region
    $region2: #{tpu_custom_call.1} parent=1 // pred_check
      _
    $region3: #{tpu_custom_call.1} parent=1 // pred_check_branch
      %17 = sbr.rel (0) target = $region5
    $region4: #{tpu_custom_call.1} parent=1 // pred_region
      %s19 = ssub.s32 128, 128
      %20 = vsyncadd [#allocation3], %s19
      %s22 = sshll.u32 [#allocation2], 4
      %s23 = int_to_ptr.vmem [resolvable:$true] %s22
      %25 = dma.hbm_to_vmem [thread:$0]  %s0, 128, %s23, [#allocation3]
    $region5: #{tpu_custom_call.1} parent=1 // pred_fallthru
      _
    // Predicated region
    $region6: #{tpu_custom_call.1} parent=1 // pred_check
      _
    $region7: #{tpu_custom_call.1} parent=1 // pred_check_branch
      %27 = sbr.rel (0) target = $region9
    $region8: #{tpu_custom_call.1} parent=1 // pred_region
      %s29 = ssub.s32 8192, 8192
      %30 = vsyncadd [#allocation6], %s29
      %s31 = sshll.u32 [#allocation5], 4
      %s32 = int_to_ptr.vmem [resolvable:$true] %s31
      %37 = dma.hbm_to_vmem [thread:$0]  %s1, 8192, %s32, [#allocation6], 512, 512, 32
    $region9: #{tpu_custom_call.1} parent=1 // pred_fallthru
      _
    // Predicated region
    $region10: #{tpu_custom_call.1} parent=1 // pred_check
      _
    $region11: #{tpu_custom_call.1} parent=1 // pred_check_branch
      %39 = sbr.rel (0) target = $region13
    $region12: #{tpu_custom_call.1} parent=1 // pred_region
      %s41 = ssub.s32 36864, 36864
      %42 = vsyncadd [#allocation6], %s41
      %s43 = sshll.u32 [#allocation7], 4
      %s44 = int_to_ptr.vmem [resolvable:$true] %s43
      %49 = dma.hbm_to_vmem [thread:$0]  %s2, 36864, %s44, [#allocation6], 256, 256, 16
    $region13: #{tpu_custom_call.1} parent=1 // pred_fallthru
      _
    // Predicated region
    $region14: #{tpu_custom_call.1} parent=1 // pred_check
      _
    $region15: #{tpu_custom_call.1} parent=1 // pred_check_branch
      %51 = sbr.rel (0) target = $region17
    $region16: #{tpu_custom_call.1} parent=1 // pred_region
      %s53 = ssub.s32 8192, 8192
      %54 = vsyncadd [#allocation9], %s53
      %s55 = sshll.u32 [#allocation8], 4
      %s56 = int_to_ptr.vmem [resolvable:$true] %s55
      %61 = dma.hbm_to_vmem [thread:$0]  %s3, 8192, %s56, [#allocation9], 128, 128, 8
    $region17: #{tpu_custom_call.1} parent=1 // pred_fallthru
      _
    // Predicated region
    $region18: #{tpu_custom_call.1} parent=1 // pred_check
      _
    $region19: #{tpu_custom_call.1} parent=1 // pred_check_branch
      %63 = sbr.rel (0) target = $region21
    $region20: #{tpu_custom_call.1} parent=1 // pred_region
      %s65 = ssub.s32 10240, 10240
      %66 = vsyncadd [#allocation9], %s65
      %s67 = sshll.u32 [#allocation10], 4
      %s68 = int_to_ptr.vmem [resolvable:$true] %s67
      %73 = dma.hbm_to_vmem [thread:$0]  %s4, 10240, %s68, [#allocation9], 64, 64, 4
    $region21: #{tpu_custom_call.1} parent=1 // pred_fallthru
      _
    // Predicated region
    $region22: #{tpu_custom_call.1} parent=1 // pred_check
      _
    $region23: #{tpu_custom_call.1} parent=1 // pred_check_branch
      %75 = sbr.rel (0) target = $region25
    $region24: #{tpu_custom_call.1} parent=1 // pred_region
      %s77 = ssub.s32 368, 368
      %78 = vsyncadd [#allocation12], %s77
      %s80 = sshll.u32 [#allocation11], 4
      %s81 = int_to_ptr.vmem [resolvable:$true] %s80
      %83 = dma.hbm_to_vmem [thread:$0]  %s5, 368, %s81, [#allocation12]
    $region25: #{tpu_custom_call.1} parent=1 // pred_fallthru
      _
    // Predicated region
    $region26: #{tpu_custom_call.1} parent=1 // pred_check
      _
    $region27: #{tpu_custom_call.1} parent=1 // pred_check_branch
      %85 = sbr.rel (0) target = $region29
    $region28: #{tpu_custom_call.1} parent=1 // pred_region
      %86 = dma.done [#allocation3], 128
    $region29: #{tpu_custom_call.1} parent=1 // pred_fallthru
      _
    // Predicated region
    $region30: #{tpu_custom_call.1} parent=1 // pred_check
      _
    $region31: #{tpu_custom_call.1} parent=1 // pred_check_branch
      %88 = sbr.rel (0) target = $region33
    $region32: #{tpu_custom_call.1} parent=1 // pred_region
      %89 = dma.done [#allocation6], 8192
    $region33: #{tpu_custom_call.1} parent=1 // pred_fallthru
      _
    // Predicated region
    $region34: #{tpu_custom_call.1} parent=1 // pred_check
      _
    $region35: #{tpu_custom_call.1} parent=1 // pred_check_branch
      %91 = sbr.rel (0) target = $region37
    $region36: #{tpu_custom_call.1} parent=1 // pred_region
      %92 = dma.done [#allocation6], 36864
    $region37: #{tpu_custom_call.1} parent=1 // pred_fallthru
      _
    // Predicated region
    $region38: #{tpu_custom_call.1} parent=1 // pred_check
      _
    $region39: #{tpu_custom_call.1} parent=1 // pred_check_branch
      %94 = sbr.rel (0) target = $region41
    $region40: #{tpu_custom_call.1} parent=1 // pred_region
      %95 = dma.done [#allocation9], 8192
    $region41: #{tpu_custom_call.1} parent=1 // pred_fallthru
      _
    // Predicated region
    $region42: #{tpu_custom_call.1} parent=1 // pred_check
      _
    $region43: #{tpu_custom_call.1} parent=1 // pred_check_branch
      %97 = sbr.rel (0) target = $region45
    $region44: #{tpu_custom_call.1} parent=1 // pred_region
      %98 = dma.done [#allocation9], 10240
    $region45: #{tpu_custom_call.1} parent=1 // pred_fallthru
      _
    // Predicated region
    $region46: #{tpu_custom_call.1} parent=1 // pred_check
      _
    $region47: #{tpu_custom_call.1} parent=1 // pred_check_branch
      %100 = sbr.rel (0) target = $region49
    $region48: #{tpu_custom_call.1} parent=1 // pred_region
      %101 = dma.done [#allocation12], 368
    $region49: #{tpu_custom_call.1} parent=1 // pred_fallthru
      _
    %v103 = vld [vmem:[#allocation2] sm:$0xf]
    %v104 = vld [vmem:[#allocation2 + $0x4] sm:$0xf]
    %v105 = vld [vmem:[#allocation5] sm:$0xff]
    %v106 = vld [vmem:[#allocation5 + $0x8] sm:$0xff]
    %v107 = vld [vmem:[#allocation5 + $0x10] sm:$0xff]
    %v108 = vld [vmem:[#allocation5 + $0x18] sm:$0xff]
    %v109 = vld [vmem:[#allocation5 + $0x20] sm:$0xff]
    %v110 = vld [vmem:[#allocation5 + $0x28] sm:$0xff]
    %v111 = vld [vmem:[#allocation5 + $0x30] sm:$0xff]
    %v112 = vld [vmem:[#allocation5 + $0x38] sm:$0xff]
    %v113 = vld [vmem:[#allocation5 + $0x40] sm:$0xff]
    %v114 = vld [vmem:[#allocation5 + $0x48] sm:$0xff]
    %v115 = vld [vmem:[#allocation5 + $0x50] sm:$0xff]
    %v116 = vld [vmem:[#allocation5 + $0x58] sm:$0xff]
    %v117 = vld [vmem:[#allocation5 + $0x60] sm:$0xff]
    %v118 = vld [vmem:[#allocation5 + $0x68] sm:$0xff]
    %v119 = vld [vmem:[#allocation5 + $0x70] sm:$0xff]
    %v120 = vld [vmem:[#allocation5 + $0x78] sm:$0xff]
    %v121 = vld [vmem:[#allocation5 + $0x80] sm:$0xff]
    %v122 = vld [vmem:[#allocation5 + $0x88] sm:$0xff]
    %v123 = vld [vmem:[#allocation5 + $0x90] sm:$0xff]
    %v124 = vld [vmem:[#allocation5 + $0x98] sm:$0xff]
    %v125 = vld [vmem:[#allocation5 + $0xa0] sm:$0xff]
    %v126 = vld [vmem:[#allocation5 + $0xa8] sm:$0xff]
    %v127 = vld [vmem:[#allocation5 + $0xb0] sm:$0xff]
    %v128 = vld [vmem:[#allocation5 + $0xb8] sm:$0xff]
    %v129 = vld [vmem:[#allocation5 + $0xc0] sm:$0xff]
    %v130 = vld [vmem:[#allocation5 + $0xc8] sm:$0xff]
    %v131 = vld [vmem:[#allocation5 + $0xd0] sm:$0xff]
    %v132 = vld [vmem:[#allocation5 + $0xd8] sm:$0xff]
    %v133 = vld [vmem:[#allocation5 + $0xe0] sm:$0xff]
    %v134 = vld [vmem:[#allocation5 + $0xe8] sm:$0xff]
    %v135 = vld [vmem:[#allocation5 + $0xf0] sm:$0xff]
    %v136 = vld [vmem:[#allocation5 + $0xf8] sm:$0xff]
    %v137 = vld [vmem:[#allocation5 + $0x100] sm:$0xff]
    %v138 = vld [vmem:[#allocation5 + $0x108] sm:$0xff]
    %v139 = vld [vmem:[#allocation5 + $0x110] sm:$0xff]
    %v140 = vld [vmem:[#allocation5 + $0x118] sm:$0xff]
    %v141 = vld [vmem:[#allocation5 + $0x120] sm:$0xff]
    %v142 = vld [vmem:[#allocation5 + $0x128] sm:$0xff]
    %v143 = vld [vmem:[#allocation5 + $0x130] sm:$0xff]
    %v144 = vld [vmem:[#allocation5 + $0x138] sm:$0xff]
    %v145 = vld [vmem:[#allocation5 + $0x140] sm:$0xff]
    %v146 = vld [vmem:[#allocation5 + $0x148] sm:$0xff]
    %v147 = vld [vmem:[#allocation5 + $0x150] sm:$0xff]
    %v148 = vld [vmem:[#allocation5 + $0x158] sm:$0xff]
    %v149 = vld [vmem:[#allocation5 + $0x160] sm:$0xff]
    %v150 = vld [vmem:[#allocation5 + $0x168] sm:$0xff]
    %v151 = vld [vmem:[#allocation5 + $0x170] sm:$0xff]
    %v152 = vld [vmem:[#allocation5 + $0x178] sm:$0xff]
    %v153 = vld [vmem:[#allocation5 + $0x180] sm:$0xff]
    %v154 = vld [vmem:[#allocation5 + $0x188] sm:$0xff]
    %v155 = vld [vmem:[#allocation5 + $0x190] sm:$0xff]
    %v156 = vld [vmem:[#allocation5 + $0x198] sm:$0xff]
    %v157 = vld [vmem:[#allocation5 + $0x1a0] sm:$0xff]
    %v158 = vld [vmem:[#allocation5 + $0x1a8] sm:$0xff]
    %v159 = vld [vmem:[#allocation5 + $0x1b0] sm:$0xff]
    %v160 = vld [vmem:[#allocation5 + $0x1b8] sm:$0xff]
    %v161 = vld [vmem:[#allocation5 + $0x1c0] sm:$0xff]
    %v162 = vld [vmem:[#allocation5 + $0x1c8] sm:$0xff]
    %v163 = vld [vmem:[#allocation5 + $0x1d0] sm:$0xff]
    %v164 = vld [vmem:[#allocation5 + $0x1d8] sm:$0xff]
    %v165 = vld [vmem:[#allocation5 + $0x1e0] sm:$0xff]
    %v166 = vld [vmem:[#allocation5 + $0x1e8] sm:$0xff]
    %v167 = vld [vmem:[#allocation5 + $0x1f0] sm:$0xff]
    %v168 = vld [vmem:[#allocation5 + $0x1f8] sm:$0xff]
    %v169 = vld [vmem:[#allocation11] sm:$0xff]
    %v171 = vlaneseq
    %v172 = vshrl.u32 %v171, 7
    %v173 = vsub.s32 0, %v172
    %v174 = vrot.slane %v169, %v173
    %v175 = vlaneseq
    %v176 = vshrl.u32 %v175, 7
    %v177 = vsub.s32 1, %v176
    %v178 = vrot.slane %v169, %v177
    %v179 = vlaneseq
    %v180 = vshrl.u32 %v179, 7
    %v181 = vsub.s32 2, %v180
    %v182 = vrot.slane %v169, %v181
    %v183 = vlaneseq
    %v184 = vshrl.u32 %v183, 7
    %v185 = vsub.s32 3, %v184
    %v186 = vrot.slane %v169, %v185
    %v187 = vlaneseq
    %v188 = vshrl.u32 %v187, 7
    %v189 = vsub.s32 4, %v188
    %v190 = vrot.slane %v169, %v189
    %v191 = vlaneseq
    %v192 = vshrl.u32 %v191, 7
    %v193 = vsub.s32 5, %v192
    %v194 = vrot.slane %v169, %v193
    %v195 = vlaneseq
    %v196 = vshrl.u32 %v195, 7
    %v197 = vsub.s32 6, %v196
    %v198 = vrot.slane %v169, %v197
    %v199 = vlaneseq
    %v200 = vshrl.u32 %v199, 7
    %v201 = vsub.s32 7, %v200
    %v202 = vrot.slane %v169, %v201
    %v275 = vunpack.c.l.b16 %v105
    %v276 = vunpack.c.h.b16 %v105
    %v277 = vunpack.c.l.b16 %v106
    %v278 = vunpack.c.h.b16 %v106
    %v279 = vunpack.c.l.b16 %v107
    %v280 = vunpack.c.h.b16 %v107
    %v281 = vunpack.c.l.b16 %v108
    %v282 = vunpack.c.h.b16 %v108
    %v283 = vunpack.c.l.b16 %v109
    %v284 = vunpack.c.h.b16 %v109
    %v285 = vunpack.c.l.b16 %v110
    %v286 = vunpack.c.h.b16 %v110
    %v287 = vunpack.c.l.b16 %v111
    %v288 = vunpack.c.h.b16 %v111
    %v289 = vunpack.c.l.b16 %v112
    %v290 = vunpack.c.h.b16 %v112
    %v291 = vunpack.c.l.b16 %v113
    %v292 = vunpack.c.h.b16 %v113
    %v293 = vunpack.c.l.b16 %v114
    %v294 = vunpack.c.h.b16 %v114
    %v295 = vunpack.c.l.b16 %v115
    %v296 = vunpack.c.h.b16 %v115
    %v297 = vunpack.c.l.b16 %v116
    %v298 = vunpack.c.h.b16 %v116
    %v299 = vunpack.c.l.b16 %v117
    %v300 = vunpack.c.h.b16 %v117
    %v301 = vunpack.c.l.b16 %v118
    %v302 = vunpack.c.h.b16 %v118
    %v303 = vunpack.c.l.b16 %v119
    %v304 = vunpack.c.h.b16 %v119
    %v305 = vunpack.c.l.b16 %v120
    %v306 = vunpack.c.h.b16 %v120
    %v307 = vunpack.c.l.b16 %v121
    %v308 = vunpack.c.h.b16 %v121
    %v309 = vunpack.c.l.b16 %v122
    %v310 = vunpack.c.h.b16 %v122
    %v311 = vunpack.c.l.b16 %v123
    %v312 = vunpack.c.h.b16 %v123
    %v313 = vunpack.c.l.b16 %v124
    %v314 = vunpack.c.h.b16 %v124
    %v315 = vunpack.c.l.b16 %v125
    %v316 = vunpack.c.h.b16 %v125
    %v317 = vunpack.c.l.b16 %v126
    %v318 = vunpack.c.h.b16 %v126
    %v319 = vunpack.c.l.b16 %v127
    %v320 = vunpack.c.h.b16 %v127
    %v321 = vunpack.c.l.b16 %v128
    %v322 = vunpack.c.h.b16 %v128
    %v323 = vunpack.c.l.b16 %v129
    %v324 = vunpack.c.h.b16 %v129
    %v325 = vunpack.c.l.b16 %v130
    %v326 = vunpack.c.h.b16 %v130
    %v327 = vunpack.c.l.b16 %v131
    %v328 = vunpack.c.h.b16 %v131
    %v329 = vunpack.c.l.b16 %v132
    %v330 = vunpack.c.h.b16 %v132
    %v331 = vunpack.c.l.b16 %v133
    %v332 = vunpack.c.h.b16 %v133
    %v333 = vunpack.c.l.b16 %v134
    %v334 = vunpack.c.h.b16 %v134
    %v335 = vunpack.c.l.b16 %v135
    %v336 = vunpack.c.h.b16 %v135
    %v337 = vunpack.c.l.b16 %v136
    %v338 = vunpack.c.h.b16 %v136
    %v339 = vunpack.c.l.b16 %v137
    %v340 = vunpack.c.h.b16 %v137
    %v341 = vunpack.c.l.b16 %v138
    %v342 = vunpack.c.h.b16 %v138
    %v343 = vunpack.c.l.b16 %v139
    %v344 = vunpack.c.h.b16 %v139
    %v345 = vunpack.c.l.b16 %v140
    %v346 = vunpack.c.h.b16 %v140
    %v347 = vunpack.c.l.b16 %v141
    %v348 = vunpack.c.h.b16 %v141
    %v349 = vunpack.c.l.b16 %v142
    %v350 = vunpack.c.h.b16 %v142
    %v351 = vunpack.c.l.b16 %v143
    %v352 = vunpack.c.h.b16 %v143
    %v353 = vunpack.c.l.b16 %v144
    %v354 = vunpack.c.h.b16 %v144
    %v355 = vunpack.c.l.b16 %v145
    %v356 = vunpack.c.h.b16 %v145
    %v357 = vunpack.c.l.b16 %v146
    %v358 = vunpack.c.h.b16 %v146
    %v359 = vunpack.c.l.b16 %v147
    %v360 = vunpack.c.h.b16 %v147
    %v361 = vunpack.c.l.b16 %v148
    %v362 = vunpack.c.h.b16 %v148
    %v363 = vunpack.c.l.b16 %v149
    %v364 = vunpack.c.h.b16 %v149
    %v365 = vunpack.c.l.b16 %v150
    %v366 = vunpack.c.h.b16 %v150
    %v367 = vunpack.c.l.b16 %v151
    %v368 = vunpack.c.h.b16 %v151
    %v369 = vunpack.c.l.b16 %v152
    %v370 = vunpack.c.h.b16 %v152
    %v371 = vunpack.c.l.b16 %v153
    %v372 = vunpack.c.h.b16 %v153
    %v373 = vunpack.c.l.b16 %v154
    %v374 = vunpack.c.h.b16 %v154
    %v375 = vunpack.c.l.b16 %v155
    %v376 = vunpack.c.h.b16 %v155
    %v377 = vunpack.c.l.b16 %v156
    %v378 = vunpack.c.h.b16 %v156
    %v379 = vunpack.c.l.b16 %v157
    %v380 = vunpack.c.h.b16 %v157
    %v381 = vunpack.c.l.b16 %v158
    %v382 = vunpack.c.h.b16 %v158
    %v383 = vunpack.c.l.b16 %v159
    %v384 = vunpack.c.h.b16 %v159
    %v385 = vunpack.c.l.b16 %v160
    %v386 = vunpack.c.h.b16 %v160
    %v387 = vunpack.c.l.b16 %v161
    %v388 = vunpack.c.h.b16 %v161
    %v389 = vunpack.c.l.b16 %v162
    %v390 = vunpack.c.h.b16 %v162
    %v391 = vunpack.c.l.b16 %v163
    %v392 = vunpack.c.h.b16 %v163
    %v393 = vunpack.c.l.b16 %v164
    %v394 = vunpack.c.h.b16 %v164
    %v395 = vunpack.c.l.b16 %v165
    %v396 = vunpack.c.h.b16 %v165
    %v397 = vunpack.c.l.b16 %v166
    %v398 = vunpack.c.h.b16 %v166
    %v399 = vunpack.c.l.b16 %v167
    %v400 = vunpack.c.h.b16 %v167
    %v401 = vunpack.c.l.b16 %v168
    %v402 = vunpack.c.h.b16 %v168
    %v403 = vpack.c.b16 %v283, %v275
    %v404 = vpack.c.b16 %v284, %v276
    %v405 = vpack.c.b16 %v285, %v277
    %v406 = vpack.c.b16 %v286, %v278
    %v407 = vpack.c.b16 %v287, %v279
    %v408 = vpack.c.b16 %v288, %v280
    %v409 = vpack.c.b16 %v289, %v281
    %v410 = vpack.c.b16 %v290, %v282
    %v411 = vpack.c.b16 %v299, %v291
    %v412 = vpack.c.b16 %v300, %v292
    %v413 = vpack.c.b16 %v301, %v293
    %v414 = vpack.c.b16 %v302, %v294
    %v415 = vpack.c.b16 %v303, %v295
    %v416 = vpack.c.b16 %v304, %v296
    %v417 = vpack.c.b16 %v305, %v297
    %v418 = vpack.c.b16 %v306, %v298
    %v419 = vpack.c.b16 %v315, %v307
    %v420 = vpack.c.b16 %v316, %v308
    %v421 = vpack.c.b16 %v317, %v309
    %v422 = vpack.c.b16 %v318, %v310
    %v423 = vpack.c.b16 %v319, %v311
    %v424 = vpack.c.b16 %v320, %v312
    %v425 = vpack.c.b16 %v321, %v313
    %v426 = vpack.c.b16 %v322, %v314
    %v427 = vpack.c.b16 %v331, %v323
    %v428 = vpack.c.b16 %v332, %v324
    %v429 = vpack.c.b16 %v333, %v325
    %v430 = vpack.c.b16 %v334, %v326
    %v431 = vpack.c.b16 %v335, %v327
    %v432 = vpack.c.b16 %v336, %v328
    %v433 = vpack.c.b16 %v337, %v329
    %v434 = vpack.c.b16 %v338, %v330
    %v435 = vpack.c.b16 %v347, %v339
    %v436 = vpack.c.b16 %v348, %v340
    %v437 = vpack.c.b16 %v349, %v341
    %v438 = vpack.c.b16 %v350, %v342
    %v439 = vpack.c.b16 %v351, %v343
    %v440 = vpack.c.b16 %v352, %v344
    %v441 = vpack.c.b16 %v353, %v345
    %v442 = vpack.c.b16 %v354, %v346
    %v443 = vpack.c.b16 %v363, %v355
    %v444 = vpack.c.b16 %v364, %v356
    %v445 = vpack.c.b16 %v365, %v357
    %v446 = vpack.c.b16 %v366, %v358
    %v447 = vpack.c.b16 %v367, %v359
    %v448 = vpack.c.b16 %v368, %v360
    %v449 = vpack.c.b16 %v369, %v361
    %v450 = vpack.c.b16 %v370, %v362
    %v451 = vpack.c.b16 %v379, %v371
    %v452 = vpack.c.b16 %v380, %v372
    %v453 = vpack.c.b16 %v381, %v373
    %v454 = vpack.c.b16 %v382, %v374
    %v455 = vpack.c.b16 %v383, %v375
    %v456 = vpack.c.b16 %v384, %v376
    %v457 = vpack.c.b16 %v385, %v377
    %v458 = vpack.c.b16 %v386, %v378
    %v459 = vpack.c.b16 %v395, %v387
    %v460 = vpack.c.b16 %v396, %v388
    %v461 = vpack.c.b16 %v397, %v389
    %v462 = vpack.c.b16 %v398, %v390
    %v463 = vpack.c.b16 %v399, %v391
    %v464 = vpack.c.b16 %v400, %v392
    %v465 = vpack.c.b16 %v401, %v393
    %v466 = vpack.c.b16 %v402, %v394
    %531 = vmatprep.subr.bf16.mxu0 %v404
    %532 = vmatpush1.bf16.msra.mxu0 %v403
    %533 = vmatprep.subr.bf16.mxu0 %v412
    %534 = vmatpush1.bf16.msra.mxu0 %v411
    %535 = vmatprep.subr.bf16.mxu0 %v420
    %536 = vmatpush1.bf16.msra.mxu0 %v419
    %537 = vmatprep.subr.bf16.mxu0 %v428
    %538 = vmatpush1.bf16.msra.mxu0 %v427
    %539 = vmatprep.subr.bf16.mxu0 %v436
    %540 = vmatpush1.bf16.msra.mxu0 %v435
    %541 = vmatprep.subr.bf16.mxu0 %v444
    %542 = vmatpush1.bf16.msra.mxu0 %v443
    %543 = vmatprep.subr.bf16.mxu0 %v452
    %544 = vmatpush1.bf16.msra.mxu0 %v451
    %545 = vmatprep.subr.bf16.mxu0 %v460
    %546 = vmatpush1.bf16.msra.mxu0 %v459
    %547 = vmatprep.subr.bf16.mxu0 0
    %548 = vmatpush1.bf16.msra.mxu0 0
    %549 = vmatprep.subr.bf16.mxu0 0
    %550 = vmatpush1.bf16.msra.mxu0 0
    %551 = vmatprep.subr.bf16.mxu0 0
    %552 = vmatpush1.bf16.msra.mxu0 0
    %553 = vmatprep.subr.bf16.mxu0 0
    %554 = vmatpush1.bf16.msra.mxu0 0
    %555 = vmatprep.subr.bf16.mxu0 0
    %556 = vmatpush1.bf16.msra.mxu0 0
    %557 = vmatprep.subr.bf16.mxu0 0
    %558 = vmatpush1.bf16.msra.mxu0 0
    %559 = vmatprep.subr.bf16.mxu0 0
    %560 = vmatpush1.bf16.msra.mxu0 0
    %561 = vmatprep.subr.bf16.mxu0 0
    %562 = vmatpush1.bf16.msra.mxu0 0
    %563 = vmatprep.mubr.bf16.mxu0 0
    %564 = vmatmul.mubr.bf16.gmra.mrb[0].mxu0 %v103
    %v565 = vpop.f32.mrb[0].mxu0
    %v566 = vadd.f32 %v174, %v565
    %v567 = vpop.f32.mrb[0].mxu0
    %v568 = vadd.f32 %v178, %v567
    %v569 = vpop.f32.mrb[0].mxu0
    %v570 = vpop.f32.mrb[0].mxu0
    %571 = vdwg.mxu0
    %572 = vmatprep.subr.bf16.mxu0 %v406
    %573 = vmatpush1.bf16.msra.mxu0 %v405
    %574 = vmatprep.subr.bf16.mxu0 %v414
    %575 = vmatpush1.bf16.msra.mxu0 %v413
    %576 = vmatprep.subr.bf16.mxu0 %v422
    %577 = vmatpush1.bf16.msra.mxu0 %v421
    %578 = vmatprep.subr.bf16.mxu0 %v430
    %579 = vmatpush1.bf16.msra.mxu0 %v429
    %580 = vmatprep.subr.bf16.mxu0 %v438
    %581 = vmatpush1.bf16.msra.mxu0 %v437
    %582 = vmatprep.subr.bf16.mxu0 %v446
    %583 = vmatpush1.bf16.msra.mxu0 %v445
    %584 = vmatprep.subr.bf16.mxu0 %v454
    %585 = vmatpush1.bf16.msra.mxu0 %v453
    %586 = vmatprep.subr.bf16.mxu0 %v462
    %587 = vmatpush1.bf16.msra.mxu0 %v461
    %588 = vmatprep.subr.bf16.mxu0 0
    %589 = vmatpush1.bf16.msra.mxu0 0
    %590 = vmatprep.subr.bf16.mxu0 0
    %591 = vmatpush1.bf16.msra.mxu0 0
    %592 = vmatprep.subr.bf16.mxu0 0
    %593 = vmatpush1.bf16.msra.mxu0 0
    %594 = vmatprep.subr.bf16.mxu0 0
    %595 = vmatpush1.bf16.msra.mxu0 0
    %596 = vmatprep.subr.bf16.mxu0 0
    %597 = vmatpush1.bf16.msra.mxu0 0
    %598 = vmatprep.subr.bf16.mxu0 0
    %599 = vmatpush1.bf16.msra.mxu0 0
    %600 = vmatprep.subr.bf16.mxu0 0
    %601 = vmatpush1.bf16.msra.mxu0 0
    %602 = vmatprep.subr.bf16.mxu0 0
    %603 = vmatpush1.bf16.msra.mxu0 0
    %604 = vmatprep.mubr.bf16.mxu0 0
    %605 = vmatmul.mubr.bf16.gmra.mrb[0].mxu0 %v103
    %v606 = vpop.f32.mrb[0].mxu0
    %v607 = vadd.f32 %v182, %v606
    %v608 = vpop.f32.mrb[0].mxu0
    %v609 = vadd.f32 %v186, %v608
    %v610 = vpop.f32.mrb[0].mxu0
    %v611 = vpop.f32.mrb[0].mxu0
    %612 = vdwg.mxu0
    %613 = vmatprep.subr.bf16.mxu0 %v408
    %614 = vmatpush1.bf16.msra.mxu0 %v407
    %615 = vmatprep.subr.bf16.mxu0 %v416
    %616 = vmatpush1.bf16.msra.mxu0 %v415
    %617 = vmatprep.subr.bf16.mxu0 %v424
    %618 = vmatpush1.bf16.msra.mxu0 %v423
    %619 = vmatprep.subr.bf16.mxu0 %v432
    %620 = vmatpush1.bf16.msra.mxu0 %v431
    %621 = vmatprep.subr.bf16.mxu0 %v440
    %622 = vmatpush1.bf16.msra.mxu0 %v439
    %623 = vmatprep.subr.bf16.mxu0 %v448
    %624 = vmatpush1.bf16.msra.mxu0 %v447
    %625 = vmatprep.subr.bf16.mxu0 %v456
    %626 = vmatpush1.bf16.msra.mxu0 %v455
    %627 = vmatprep.subr.bf16.mxu0 %v464
    %628 = vmatpush1.bf16.msra.mxu0 %v463
    %629 = vmatprep.subr.bf16.mxu0 0
    %630 = vmatpush1.bf16.msra.mxu0 0
    %631 = vmatprep.subr.bf16.mxu0 0
    %632 = vmatpush1.bf16.msra.mxu0 0
    %633 = vmatprep.subr.bf16.mxu0 0
    %634 = vmatpush1.bf16.msra.mxu0 0
    %635 = vmatprep.subr.bf16.mxu0 0
    %636 = vmatpush1.bf16.msra.mxu0 0
    %637 = vmatprep.subr.bf16.mxu0 0
    %638 = vmatpush1.bf16.msra.mxu0 0
    %639 = vmatprep.subr.bf16.mxu0 0
    %640 = vmatpush1.bf16.msra.mxu0 0
    %641 = vmatprep.subr.bf16.mxu0 0
    %642 = vmatpush1.bf16.msra.mxu0 0
    %643 = vmatprep.subr.bf16.mxu0 0
    %644 = vmatpush1.bf16.msra.mxu0 0
    %645 = vmatprep.mubr.bf16.mxu0 0
    %646 = vmatmul.mubr.bf16.gmra.mrb[0].mxu0 %v103
    %v647 = vpop.f32.mrb[0].mxu0
    %v648 = vadd.f32 %v190, %v647
    %v649 = vpop.f32.mrb[0].mxu0
    %v650 = vadd.f32 %v194, %v649
    %v651 = vpop.f32.mrb[0].mxu0
    %v652 = vpop.f32.mrb[0].mxu0
    %653 = vdwg.mxu0
    %654 = vmatprep.subr.bf16.mxu0 %v410
    %655 = vmatpush1.bf16.msra.mxu0 %v409
    %656 = vmatprep.subr.bf16.mxu0 %v418
    %657 = vmatpush1.bf16.msra.mxu0 %v417
    %658 = vmatprep.subr.bf16.mxu0 %v426
    %659 = vmatpush1.bf16.msra.mxu0 %v425
    %660 = vmatprep.subr.bf16.mxu0 %v434
    %661 = vmatpush1.bf16.msra.mxu0 %v433
    %662 = vmatprep.subr.bf16.mxu0 %v442
    %663 = vmatpush1.bf16.msra.mxu0 %v441
    %664 = vmatprep.subr.bf16.mxu0 %v450
    %665 = vmatpush1.bf16.msra.mxu0 %v449
    %666 = vmatprep.subr.bf16.mxu0 %v458
    %667 = vmatpush1.bf16.msra.mxu0 %v457
    %668 = vmatprep.subr.bf16.mxu0 %v466
    %669 = vmatpush1.bf16.msra.mxu0 %v465
    %670 = vmatprep.subr.bf16.mxu0 0
    %671 = vmatpush1.bf16.msra.mxu0 0
    %672 = vmatprep.subr.bf16.mxu0 0
    %673 = vmatpush1.bf16.msra.mxu0 0
    %674 = vmatprep.subr.bf16.mxu0 0
    %675 = vmatpush1.bf16.msra.mxu0 0
    %676 = vmatprep.subr.bf16.mxu0 0
    %677 = vmatpush1.bf16.msra.mxu0 0
    %678 = vmatprep.subr.bf16.mxu0 0
    %679 = vmatpush1.bf16.msra.mxu0 0
    %680 = vmatprep.subr.bf16.mxu0 0
    %681 = vmatpush1.bf16.msra.mxu0 0
    %682 = vmatprep.subr.bf16.mxu0 0
    %683 = vmatpush1.bf16.msra.mxu0 0
    %684 = vmatprep.subr.bf16.mxu0 0
    %685 = vmatpush1.bf16.msra.mxu0 0
    %686 = vmatprep.mubr.bf16.mxu0 0
    %687 = vmatmul.mubr.bf16.gmra.mrb[0].mxu0 %v103
    %v688 = vpop.f32.mrb[0].mxu0
    %v689 = vadd.f32 %v198, %v688
    %v690 = vpop.f32.mrb[0].mxu0
    %v691 = vadd.f32 %v202, %v690
    %v692 = vpop.f32.mrb[0].mxu0
    %v693 = vpop.f32.mrb[0].mxu0
    %694 = vdwg.mxu0
    %v695 = vmax.f32 %v566, 0.0
    %v696 = vmax.f32 %v568, 0.0
    %v697 = vmax.f32 %v607, 0.0
    %v698 = vmax.f32 %v609, 0.0
    %v699 = vmax.f32 %v648, 0.0
    %v700 = vmax.f32 %v650, 0.0
    %v701 = vmax.f32 %v689, 0.0
    %v702 = vmax.f32 %v691, 0.0
    %v703 = vpack.c.bf16 %v695, %v695
    %v704 = vpack.c.bf16 %v696, %v696
    %v705 = vpack.c.bf16 %v697, %v697
    %v706 = vpack.c.bf16 %v698, %v698
    %v707 = vpack.c.bf16 %v699, %v699
    %v708 = vpack.c.bf16 %v700, %v700
    %v709 = vpack.c.bf16 %v701, %v701
    %v710 = vpack.c.bf16 %v702, %v702
    %v711 = vld [vmem:[#allocation7] sm:$0xff]
    %v712 = vld [vmem:[#allocation7 + $0x8] sm:$0xff]
    %v713 = vld [vmem:[#allocation7 + $0x10] sm:$0xff]
    %v714 = vld [vmem:[#allocation7 + $0x18] sm:$0xff]
    %v715 = vld [vmem:[#allocation7 + $0x20] sm:$0xff]
    %v716 = vld [vmem:[#allocation7 + $0x28] sm:$0xff]
    %v717 = vld [vmem:[#allocation7 + $0x30] sm:$0xff]
    %v718 = vld [vmem:[#allocation7 + $0x38] sm:$0xff]
    %v719 = vld [vmem:[#allocation7 + $0x40] sm:$0xff]
    %v720 = vld [vmem:[#allocation7 + $0x48] sm:$0xff]
    %v721 = vld [vmem:[#allocation7 + $0x50] sm:$0xff]
    %v722 = vld [vmem:[#allocation7 + $0x58] sm:$0xff]
    %v723 = vld [vmem:[#allocation7 + $0x60] sm:$0xff]
    %v724 = vld [vmem:[#allocation7 + $0x68] sm:$0xff]
    %v725 = vld [vmem:[#allocation7 + $0x70] sm:$0xff]
    %v726 = vld [vmem:[#allocation7 + $0x78] sm:$0xff]
    %v727 = vld [vmem:[#allocation7 + $0x80] sm:$0xff]
    %v728 = vld [vmem:[#allocation7 + $0x88] sm:$0xff]
    %v729 = vld [vmem:[#allocation7 + $0x90] sm:$0xff]
    %v730 = vld [vmem:[#allocation7 + $0x98] sm:$0xff]
    %v731 = vld [vmem:[#allocation7 + $0xa0] sm:$0xff]
    %v732 = vld [vmem:[#allocation7 + $0xa8] sm:$0xff]
    %v733 = vld [vmem:[#allocation7 + $0xb0] sm:$0xff]
    %v734 = vld [vmem:[#allocation7 + $0xb8] sm:$0xff]
    %v735 = vld [vmem:[#allocation7 + $0xc0] sm:$0xff]
    %v736 = vld [vmem:[#allocation7 + $0xc8] sm:$0xff]
    %v737 = vld [vmem:[#allocation7 + $0xd0] sm:$0xff]
    %v738 = vld [vmem:[#allocation7 + $0xd8] sm:$0xff]
    %v739 = vld [vmem:[#allocation7 + $0xe0] sm:$0xff]
    %v740 = vld [vmem:[#allocation7 + $0xe8] sm:$0xff]
    %v741 = vld [vmem:[#allocation7 + $0xf0] sm:$0xff]
    %v742 = vld [vmem:[#allocation7 + $0xf8] sm:$0xff]
    %v743 = vld [vmem:[#allocation7 + $0x100] sm:$0xff]
    %v744 = vld [vmem:[#allocation7 + $0x108] sm:$0xff]
    %v745 = vld [vmem:[#allocation7 + $0x110] sm:$0xff]
    %v746 = vld [vmem:[#allocation7 + $0x118] sm:$0xff]
    %v747 = vld [vmem:[#allocation7 + $0x120] sm:$0xff]
    %v748 = vld [vmem:[#allocation7 + $0x128] sm:$0xff]
    %v749 = vld [vmem:[#allocation7 + $0x130] sm:$0xff]
    %v750 = vld [vmem:[#allocation7 + $0x138] sm:$0xff]
    %v751 = vld [vmem:[#allocation7 + $0x140] sm:$0xff]
    %v752 = vld [vmem:[#allocation7 + $0x148] sm:$0xff]
    %v753 = vld [vmem:[#allocation7 + $0x150] sm:$0xff]
    %v754 = vld [vmem:[#allocation7 + $0x158] sm:$0xff]
    %v755 = vld [vmem:[#allocation7 + $0x160] sm:$0xff]
    %v756 = vld [vmem:[#allocation7 + $0x168] sm:$0xff]
    %v757 = vld [vmem:[#allocation7 + $0x170] sm:$0xff]
    %v758 = vld [vmem:[#allocation7 + $0x178] sm:$0xff]
    %v759 = vld [vmem:[#allocation7 + $0x180] sm:$0xff]
    %v760 = vld [vmem:[#allocation7 + $0x188] sm:$0xff]
    %v761 = vld [vmem:[#allocation7 + $0x190] sm:$0xff]
    %v762 = vld [vmem:[#allocation7 + $0x198] sm:$0xff]
    %v763 = vld [vmem:[#allocation7 + $0x1a0] sm:$0xff]
    %v764 = vld [vmem:[#allocation7 + $0x1a8] sm:$0xff]
    %v765 = vld [vmem:[#allocation7 + $0x1b0] sm:$0xff]
    %v766 = vld [vmem:[#allocation7 + $0x1b8] sm:$0xff]
    %v767 = vld [vmem:[#allocation7 + $0x1c0] sm:$0xff]
    %v768 = vld [vmem:[#allocation7 + $0x1c8] sm:$0xff]
    %v769 = vld [vmem:[#allocation7 + $0x1d0] sm:$0xff]
    %v770 = vld [vmem:[#allocation7 + $0x1d8] sm:$0xff]
    %v771 = vld [vmem:[#allocation7 + $0x1e0] sm:$0xff]
    %v772 = vld [vmem:[#allocation7 + $0x1e8] sm:$0xff]
    %v773 = vld [vmem:[#allocation7 + $0x1f0] sm:$0xff]
    %v774 = vld [vmem:[#allocation7 + $0x1f8] sm:$0xff]
    %v775 = vld [vmem:[#allocation7 + $0x200] sm:$0xff]
    %v776 = vld [vmem:[#allocation7 + $0x208] sm:$0xff]
    %v777 = vld [vmem:[#allocation7 + $0x210] sm:$0xff]
    %v778 = vld [vmem:[#allocation7 + $0x218] sm:$0xff]
    %v779 = vld [vmem:[#allocation7 + $0x220] sm:$0xff]
    %v780 = vld [vmem:[#allocation7 + $0x228] sm:$0xff]
    %v781 = vld [vmem:[#allocation7 + $0x230] sm:$0xff]
    %v782 = vld [vmem:[#allocation7 + $0x238] sm:$0xff]
    %v783 = vld [vmem:[#allocation7 + $0x240] sm:$0xff]
    %v784 = vld [vmem:[#allocation7 + $0x248] sm:$0xff]
    %v785 = vld [vmem:[#allocation7 + $0x250] sm:$0xff]
    %v786 = vld [vmem:[#allocation7 + $0x258] sm:$0xff]
    %v787 = vld [vmem:[#allocation7 + $0x260] sm:$0xff]
    %v788 = vld [vmem:[#allocation7 + $0x268] sm:$0xff]
    %v789 = vld [vmem:[#allocation7 + $0x270] sm:$0xff]
    %v790 = vld [vmem:[#allocation7 + $0x278] sm:$0xff]
    %v791 = vld [vmem:[#allocation7 + $0x280] sm:$0xff]
    %v792 = vld [vmem:[#allocation7 + $0x288] sm:$0xff]
    %v793 = vld [vmem:[#allocation7 + $0x290] sm:$0xff]
    %v794 = vld [vmem:[#allocation7 + $0x298] sm:$0xff]
    %v795 = vld [vmem:[#allocation7 + $0x2a0] sm:$0xff]
    %v796 = vld [vmem:[#allocation7 + $0x2a8] sm:$0xff]
    %v797 = vld [vmem:[#allocation7 + $0x2b0] sm:$0xff]
    %v798 = vld [vmem:[#allocation7 + $0x2b8] sm:$0xff]
    %v799 = vld [vmem:[#allocation7 + $0x2c0] sm:$0xff]
    %v800 = vld [vmem:[#allocation7 + $0x2c8] sm:$0xff]
    %v801 = vld [vmem:[#allocation7 + $0x2d0] sm:$0xff]
    %v802 = vld [vmem:[#allocation7 + $0x2d8] sm:$0xff]
    %v803 = vld [vmem:[#allocation7 + $0x2e0] sm:$0xff]
    %v804 = vld [vmem:[#allocation7 + $0x2e8] sm:$0xff]
    %v805 = vld [vmem:[#allocation7 + $0x2f0] sm:$0xff]
    %v806 = vld [vmem:[#allocation7 + $0x2f8] sm:$0xff]
    %v807 = vld [vmem:[#allocation7 + $0x300] sm:$0xff]
    %v808 = vld [vmem:[#allocation7 + $0x308] sm:$0xff]
    %v809 = vld [vmem:[#allocation7 + $0x310] sm:$0xff]
    %v810 = vld [vmem:[#allocation7 + $0x318] sm:$0xff]
    %v811 = vld [vmem:[#allocation7 + $0x320] sm:$0xff]
    %v812 = vld [vmem:[#allocation7 + $0x328] sm:$0xff]
    %v813 = vld [vmem:[#allocation7 + $0x330] sm:$0xff]
    %v814 = vld [vmem:[#allocation7 + $0x338] sm:$0xff]
    %v815 = vld [vmem:[#allocation7 + $0x340] sm:$0xff]
    %v816 = vld [vmem:[#allocation7 + $0x348] sm:$0xff]
    %v817 = vld [vmem:[#allocation7 + $0x350] sm:$0xff]
    %v818 = vld [vmem:[#allocation7 + $0x358] sm:$0xff]
    %v819 = vld [vmem:[#allocation7 + $0x360] sm:$0xff]
    %v820 = vld [vmem:[#allocation7 + $0x368] sm:$0xff]
    %v821 = vld [vmem:[#allocation7 + $0x370] sm:$0xff]
    %v822 = vld [vmem:[#allocation7 + $0x378] sm:$0xff]
    %v823 = vld [vmem:[#allocation7 + $0x380] sm:$0xff]
    %v824 = vld [vmem:[#allocation7 + $0x388] sm:$0xff]
    %v825 = vld [vmem:[#allocation7 + $0x390] sm:$0xff]
    %v826 = vld [vmem:[#allocation7 + $0x398] sm:$0xff]
    %v827 = vld [vmem:[#allocation7 + $0x3a0] sm:$0xff]
    %v828 = vld [vmem:[#allocation7 + $0x3a8] sm:$0xff]
    %v829 = vld [vmem:[#allocation7 + $0x3b0] sm:$0xff]
    %v830 = vld [vmem:[#allocation7 + $0x3b8] sm:$0xff]
    %v831 = vld [vmem:[#allocation7 + $0x3c0] sm:$0xff]
    %v832 = vld [vmem:[#allocation7 + $0x3c8] sm:$0xff]
    %v833 = vld [vmem:[#allocation7 + $0x3d0] sm:$0xff]
    %v834 = vld [vmem:[#allocation7 + $0x3d8] sm:$0xff]
    %v835 = vld [vmem:[#allocation7 + $0x3e0] sm:$0xff]
    %v836 = vld [vmem:[#allocation7 + $0x3e8] sm:$0xff]
    %v837 = vld [vmem:[#allocation7 + $0x3f0] sm:$0xff]
    %v838 = vld [vmem:[#allocation7 + $0x3f8] sm:$0xff]
    %v839 = vld [vmem:[#allocation7 + $0x400] sm:$0xff]
    %v840 = vld [vmem:[#allocation7 + $0x408] sm:$0xff]
    %v841 = vld [vmem:[#allocation7 + $0x410] sm:$0xff]
    %v842 = vld [vmem:[#allocation7 + $0x418] sm:$0xff]
    %v843 = vld [vmem:[#allocation7 + $0x420] sm:$0xff]
    %v844 = vld [vmem:[#allocation7 + $0x428] sm:$0xff]
    %v845 = vld [vmem:[#allocation7 + $0x430] sm:$0xff]
    %v846 = vld [vmem:[#allocation7 + $0x438] sm:$0xff]
    %v847 = vld [vmem:[#allocation7 + $0x440] sm:$0xff]
    %v848 = vld [vmem:[#allocation7 + $0x448] sm:$0xff]
    %v849 = vld [vmem:[#allocation7 + $0x450] sm:$0xff]
    %v850 = vld [vmem:[#allocation7 + $0x458] sm:$0xff]
    %v851 = vld [vmem:[#allocation7 + $0x460] sm:$0xff]
    %v852 = vld [vmem:[#allocation7 + $0x468] sm:$0xff]
    %v853 = vld [vmem:[#allocation7 + $0x470] sm:$0xff]
    %v854 = vld [vmem:[#allocation7 + $0x478] sm:$0xff]
    %v855 = vld [vmem:[#allocation7 + $0x480] sm:$0xff]
    %v856 = vld [vmem:[#allocation7 + $0x488] sm:$0xff]
    %v857 = vld [vmem:[#allocation7 + $0x490] sm:$0xff]
    %v858 = vld [vmem:[#allocation7 + $0x498] sm:$0xff]
    %v859 = vld [vmem:[#allocation7 + $0x4a0] sm:$0xff]
    %v860 = vld [vmem:[#allocation7 + $0x4a8] sm:$0xff]
    %v861 = vld [vmem:[#allocation7 + $0x4b0] sm:$0xff]
    %v862 = vld [vmem:[#allocation7 + $0x4b8] sm:$0xff]
    %v863 = vld [vmem:[#allocation7 + $0x4c0] sm:$0xff]
    %v864 = vld [vmem:[#allocation7 + $0x4c8] sm:$0xff]
    %v865 = vld [vmem:[#allocation7 + $0x4d0] sm:$0xff]
    %v866 = vld [vmem:[#allocation7 + $0x4d8] sm:$0xff]
    %v867 = vld [vmem:[#allocation7 + $0x4e0] sm:$0xff]
    %v868 = vld [vmem:[#allocation7 + $0x4e8] sm:$0xff]
    %v869 = vld [vmem:[#allocation7 + $0x4f0] sm:$0xff]
    %v870 = vld [vmem:[#allocation7 + $0x4f8] sm:$0xff]
    %v871 = vld [vmem:[#allocation7 + $0x500] sm:$0xff]
    %v872 = vld [vmem:[#allocation7 + $0x508] sm:$0xff]
    %v873 = vld [vmem:[#allocation7 + $0x510] sm:$0xff]
    %v874 = vld [vmem:[#allocation7 + $0x518] sm:$0xff]
    %v875 = vld [vmem:[#allocation7 + $0x520] sm:$0xff]
    %v876 = vld [vmem:[#allocation7 + $0x528] sm:$0xff]
    %v877 = vld [vmem:[#allocation7 + $0x530] sm:$0xff]
    %v878 = vld [vmem:[#allocation7 + $0x538] sm:$0xff]
    %v879 = vld [vmem:[#allocation7 + $0x540] sm:$0xff]
    %v880 = vld [vmem:[#allocation7 + $0x548] sm:$0xff]
    %v881 = vld [vmem:[#allocation7 + $0x550] sm:$0xff]
    %v882 = vld [vmem:[#allocation7 + $0x558] sm:$0xff]
    %v883 = vld [vmem:[#allocation7 + $0x560] sm:$0xff]
    %v884 = vld [vmem:[#allocation7 + $0x568] sm:$0xff]
    %v885 = vld [vmem:[#allocation7 + $0x570] sm:$0xff]
    %v886 = vld [vmem:[#allocation7 + $0x578] sm:$0xff]
    %v887 = vld [vmem:[#allocation7 + $0x580] sm:$0xff]
    %v888 = vld [vmem:[#allocation7 + $0x588] sm:$0xff]
    %v889 = vld [vmem:[#allocation7 + $0x590] sm:$0xff]
    %v890 = vld [vmem:[#allocation7 + $0x598] sm:$0xff]
    %v891 = vld [vmem:[#allocation7 + $0x5a0] sm:$0xff]
    %v892 = vld [vmem:[#allocation7 + $0x5a8] sm:$0xff]
    %v893 = vld [vmem:[#allocation7 + $0x5b0] sm:$0xff]
    %v894 = vld [vmem:[#allocation7 + $0x5b8] sm:$0xff]
    %v895 = vld [vmem:[#allocation7 + $0x5c0] sm:$0xff]
    %v896 = vld [vmem:[#allocation7 + $0x5c8] sm:$0xff]
    %v897 = vld [vmem:[#allocation7 + $0x5d0] sm:$0xff]
    %v898 = vld [vmem:[#allocation7 + $0x5d8] sm:$0xff]
    %v899 = vld [vmem:[#allocation7 + $0x5e0] sm:$0xff]
    %v900 = vld [vmem:[#allocation7 + $0x5e8] sm:$0xff]
    %v901 = vld [vmem:[#allocation7 + $0x5f0] sm:$0xff]
    %v902 = vld [vmem:[#allocation7 + $0x5f8] sm:$0xff]
    %v903 = vld [vmem:[#allocation7 + $0x600] sm:$0xff]
    %v904 = vld [vmem:[#allocation7 + $0x608] sm:$0xff]
    %v905 = vld [vmem:[#allocation7 + $0x610] sm:$0xff]
    %v906 = vld [vmem:[#allocation7 + $0x618] sm:$0xff]
    %v907 = vld [vmem:[#allocation7 + $0x620] sm:$0xff]
    %v908 = vld [vmem:[#allocation7 + $0x628] sm:$0xff]
    %v909 = vld [vmem:[#allocation7 + $0x630] sm:$0xff]
    %v910 = vld [vmem:[#allocation7 + $0x638] sm:$0xff]
    %v911 = vld [vmem:[#allocation7 + $0x640] sm:$0xff]
    %v912 = vld [vmem:[#allocation7 + $0x648] sm:$0xff]
    %v913 = vld [vmem:[#allocation7 + $0x650] sm:$0xff]
    %v914 = vld [vmem:[#allocation7 + $0x658] sm:$0xff]
    %v915 = vld [vmem:[#allocation7 + $0x660] sm:$0xff]
    %v916 = vld [vmem:[#allocation7 + $0x668] sm:$0xff]
    %v917 = vld [vmem:[#allocation7 + $0x670] sm:$0xff]
    %v918 = vld [vmem:[#allocation7 + $0x678] sm:$0xff]
    %v919 = vld [vmem:[#allocation7 + $0x680] sm:$0xff]
    %v920 = vld [vmem:[#allocation7 + $0x688] sm:$0xff]
    %v921 = vld [vmem:[#allocation7 + $0x690] sm:$0xff]
    %v922 = vld [vmem:[#allocation7 + $0x698] sm:$0xff]
    %v923 = vld [vmem:[#allocation7 + $0x6a0] sm:$0xff]
    %v924 = vld [vmem:[#allocation7 + $0x6a8] sm:$0xff]
    %v925 = vld [vmem:[#allocation7 + $0x6b0] sm:$0xff]
    %v926 = vld [vmem:[#allocation7 + $0x6b8] sm:$0xff]
    %v927 = vld [vmem:[#allocation7 + $0x6c0] sm:$0xff]
    %v928 = vld [vmem:[#allocation7 + $0x6c8] sm:$0xff]
    %v929 = vld [vmem:[#allocation7 + $0x6d0] sm:$0xff]
    %v930 = vld [vmem:[#allocation7 + $0x6d8] sm:$0xff]
    %v931 = vld [vmem:[#allocation7 + $0x6e0] sm:$0xff]
    %v932 = vld [vmem:[#allocation7 + $0x6e8] sm:$0xff]
    %v933 = vld [vmem:[#allocation7 + $0x6f0] sm:$0xff]
    %v934 = vld [vmem:[#allocation7 + $0x6f8] sm:$0xff]
    %v935 = vld [vmem:[#allocation7 + $0x700] sm:$0xff]
    %v936 = vld [vmem:[#allocation7 + $0x708] sm:$0xff]
    %v937 = vld [vmem:[#allocation7 + $0x710] sm:$0xff]
    %v938 = vld [vmem:[#allocation7 + $0x718] sm:$0xff]
    %v939 = vld [vmem:[#allocation7 + $0x720] sm:$0xff]
    %v940 = vld [vmem:[#allocation7 + $0x728] sm:$0xff]
    %v941 = vld [vmem:[#allocation7 + $0x730] sm:$0xff]
    %v942 = vld [vmem:[#allocation7 + $0x738] sm:$0xff]
    %v943 = vld [vmem:[#allocation7 + $0x740] sm:$0xff]
    %v944 = vld [vmem:[#allocation7 + $0x748] sm:$0xff]
    %v945 = vld [vmem:[#allocation7 + $0x750] sm:$0xff]
    %v946 = vld [vmem:[#allocation7 + $0x758] sm:$0xff]
    %v947 = vld [vmem:[#allocation7 + $0x760] sm:$0xff]
    %v948 = vld [vmem:[#allocation7 + $0x768] sm:$0xff]
    %v949 = vld [vmem:[#allocation7 + $0x770] sm:$0xff]
    %v950 = vld [vmem:[#allocation7 + $0x778] sm:$0xff]
    %v951 = vld [vmem:[#allocation7 + $0x780] sm:$0xff]
    %v952 = vld [vmem:[#allocation7 + $0x788] sm:$0xff]
    %v953 = vld [vmem:[#allocation7 + $0x790] sm:$0xff]
    %v954 = vld [vmem:[#allocation7 + $0x798] sm:$0xff]
    %v955 = vld [vmem:[#allocation7 + $0x7a0] sm:$0xff]
    %v956 = vld [vmem:[#allocation7 + $0x7a8] sm:$0xff]
    %v957 = vld [vmem:[#allocation7 + $0x7b0] sm:$0xff]
    %v958 = vld [vmem:[#allocation7 + $0x7b8] sm:$0xff]
    %v959 = vld [vmem:[#allocation7 + $0x7c0] sm:$0xff]
    %v960 = vld [vmem:[#allocation7 + $0x7c8] sm:$0xff]
    %v961 = vld [vmem:[#allocation7 + $0x7d0] sm:$0xff]
    %v962 = vld [vmem:[#allocation7 + $0x7d8] sm:$0xff]
    %v963 = vld [vmem:[#allocation7 + $0x7e0] sm:$0xff]
    %v964 = vld [vmem:[#allocation7 + $0x7e8] sm:$0xff]
    %v965 = vld [vmem:[#allocation7 + $0x7f0] sm:$0xff]
    %v966 = vld [vmem:[#allocation7 + $0x7f8] sm:$0xff]
    %v967 = vld [vmem:[#allocation11 + $0x8] sm:$0xf]
    %v969 = vlaneseq
    %v970 = vshrl.u32 %v969, 7
    %v971 = vsub.s32 0, %v970
    %v972 = vrot.slane %v967, %v971
    %v973 = vlaneseq
    %v974 = vshrl.u32 %v973, 7
    %v975 = vsub.s32 1, %v974
    %v976 = vrot.slane %v967, %v975
    %v977 = vlaneseq
    %v978 = vshrl.u32 %v977, 7
    %v979 = vsub.s32 2, %v978
    %v980 = vrot.slane %v967, %v979
    %v981 = vlaneseq
    %v982 = vshrl.u32 %v981, 7
    %v983 = vsub.s32 3, %v982
    %v984 = vrot.slane %v967, %v983
    %v1245 = vunpack.c.l.b16 %v711
    %v1246 = vunpack.c.h.b16 %v711
    %v1247 = vunpack.c.l.b16 %v712
    %v1248 = vunpack.c.h.b16 %v712
    %v1249 = vunpack.c.l.b16 %v713
    %v1250 = vunpack.c.h.b16 %v713
    %v1251 = vunpack.c.l.b16 %v714
    %v1252 = vunpack.c.h.b16 %v714
    %v1253 = vunpack.c.l.b16 %v715
    %v1254 = vunpack.c.h.b16 %v715
    %v1255 = vunpack.c.l.b16 %v716
    %v1256 = vunpack.c.h.b16 %v716
    %v1257 = vunpack.c.l.b16 %v717
    %v1258 = vunpack.c.h.b16 %v717
    %v1259 = vunpack.c.l.b16 %v718
    %v1260 = vunpack.c.h.b16 %v718
    %v1261 = vunpack.c.l.b16 %v719
    %v1262 = vunpack.c.h.b16 %v719
    %v1263 = vunpack.c.l.b16 %v720
    %v1264 = vunpack.c.h.b16 %v720
    %v1265 = vunpack.c.l.b16 %v721
    %v1266 = vunpack.c.h.b16 %v721
    %v1267 = vunpack.c.l.b16 %v722
    %v1268 = vunpack.c.h.b16 %v722
    %v1269 = vunpack.c.l.b16 %v723
    %v1270 = vunpack.c.h.b16 %v723
    %v1271 = vunpack.c.l.b16 %v724
    %v1272 = vunpack.c.h.b16 %v724
    %v1273 = vunpack.c.l.b16 %v725
    %v1274 = vunpack.c.h.b16 %v725
    %v1275 = vunpack.c.l.b16 %v726
    %v1276 = vunpack.c.h.b16 %v726
    %v1277 = vunpack.c.l.b16 %v727
    %v1278 = vunpack.c.h.b16 %v727
    %v1279 = vunpack.c.l.b16 %v728
    %v1280 = vunpack.c.h.b16 %v728
    %v1281 = vunpack.c.l.b16 %v729
    %v1282 = vunpack.c.h.b16 %v729
    %v1283 = vunpack.c.l.b16 %v730
    %v1284 = vunpack.c.h.b16 %v730
    %v1285 = vunpack.c.l.b16 %v731
    %v1286 = vunpack.c.h.b16 %v731
    %v1287 = vunpack.c.l.b16 %v732
    %v1288 = vunpack.c.h.b16 %v732
    %v1289 = vunpack.c.l.b16 %v733
    %v1290 = vunpack.c.h.b16 %v733
    %v1291 = vunpack.c.l.b16 %v734
    %v1292 = vunpack.c.h.b16 %v734
    %v1293 = vunpack.c.l.b16 %v735
    %v1294 = vunpack.c.h.b16 %v735
    %v1295 = vunpack.c.l.b16 %v736
    %v1296 = vunpack.c.h.b16 %v736
    %v1297 = vunpack.c.l.b16 %v737
    %v1298 = vunpack.c.h.b16 %v737
    %v1299 = vunpack.c.l.b16 %v738
    %v1300 = vunpack.c.h.b16 %v738
    %v1301 = vunpack.c.l.b16 %v739
    %v1302 = vunpack.c.h.b16 %v739
    %v1303 = vunpack.c.l.b16 %v740
    %v1304 = vunpack.c.h.b16 %v740
    %v1305 = vunpack.c.l.b16 %v741
    %v1306 = vunpack.c.h.b16 %v741
    %v1307 = vunpack.c.l.b16 %v742
    %v1308 = vunpack.c.h.b16 %v742
    %v1309 = vunpack.c.l.b16 %v743
    %v1310 = vunpack.c.h.b16 %v743
    %v1311 = vunpack.c.l.b16 %v744
    %v1312 = vunpack.c.h.b16 %v744
    %v1313 = vunpack.c.l.b16 %v745
    %v1314 = vunpack.c.h.b16 %v745
    %v1315 = vunpack.c.l.b16 %v746
    %v1316 = vunpack.c.h.b16 %v746
    %v1317 = vunpack.c.l.b16 %v747
    %v1318 = vunpack.c.h.b16 %v747
    %v1319 = vunpack.c.l.b16 %v748
    %v1320 = vunpack.c.h.b16 %v748
    %v1321 = vunpack.c.l.b16 %v749
    %v1322 = vunpack.c.h.b16 %v749
    %v1323 = vunpack.c.l.b16 %v750
    %v1324 = vunpack.c.h.b16 %v750
    %v1325 = vunpack.c.l.b16 %v751
    %v1326 = vunpack.c.h.b16 %v751
    %v1327 = vunpack.c.l.b16 %v752
    %v1328 = vunpack.c.h.b16 %v752
    %v1329 = vunpack.c.l.b16 %v753
    %v1330 = vunpack.c.h.b16 %v753
    %v1331 = vunpack.c.l.b16 %v754
    %v1332 = vunpack.c.h.b16 %v754
    %v1333 = vunpack.c.l.b16 %v755
    %v1334 = vunpack.c.h.b16 %v755
    %v1335 = vunpack.c.l.b16 %v756
    %v1336 = vunpack.c.h.b16 %v756
    %v1337 = vunpack.c.l.b16 %v757
    %v1338 = vunpack.c.h.b16 %v757
    %v1339 = vunpack.c.l.b16 %v758
    %v1340 = vunpack.c.h.b16 %v758
    %v1341 = vunpack.c.l.b16 %v759
    %v1342 = vunpack.c.h.b16 %v759
    %v1343 = vunpack.c.l.b16 %v760
    %v1344 = vunpack.c.h.b16 %v760
    %v1345 = vunpack.c.l.b16 %v761
    %v1346 = vunpack.c.h.b16 %v761
    %v1347 = vunpack.c.l.b16 %v762
    %v1348 = vunpack.c.h.b16 %v762
    %v1349 = vunpack.c.l.b16 %v763
    %v1350 = vunpack.c.h.b16 %v763
    %v1351 = vunpack.c.l.b16 %v764
    %v1352 = vunpack.c.h.b16 %v764
    %v1353 = vunpack.c.l.b16 %v765
    %v1354 = vunpack.c.h.b16 %v765
    %v1355 = vunpack.c.l.b16 %v766
    %v1356 = vunpack.c.h.b16 %v766
    %v1357 = vunpack.c.l.b16 %v767
    %v1358 = vunpack.c.h.b16 %v767
    %v1359 = vunpack.c.l.b16 %v768
    %v1360 = vunpack.c.h.b16 %v768
    %v1361 = vunpack.c.l.b16 %v769
    %v1362 = vunpack.c.h.b16 %v769
    %v1363 = vunpack.c.l.b16 %v770
    %v1364 = vunpack.c.h.b16 %v770
    %v1365 = vunpack.c.l.b16 %v771
    %v1366 = vunpack.c.h.b16 %v771
    %v1367 = vunpack.c.l.b16 %v772
    %v1368 = vunpack.c.h.b16 %v772
    %v1369 = vunpack.c.l.b16 %v773
    %v1370 = vunpack.c.h.b16 %v773
    %v1371 = vunpack.c.l.b16 %v774
    %v1372 = vunpack.c.h.b16 %v774
    %v1373 = vunpack.c.l.b16 %v775
    %v1374 = vunpack.c.h.b16 %v775
    %v1375 = vunpack.c.l.b16 %v776
    %v1376 = vunpack.c.h.b16 %v776
    %v1377 = vunpack.c.l.b16 %v777
    %v1378 = vunpack.c.h.b16 %v777
    %v1379 = vunpack.c.l.b16 %v778
    %v1380 = vunpack.c.h.b16 %v778
    %v1381 = vunpack.c.l.b16 %v779
    %v1382 = vunpack.c.h.b16 %v779
    %v1383 = vunpack.c.l.b16 %v780
    %v1384 = vunpack.c.h.b16 %v780
    %v1385 = vunpack.c.l.b16 %v781
    %v1386 = vunpack.c.h.b16 %v781
    %v1387 = vunpack.c.l.b16 %v782
    %v1388 = vunpack.c.h.b16 %v782
    %v1389 = vunpack.c.l.b16 %v783
    %v1390 = vunpack.c.h.b16 %v783
    %v1391 = vunpack.c.l.b16 %v784
    %v1392 = vunpack.c.h.b16 %v784
    %v1393 = vunpack.c.l.b16 %v785
    %v1394 = vunpack.c.h.b16 %v785
    %v1395 = vunpack.c.l.b16 %v786
    %v1396 = vunpack.c.h.b16 %v786
    %v1397 = vunpack.c.l.b16 %v787
    %v1398 = vunpack.c.h.b16 %v787
    %v1399 = vunpack.c.l.b16 %v788
    %v1400 = vunpack.c.h.b16 %v788
    %v1401 = vunpack.c.l.b16 %v789
    %v1402 = vunpack.c.h.b16 %v789
    %v1403 = vunpack.c.l.b16 %v790
    %v1404 = vunpack.c.h.b16 %v790
    %v1405 = vunpack.c.l.b16 %v791
    %v1406 = vunpack.c.h.b16 %v791
    %v1407 = vunpack.c.l.b16 %v792
    %v1408 = vunpack.c.h.b16 %v792
    %v1409 = vunpack.c.l.b16 %v793
    %v1410 = vunpack.c.h.b16 %v793
    %v1411 = vunpack.c.l.b16 %v794
    %v1412 = vunpack.c.h.b16 %v794
    %v1413 = vunpack.c.l.b16 %v795
    %v1414 = vunpack.c.h.b16 %v795
    %v1415 = vunpack.c.l.b16 %v796
    %v1416 = vunpack.c.h.b16 %v796
    %v1417 = vunpack.c.l.b16 %v797
    %v1418 = vunpack.c.h.b16 %v797
    %v1419 = vunpack.c.l.b16 %v798
    %v1420 = vunpack.c.h.b16 %v798
    %v1421 = vunpack.c.l.b16 %v799
    %v1422 = vunpack.c.h.b16 %v799
    %v1423 = vunpack.c.l.b16 %v800
    %v1424 = vunpack.c.h.b16 %v800
    %v1425 = vunpack.c.l.b16 %v801
    %v1426 = vunpack.c.h.b16 %v801
    %v1427 = vunpack.c.l.b16 %v802
    %v1428 = vunpack.c.h.b16 %v802
    %v1429 = vunpack.c.l.b16 %v803
    %v1430 = vunpack.c.h.b16 %v803
    %v1431 = vunpack.c.l.b16 %v804
    %v1432 = vunpack.c.h.b16 %v804
    %v1433 = vunpack.c.l.b16 %v805
    %v1434 = vunpack.c.h.b16 %v805
    %v1435 = vunpack.c.l.b16 %v806
    %v1436 = vunpack.c.h.b16 %v806
    %v1437 = vunpack.c.l.b16 %v807
    %v1438 = vunpack.c.h.b16 %v807
    %v1439 = vunpack.c.l.b16 %v808
    %v1440 = vunpack.c.h.b16 %v808
    %v1441 = vunpack.c.l.b16 %v809
    %v1442 = vunpack.c.h.b16 %v809
    %v1443 = vunpack.c.l.b16 %v810
    %v1444 = vunpack.c.h.b16 %v810
    %v1445 = vunpack.c.l.b16 %v811
    %v1446 = vunpack.c.h.b16 %v811
    %v1447 = vunpack.c.l.b16 %v812
    %v1448 = vunpack.c.h.b16 %v812
    %v1449 = vunpack.c.l.b16 %v813
    %v1450 = vunpack.c.h.b16 %v813
    %v1451 = vunpack.c.l.b16 %v814
    %v1452 = vunpack.c.h.b16 %v814
    %v1453 = vunpack.c.l.b16 %v815
    %v1454 = vunpack.c.h.b16 %v815
    %v1455 = vunpack.c.l.b16 %v816
    %v1456 = vunpack.c.h.b16 %v816
    %v1457 = vunpack.c.l.b16 %v817
    %v1458 = vunpack.c.h.b16 %v817
    %v1459 = vunpack.c.l.b16 %v818
    %v1460 = vunpack.c.h.b16 %v818
    %v1461 = vunpack.c.l.b16 %v819
    %v1462 = vunpack.c.h.b16 %v819
    %v1463 = vunpack.c.l.b16 %v820
    %v1464 = vunpack.c.h.b16 %v820
    %v1465 = vunpack.c.l.b16 %v821
    %v1466 = vunpack.c.h.b16 %v821
    %v1467 = vunpack.c.l.b16 %v822
    %v1468 = vunpack.c.h.b16 %v822
    %v1469 = vunpack.c.l.b16 %v823
    %v1470 = vunpack.c.h.b16 %v823
    %v1471 = vunpack.c.l.b16 %v824
    %v1472 = vunpack.c.h.b16 %v824
    %v1473 = vunpack.c.l.b16 %v825
    %v1474 = vunpack.c.h.b16 %v825
    %v1475 = vunpack.c.l.b16 %v826
    %v1476 = vunpack.c.h.b16 %v826
    %v1477 = vunpack.c.l.b16 %v827
    %v1478 = vunpack.c.h.b16 %v827
    %v1479 = vunpack.c.l.b16 %v828
    %v1480 = vunpack.c.h.b16 %v828
    %v1481 = vunpack.c.l.b16 %v829
    %v1482 = vunpack.c.h.b16 %v829
    %v1483 = vunpack.c.l.b16 %v830
    %v1484 = vunpack.c.h.b16 %v830
    %v1485 = vunpack.c.l.b16 %v831
    %v1486 = vunpack.c.h.b16 %v831
    %v1487 = vunpack.c.l.b16 %v832
    %v1488 = vunpack.c.h.b16 %v832
    %v1489 = vunpack.c.l.b16 %v833
    %v1490 = vunpack.c.h.b16 %v833
    %v1491 = vunpack.c.l.b16 %v834
    %v1492 = vunpack.c.h.b16 %v834
    %v1493 = vunpack.c.l.b16 %v835
    %v1494 = vunpack.c.h.b16 %v835
    %v1495 = vunpack.c.l.b16 %v836
    %v1496 = vunpack.c.h.b16 %v836
    %v1497 = vunpack.c.l.b16 %v837
    %v1498 = vunpack.c.h.b16 %v837
    %v1499 = vunpack.c.l.b16 %v838
    %v1500 = vunpack.c.h.b16 %v838
    %v1501 = vunpack.c.l.b16 %v839
    %v1502 = vunpack.c.h.b16 %v839
    %v1503 = vunpack.c.l.b16 %v840
    %v1504 = vunpack.c.h.b16 %v840
    %v1505 = vunpack.c.l.b16 %v841
    %v1506 = vunpack.c.h.b16 %v841
    %v1507 = vunpack.c.l.b16 %v842
    %v1508 = vunpack.c.h.b16 %v842
    %v1509 = vunpack.c.l.b16 %v843
    %v1510 = vunpack.c.h.b16 %v843
    %v1511 = vunpack.c.l.b16 %v844
    %v1512 = vunpack.c.h.b16 %v844
    %v1513 = vunpack.c.l.b16 %v845
    %v1514 = vunpack.c.h.b16 %v845
    %v1515 = vunpack.c.l.b16 %v846
    %v1516 = vunpack.c.h.b16 %v846
    %v1517 = vunpack.c.l.b16 %v847
    %v1518 = vunpack.c.h.b16 %v847
    %v1519 = vunpack.c.l.b16 %v848
    %v1520 = vunpack.c.h.b16 %v848
    %v1521 = vunpack.c.l.b16 %v849
    %v1522 = vunpack.c.h.b16 %v849
    %v1523 = vunpack.c.l.b16 %v850
    %v1524 = vunpack.c.h.b16 %v850
    %v1525 = vunpack.c.l.b16 %v851
    %v1526 = vunpack.c.h.b16 %v851
    %v1527 = vunpack.c.l.b16 %v852
    %v1528 = vunpack.c.h.b16 %v852
    %v1529 = vunpack.c.l.b16 %v853
    %v1530 = vunpack.c.h.b16 %v853
    %v1531 = vunpack.c.l.b16 %v854
    %v1532 = vunpack.c.h.b16 %v854
    %v1533 = vunpack.c.l.b16 %v855
    %v1534 = vunpack.c.h.b16 %v855
    %v1535 = vunpack.c.l.b16 %v856
    %v1536 = vunpack.c.h.b16 %v856
    %v1537 = vunpack.c.l.b16 %v857
    %v1538 = vunpack.c.h.b16 %v857
    %v1539 = vunpack.c.l.b16 %v858
    %v1540 = vunpack.c.h.b16 %v858
    %v1541 = vunpack.c.l.b16 %v859
    %v1542 = vunpack.c.h.b16 %v859
    %v1543 = vunpack.c.l.b16 %v860
    %v1544 = vunpack.c.h.b16 %v860
    %v1545 = vunpack.c.l.b16 %v861
    %v1546 = vunpack.c.h.b16 %v861
    %v1547 = vunpack.c.l.b16 %v862
    %v1548 = vunpack.c.h.b16 %v862
    %v1549 = vunpack.c.l.b16 %v863
    %v1550 = vunpack.c.h.b16 %v863
    %v1551 = vunpack.c.l.b16 %v864
    %v1552 = vunpack.c.h.b16 %v864
    %v1553 = vunpack.c.l.b16 %v865
    %v1554 = vunpack.c.h.b16 %v865
    %v1555 = vunpack.c.l.b16 %v866
    %v1556 = vunpack.c.h.b16 %v866
    %v1557 = vunpack.c.l.b16 %v867
    %v1558 = vunpack.c.h.b16 %v867
    %v1559 = vunpack.c.l.b16 %v868
    %v1560 = vunpack.c.h.b16 %v868
    %v1561 = vunpack.c.l.b16 %v869
    %v1562 = vunpack.c.h.b16 %v869
    %v1563 = vunpack.c.l.b16 %v870
    %v1564 = vunpack.c.h.b16 %v870
    %v1565 = vunpack.c.l.b16 %v871
    %v1566 = vunpack.c.h.b16 %v871
    %v1567 = vunpack.c.l.b16 %v872
    %v1568 = vunpack.c.h.b16 %v872
    %v1569 = vunpack.c.l.b16 %v873
    %v1570 = vunpack.c.h.b16 %v873
    %v1571 = vunpack.c.l.b16 %v874
    %v1572 = vunpack.c.h.b16 %v874
    %v1573 = vunpack.c.l.b16 %v875
    %v1574 = vunpack.c.h.b16 %v875
    %v1575 = vunpack.c.l.b16 %v876
    %v1576 = vunpack.c.h.b16 %v876
    %v1577 = vunpack.c.l.b16 %v877
    %v1578 = vunpack.c.h.b16 %v877
    %v1579 = vunpack.c.l.b16 %v878
    %v1580 = vunpack.c.h.b16 %v878
    %v1581 = vunpack.c.l.b16 %v879
    %v1582 = vunpack.c.h.b16 %v879
    %v1583 = vunpack.c.l.b16 %v880
    %v1584 = vunpack.c.h.b16 %v880
    %v1585 = vunpack.c.l.b16 %v881
    %v1586 = vunpack.c.h.b16 %v881
    %v1587 = vunpack.c.l.b16 %v882
    %v1588 = vunpack.c.h.b16 %v882
    %v1589 = vunpack.c.l.b16 %v883
    %v1590 = vunpack.c.h.b16 %v883
    %v1591 = vunpack.c.l.b16 %v884
    %v1592 = vunpack.c.h.b16 %v884
    %v1593 = vunpack.c.l.b16 %v885
    %v1594 = vunpack.c.h.b16 %v885
    %v1595 = vunpack.c.l.b16 %v886
    %v1596 = vunpack.c.h.b16 %v886
    %v1597 = vunpack.c.l.b16 %v887
    %v1598 = vunpack.c.h.b16 %v887
    %v1599 = vunpack.c.l.b16 %v888
    %v1600 = vunpack.c.h.b16 %v888
    %v1601 = vunpack.c.l.b16 %v889
    %v1602 = vunpack.c.h.b16 %v889
    %v1603 = vunpack.c.l.b16 %v890
    %v1604 = vunpack.c.h.b16 %v890
    %v1605 = vunpack.c.l.b16 %v891
    %v1606 = vunpack.c.h.b16 %v891
    %v1607 = vunpack.c.l.b16 %v892
    %v1608 = vunpack.c.h.b16 %v892
    %v1609 = vunpack.c.l.b16 %v893
    %v1610 = vunpack.c.h.b16 %v893
    %v1611 = vunpack.c.l.b16 %v894
    %v1612 = vunpack.c.h.b16 %v894
    %v1613 = vunpack.c.l.b16 %v895
    %v1614 = vunpack.c.h.b16 %v895
    %v1615 = vunpack.c.l.b16 %v896
    %v1616 = vunpack.c.h.b16 %v896
    %v1617 = vunpack.c.l.b16 %v897
    %v1618 = vunpack.c.h.b16 %v897
    %v1619 = vunpack.c.l.b16 %v898
    %v1620 = vunpack.c.h.b16 %v898
    %v1621 = vunpack.c.l.b16 %v899
    %v1622 = vunpack.c.h.b16 %v899
    %v1623 = vunpack.c.l.b16 %v900
    %v1624 = vunpack.c.h.b16 %v900
    %v1625 = vunpack.c.l.b16 %v901
    %v1626 = vunpack.c.h.b16 %v901
    %v1627 = vunpack.c.l.b16 %v902
    %v1628 = vunpack.c.h.b16 %v902
    %v1629 = vunpack.c.l.b16 %v903
    %v1630 = vunpack.c.h.b16 %v903
    %v1631 = vunpack.c.l.b16 %v904
    %v1632 = vunpack.c.h.b16 %v904
    %v1633 = vunpack.c.l.b16 %v905
    %v1634 = vunpack.c.h.b16 %v905
    %v1635 = vunpack.c.l.b16 %v906
    %v1636 = vunpack.c.h.b16 %v906
    %v1637 = vunpack.c.l.b16 %v907
    %v1638 = vunpack.c.h.b16 %v907
    %v1639 = vunpack.c.l.b16 %v908
    %v1640 = vunpack.c.h.b16 %v908
    %v1641 = vunpack.c.l.b16 %v909
    %v1642 = vunpack.c.h.b16 %v909
    %v1643 = vunpack.c.l.b16 %v910
    %v1644 = vunpack.c.h.b16 %v910
    %v1645 = vunpack.c.l.b16 %v911
    %v1646 = vunpack.c.h.b16 %v911
    %v1647 = vunpack.c.l.b16 %v912
    %v1648 = vunpack.c.h.b16 %v912
    %v1649 = vunpack.c.l.b16 %v913
    %v1650 = vunpack.c.h.b16 %v913
    %v1651 = vunpack.c.l.b16 %v914
    %v1652 = vunpack.c.h.b16 %v914
    %v1653 = vunpack.c.l.b16 %v915
    %v1654 = vunpack.c.h.b16 %v915
    %v1655 = vunpack.c.l.b16 %v916
    %v1656 = vunpack.c.h.b16 %v916
    %v1657 = vunpack.c.l.b16 %v917
    %v1658 = vunpack.c.h.b16 %v917
    %v1659 = vunpack.c.l.b16 %v918
    %v1660 = vunpack.c.h.b16 %v918
    %v1661 = vunpack.c.l.b16 %v919
    %v1662 = vunpack.c.h.b16 %v919
    %v1663 = vunpack.c.l.b16 %v920
    %v1664 = vunpack.c.h.b16 %v920
    %v1665 = vunpack.c.l.b16 %v921
    %v1666 = vunpack.c.h.b16 %v921
    %v1667 = vunpack.c.l.b16 %v922
    %v1668 = vunpack.c.h.b16 %v922
    %v1669 = vunpack.c.l.b16 %v923
    %v1670 = vunpack.c.h.b16 %v923
    %v1671 = vunpack.c.l.b16 %v924
    %v1672 = vunpack.c.h.b16 %v924
    %v1673 = vunpack.c.l.b16 %v925
    %v1674 = vunpack.c.h.b16 %v925
    %v1675 = vunpack.c.l.b16 %v926
    %v1676 = vunpack.c.h.b16 %v926
    %v1677 = vunpack.c.l.b16 %v927
    %v1678 = vunpack.c.h.b16 %v927
    %v1679 = vunpack.c.l.b16 %v928
    %v1680 = vunpack.c.h.b16 %v928
    %v1681 = vunpack.c.l.b16 %v929
    %v1682 = vunpack.c.h.b16 %v929
    %v1683 = vunpack.c.l.b16 %v930
    %v1684 = vunpack.c.h.b16 %v930
    %v1685 = vunpack.c.l.b16 %v931
    %v1686 = vunpack.c.h.b16 %v931
    %v1687 = vunpack.c.l.b16 %v932
    %v1688 = vunpack.c.h.b16 %v932
    %v1689 = vunpack.c.l.b16 %v933
    %v1690 = vunpack.c.h.b16 %v933
    %v1691 = vunpack.c.l.b16 %v934
    %v1692 = vunpack.c.h.b16 %v934
    %v1693 = vunpack.c.l.b16 %v935
    %v1694 = vunpack.c.h.b16 %v935
    %v1695 = vunpack.c.l.b16 %v936
    %v1696 = vunpack.c.h.b16 %v936
    %v1697 = vunpack.c.l.b16 %v937
    %v1698 = vunpack.c.h.b16 %v937
    %v1699 = vunpack.c.l.b16 %v938
    %v1700 = vunpack.c.h.b16 %v938
    %v1701 = vunpack.c.l.b16 %v939
    %v1702 = vunpack.c.h.b16 %v939
    %v1703 = vunpack.c.l.b16 %v940
    %v1704 = vunpack.c.h.b16 %v940
    %v1705 = vunpack.c.l.b16 %v941
    %v1706 = vunpack.c.h.b16 %v941
    %v1707 = vunpack.c.l.b16 %v942
    %v1708 = vunpack.c.h.b16 %v942
    %v1709 = vunpack.c.l.b16 %v943
    %v1710 = vunpack.c.h.b16 %v943
    %v1711 = vunpack.c.l.b16 %v944
    %v1712 = vunpack.c.h.b16 %v944
    %v1713 = vunpack.c.l.b16 %v945
    %v1714 = vunpack.c.h.b16 %v945
    %v1715 = vunpack.c.l.b16 %v946
    %v1716 = vunpack.c.h.b16 %v946
    %v1717 = vunpack.c.l.b16 %v947
    %v1718 = vunpack.c.h.b16 %v947
    %v1719 = vunpack.c.l.b16 %v948
    %v1720 = vunpack.c.h.b16 %v948
    %v1721 = vunpack.c.l.b16 %v949
    %v1722 = vunpack.c.h.b16 %v949
    %v1723 = vunpack.c.l.b16 %v950
    %v1724 = vunpack.c.h.b16 %v950
    %v1725 = vunpack.c.l.b16 %v951
    %v1726 = vunpack.c.h.b16 %v951
    %v1727 = vunpack.c.l.b16 %v952
    %v1728 = vunpack.c.h.b16 %v952
    %v1729 = vunpack.c.l.b16 %v953
    %v1730 = vunpack.c.h.b16 %v953
    %v1731 = vunpack.c.l.b16 %v954
    %v1732 = vunpack.c.h.b16 %v954
    %v1733 = vunpack.c.l.b16 %v955
    %v1734 = vunpack.c.h.b16 %v955
    %v1735 = vunpack.c.l.b16 %v956
    %v1736 = vunpack.c.h.b16 %v956
    %v1737 = vunpack.c.l.b16 %v957
    %v1738 = vunpack.c.h.b16 %v957
    %v1739 = vunpack.c.l.b16 %v958
    %v1740 = vunpack.c.h.b16 %v958
    %v1741 = vunpack.c.l.b16 %v959
    %v1742 = vunpack.c.h.b16 %v959
    %v1743 = vunpack.c.l.b16 %v960
    %v1744 = vunpack.c.h.b16 %v960
    %v1745 = vunpack.c.l.b16 %v961
    %v1746 = vunpack.c.h.b16 %v961
    %v1747 = vunpack.c.l.b16 %v962
    %v1748 = vunpack.c.h.b16 %v962
    %v1749 = vunpack.c.l.b16 %v963
    %v1750 = vunpack.c.h.b16 %v963
    %v1751 = vunpack.c.l.b16 %v964
    %v1752 = vunpack.c.h.b16 %v964
    %v1753 = vunpack.c.l.b16 %v965
    %v1754 = vunpack.c.h.b16 %v965
    %v1755 = vunpack.c.l.b16 %v966
    %v1756 = vunpack.c.h.b16 %v966
    %v1757 = vpack.c.b16 %v1249, %v1245
    %v1758 = vpack.c.b16 %v1250, %v1246
    %v1759 = vpack.c.b16 %v1251, %v1247
    %v1760 = vpack.c.b16 %v1252, %v1248
    %v1761 = vpack.c.b16 %v1257, %v1253
    %v1762 = vpack.c.b16 %v1258, %v1254
    %v1763 = vpack.c.b16 %v1259, %v1255
    %v1764 = vpack.c.b16 %v1260, %v1256
    %v1765 = vpack.c.b16 %v1265, %v1261
    %v1766 = vpack.c.b16 %v1266, %v1262
    %v1767 = vpack.c.b16 %v1267, %v1263
    %v1768 = vpack.c.b16 %v1268, %v1264
    %v1769 = vpack.c.b16 %v1273, %v1269
    %v1770 = vpack.c.b16 %v1274, %v1270
    %v1771 = vpack.c.b16 %v1275, %v1271
    %v1772 = vpack.c.b16 %v1276, %v1272
    %v1773 = vpack.c.b16 %v1281, %v1277
    %v1774 = vpack.c.b16 %v1282, %v1278
    %v1775 = vpack.c.b16 %v1283, %v1279
    %v1776 = vpack.c.b16 %v1284, %v1280
    %v1777 = vpack.c.b16 %v1289, %v1285
    %v1778 = vpack.c.b16 %v1290, %v1286
    %v1779 = vpack.c.b16 %v1291, %v1287
    %v1780 = vpack.c.b16 %v1292, %v1288
    %v1781 = vpack.c.b16 %v1297, %v1293
    %v1782 = vpack.c.b16 %v1298, %v1294
    %v1783 = vpack.c.b16 %v1299, %v1295
    %v1784 = vpack.c.b16 %v1300, %v1296
    %v1785 = vpack.c.b16 %v1305, %v1301
    %v1786 = vpack.c.b16 %v1306, %v1302
    %v1787 = vpack.c.b16 %v1307, %v1303
    %v1788 = vpack.c.b16 %v1308, %v1304
    %v1789 = vpack.c.b16 %v1313, %v1309
    %v1790 = vpack.c.b16 %v1314, %v1310
    %v1791 = vpack.c.b16 %v1315, %v1311
    %v1792 = vpack.c.b16 %v1316, %v1312
    %v1793 = vpack.c.b16 %v1321, %v1317
    %v1794 = vpack.c.b16 %v1322, %v1318
    %v1795 = vpack.c.b16 %v1323, %v1319
    %v1796 = vpack.c.b16 %v1324, %v1320
    %v1797 = vpack.c.b16 %v1329, %v1325
    %v1798 = vpack.c.b16 %v1330, %v1326
    %v1799 = vpack.c.b16 %v1331, %v1327
    %v1800 = vpack.c.b16 %v1332, %v1328
    %v1801 = vpack.c.b16 %v1337, %v1333
    %v1802 = vpack.c.b16 %v1338, %v1334
    %v1803 = vpack.c.b16 %v1339, %v1335
    %v1804 = vpack.c.b16 %v1340, %v1336
    %v1805 = vpack.c.b16 %v1345, %v1341
    %v1806 = vpack.c.b16 %v1346, %v1342
    %v1807 = vpack.c.b16 %v1347, %v1343
    %v1808 = vpack.c.b16 %v1348, %v1344
    %v1809 = vpack.c.b16 %v1353, %v1349
    %v1810 = vpack.c.b16 %v1354, %v1350
    %v1811 = vpack.c.b16 %v1355, %v1351
    %v1812 = vpack.c.b16 %v1356, %v1352
    %v1813 = vpack.c.b16 %v1361, %v1357
    %v1814 = vpack.c.b16 %v1362, %v1358
    %v1815 = vpack.c.b16 %v1363, %v1359
    %v1816 = vpack.c.b16 %v1364, %v1360
    %v1817 = vpack.c.b16 %v1369, %v1365
    %v1818 = vpack.c.b16 %v1370, %v1366
    %v1819 = vpack.c.b16 %v1371, %v1367
    %v1820 = vpack.c.b16 %v1372, %v1368
    %v1821 = vpack.c.b16 %v1377, %v1373
    %v1822 = vpack.c.b16 %v1378, %v1374
    %v1823 = vpack.c.b16 %v1379, %v1375
    %v1824 = vpack.c.b16 %v1380, %v1376
    %v1825 = vpack.c.b16 %v1385, %v1381
    %v1826 = vpack.c.b16 %v1386, %v1382
    %v1827 = vpack.c.b16 %v1387, %v1383
    %v1828 = vpack.c.b16 %v1388, %v1384
    %v1829 = vpack.c.b16 %v1393, %v1389
    %v1830 = vpack.c.b16 %v1394, %v1390
    %v1831 = vpack.c.b16 %v1395, %v1391
    %v1832 = vpack.c.b16 %v1396, %v1392
    %v1833 = vpack.c.b16 %v1401, %v1397
    %v1834 = vpack.c.b16 %v1402, %v1398
    %v1835 = vpack.c.b16 %v1403, %v1399
    %v1836 = vpack.c.b16 %v1404, %v1400
    %v1837 = vpack.c.b16 %v1409, %v1405
    %v1838 = vpack.c.b16 %v1410, %v1406
    %v1839 = vpack.c.b16 %v1411, %v1407
    %v1840 = vpack.c.b16 %v1412, %v1408
    %v1841 = vpack.c.b16 %v1417, %v1413
    %v1842 = vpack.c.b16 %v1418, %v1414
    %v1843 = vpack.c.b16 %v1419, %v1415
    %v1844 = vpack.c.b16 %v1420, %v1416
    %v1845 = vpack.c.b16 %v1425, %v1421
    %v1846 = vpack.c.b16 %v1426, %v1422
    %v1847 = vpack.c.b16 %v1427, %v1423
    %v1848 = vpack.c.b16 %v1428, %v1424
    %v1849 = vpack.c.b16 %v1433, %v1429
    %v1850 = vpack.c.b16 %v1434, %v1430
    %v1851 = vpack.c.b16 %v1435, %v1431
    %v1852 = vpack.c.b16 %v1436, %v1432
    %v1853 = vpack.c.b16 %v1441, %v1437
    %v1854 = vpack.c.b16 %v1442, %v1438
    %v1855 = vpack.c.b16 %v1443, %v1439
    %v1856 = vpack.c.b16 %v1444, %v1440
    %v1857 = vpack.c.b16 %v1449, %v1445
    %v1858 = vpack.c.b16 %v1450, %v1446
    %v1859 = vpack.c.b16 %v1451, %v1447
    %v1860 = vpack.c.b16 %v1452, %v1448
    %v1861 = vpack.c.b16 %v1457, %v1453
    %v1862 = vpack.c.b16 %v1458, %v1454
    %v1863 = vpack.c.b16 %v1459, %v1455
    %v1864 = vpack.c.b16 %v1460, %v1456
    %v1865 = vpack.c.b16 %v1465, %v1461
    %v1866 = vpack.c.b16 %v1466, %v1462
    %v1867 = vpack.c.b16 %v1467, %v1463
    %v1868 = vpack.c.b16 %v1468, %v1464
    %v1869 = vpack.c.b16 %v1473, %v1469
    %v1870 = vpack.c.b16 %v1474, %v1470
    %v1871 = vpack.c.b16 %v1475, %v1471
    %v1872 = vpack.c.b16 %v1476, %v1472
    %v1873 = vpack.c.b16 %v1481, %v1477
    %v1874 = vpack.c.b16 %v1482, %v1478
    %v1875 = vpack.c.b16 %v1483, %v1479
    %v1876 = vpack.c.b16 %v1484, %v1480
    %v1877 = vpack.c.b16 %v1489, %v1485
    %v1878 = vpack.c.b16 %v1490, %v1486
    %v1879 = vpack.c.b16 %v1491, %v1487
    %v1880 = vpack.c.b16 %v1492, %v1488
    %v1881 = vpack.c.b16 %v1497, %v1493
    %v1882 = vpack.c.b16 %v1498, %v1494
    %v1883 = vpack.c.b16 %v1499, %v1495
    %v1884 = vpack.c.b16 %v1500, %v1496
    %v1885 = vpack.c.b16 %v1505, %v1501
    %v1886 = vpack.c.b16 %v1506, %v1502
    %v1887 = vpack.c.b16 %v1507, %v1503
    %v1888 = vpack.c.b16 %v1508, %v1504
    %v1889 = vpack.c.b16 %v1513, %v1509
    %v1890 = vpack.c.b16 %v1514, %v1510
    %v1891 = vpack.c.b16 %v1515, %v1511
    %v1892 = vpack.c.b16 %v1516, %v1512
    %v1893 = vpack.c.b16 %v1521, %v1517
    %v1894 = vpack.c.b16 %v1522, %v1518
    %v1895 = vpack.c.b16 %v1523, %v1519
    %v1896 = vpack.c.b16 %v1524, %v1520
    %v1897 = vpack.c.b16 %v1529, %v1525
    %v1898 = vpack.c.b16 %v1530, %v1526
    %v1899 = vpack.c.b16 %v1531, %v1527
    %v1900 = vpack.c.b16 %v1532, %v1528
    %v1901 = vpack.c.b16 %v1537, %v1533
    %v1902 = vpack.c.b16 %v1538, %v1534
    %v1903 = vpack.c.b16 %v1539, %v1535
    %v1904 = vpack.c.b16 %v1540, %v1536
    %v1905 = vpack.c.b16 %v1545, %v1541
    %v1906 = vpack.c.b16 %v1546, %v1542
    %v1907 = vpack.c.b16 %v1547, %v1543
    %v1908 = vpack.c.b16 %v1548, %v1544
    %v1909 = vpack.c.b16 %v1553, %v1549
    %v1910 = vpack.c.b16 %v1554, %v1550
    %v1911 = vpack.c.b16 %v1555, %v1551
    %v1912 = vpack.c.b16 %v1556, %v1552
    %v1913 = vpack.c.b16 %v1561, %v1557
    %v1914 = vpack.c.b16 %v1562, %v1558
    %v1915 = vpack.c.b16 %v1563, %v1559
    %v1916 = vpack.c.b16 %v1564, %v1560
    %v1917 = vpack.c.b16 %v1569, %v1565
    %v1918 = vpack.c.b16 %v1570, %v1566
    %v1919 = vpack.c.b16 %v1571, %v1567
    %v1920 = vpack.c.b16 %v1572, %v1568
    %v1921 = vpack.c.b16 %v1577, %v1573
    %v1922 = vpack.c.b16 %v1578, %v1574
    %v1923 = vpack.c.b16 %v1579, %v1575
    %v1924 = vpack.c.b16 %v1580, %v1576
    %v1925 = vpack.c.b16 %v1585, %v1581
    %v1926 = vpack.c.b16 %v1586, %v1582
    %v1927 = vpack.c.b16 %v1587, %v1583
    %v1928 = vpack.c.b16 %v1588, %v1584
    %v1929 = vpack.c.b16 %v1593, %v1589
    %v1930 = vpack.c.b16 %v1594, %v1590
    %v1931 = vpack.c.b16 %v1595, %v1591
    %v1932 = vpack.c.b16 %v1596, %v1592
    %v1933 = vpack.c.b16 %v1601, %v1597
    %v1934 = vpack.c.b16 %v1602, %v1598
    %v1935 = vpack.c.b16 %v1603, %v1599
    %v1936 = vpack.c.b16 %v1604, %v1600
    %v1937 = vpack.c.b16 %v1609, %v1605
    %v1938 = vpack.c.b16 %v1610, %v1606
    %v1939 = vpack.c.b16 %v1611, %v1607
    %v1940 = vpack.c.b16 %v1612, %v1608
    %v1941 = vpack.c.b16 %v1617, %v1613
    %v1942 = vpack.c.b16 %v1618, %v1614
    %v1943 = vpack.c.b16 %v1619, %v1615
    %v1944 = vpack.c.b16 %v1620, %v1616
    %v1945 = vpack.c.b16 %v1625, %v1621
    %v1946 = vpack.c.b16 %v1626, %v1622
    %v1947 = vpack.c.b16 %v1627, %v1623
    %v1948 = vpack.c.b16 %v1628, %v1624
    %v1949 = vpack.c.b16 %v1633, %v1629
    %v1950 = vpack.c.b16 %v1634, %v1630
    %v1951 = vpack.c.b16 %v1635, %v1631
    %v1952 = vpack.c.b16 %v1636, %v1632
    %v1953 = vpack.c.b16 %v1641, %v1637
    %v1954 = vpack.c.b16 %v1642, %v1638
    %v1955 = vpack.c.b16 %v1643, %v1639
    %v1956 = vpack.c.b16 %v1644, %v1640
    %v1957 = vpack.c.b16 %v1649, %v1645
    %v1958 = vpack.c.b16 %v1650, %v1646
    %v1959 = vpack.c.b16 %v1651, %v1647
    %v1960 = vpack.c.b16 %v1652, %v1648
    %v1961 = vpack.c.b16 %v1657, %v1653
    %v1962 = vpack.c.b16 %v1658, %v1654
    %v1963 = vpack.c.b16 %v1659, %v1655
    %v1964 = vpack.c.b16 %v1660, %v1656
    %v1965 = vpack.c.b16 %v1665, %v1661
    %v1966 = vpack.c.b16 %v1666, %v1662
    %v1967 = vpack.c.b16 %v1667, %v1663
    %v1968 = vpack.c.b16 %v1668, %v1664
    %v1969 = vpack.c.b16 %v1673, %v1669
    %v1970 = vpack.c.b16 %v1674, %v1670
    %v1971 = vpack.c.b16 %v1675, %v1671
    %v1972 = vpack.c.b16 %v1676, %v1672
    %v1973 = vpack.c.b16 %v1681, %v1677
    %v1974 = vpack.c.b16 %v1682, %v1678
    %v1975 = vpack.c.b16 %v1683, %v1679
    %v1976 = vpack.c.b16 %v1684, %v1680
    %v1977 = vpack.c.b16 %v1689, %v1685
    %v1978 = vpack.c.b16 %v1690, %v1686
    %v1979 = vpack.c.b16 %v1691, %v1687
    %v1980 = vpack.c.b16 %v1692, %v1688
    %v1981 = vpack.c.b16 %v1697, %v1693
    %v1982 = vpack.c.b16 %v1698, %v1694
    %v1983 = vpack.c.b16 %v1699, %v1695
    %v1984 = vpack.c.b16 %v1700, %v1696
    %v1985 = vpack.c.b16 %v1705, %v1701
    %v1986 = vpack.c.b16 %v1706, %v1702
    %v1987 = vpack.c.b16 %v1707, %v1703
    %v1988 = vpack.c.b16 %v1708, %v1704
    %v1989 = vpack.c.b16 %v1713, %v1709
    %v1990 = vpack.c.b16 %v1714, %v1710
    %v1991 = vpack.c.b16 %v1715, %v1711
    %v1992 = vpack.c.b16 %v1716, %v1712
    %v1993 = vpack.c.b16 %v1721, %v1717
    %v1994 = vpack.c.b16 %v1722, %v1718
    %v1995 = vpack.c.b16 %v1723, %v1719
    %v1996 = vpack.c.b16 %v1724, %v1720
    %v1997 = vpack.c.b16 %v1729, %v1725
    %v1998 = vpack.c.b16 %v1730, %v1726
    %v1999 = vpack.c.b16 %v1731, %v1727
    %v2000 = vpack.c.b16 %v1732, %v1728
    %v2001 = vpack.c.b16 %v1737, %v1733
    %v2002 = vpack.c.b16 %v1738, %v1734
    %v2003 = vpack.c.b16 %v1739, %v1735
    %v2004 = vpack.c.b16 %v1740, %v1736
    %v2005 = vpack.c.b16 %v1745, %v1741
    %v2006 = vpack.c.b16 %v1746, %v1742
    %v2007 = vpack.c.b16 %v1747, %v1743
    %v2008 = vpack.c.b16 %v1748, %v1744
    %v2009 = vpack.c.b16 %v1753, %v1749
    %v2010 = vpack.c.b16 %v1754, %v1750
    %v2011 = vpack.c.b16 %v1755, %v1751
    %v2012 = vpack.c.b16 %v1756, %v1752
    %2269 = vmatprep.subr.bf16.mxu0 %v1758
    %2270 = vmatpush1.bf16.msra.mxu0 %v1757
    %2271 = vmatprep.subr.bf16.mxu0 %v1762
    %2272 = vmatpush1.bf16.msra.mxu0 %v1761
    %2273 = vmatprep.subr.bf16.mxu0 %v1766
    %2274 = vmatpush1.bf16.msra.mxu0 %v1765
    %2275 = vmatprep.subr.bf16.mxu0 %v1770
    %2276 = vmatpush1.bf16.msra.mxu0 %v1769
    %2277 = vmatprep.subr.bf16.mxu0 %v1774
    %2278 = vmatpush1.bf16.msra.mxu0 %v1773
    %2279 = vmatprep.subr.bf16.mxu0 %v1778
    %2280 = vmatpush1.bf16.msra.mxu0 %v1777
    %2281 = vmatprep.subr.bf16.mxu0 %v1782
    %2282 = vmatpush1.bf16.msra.mxu0 %v1781
    %2283 = vmatprep.subr.bf16.mxu0 %v1786
    %2284 = vmatpush1.bf16.msra.mxu0 %v1785
    %2285 = vmatprep.subr.bf16.mxu0 %v1790
    %2286 = vmatpush1.bf16.msra.mxu0 %v1789
    %2287 = vmatprep.subr.bf16.mxu0 %v1794
    %2288 = vmatpush1.bf16.msra.mxu0 %v1793
    %2289 = vmatprep.subr.bf16.mxu0 %v1798
    %2290 = vmatpush1.bf16.msra.mxu0 %v1797
    %2291 = vmatprep.subr.bf16.mxu0 %v1802
    %2292 = vmatpush1.bf16.msra.mxu0 %v1801
    %2293 = vmatprep.subr.bf16.mxu0 %v1806
    %2294 = vmatpush1.bf16.msra.mxu0 %v1805
    %2295 = vmatprep.subr.bf16.mxu0 %v1810
    %2296 = vmatpush1.bf16.msra.mxu0 %v1809
    %2297 = vmatprep.subr.bf16.mxu0 %v1814
    %2298 = vmatpush1.bf16.msra.mxu0 %v1813
    %2299 = vmatprep.subr.bf16.mxu0 %v1818
    %2300 = vmatpush1.bf16.msra.mxu0 %v1817
    %2301 = vmatprep.mubr.bf16.mxu0 %v704
    %2302 = vmatmul.mubr.bf16.gmra.mrb[0].mxu0 %v703
    %v2303 = vpop.f32.mrb[0].mxu0
    %v2304 = vadd.f32 %v972, %v2303
    %v2305 = vpop.f32.mrb[0].mxu0
    %v2306 = vadd.f32 %v976, %v2305
    %v2307 = vpop.f32.mrb[0].mxu0
    %v2308 = vpop.f32.mrb[0].mxu0
    %2309 = vdwg.mxu0
    %2310 = vmatprep.subr.bf16.mxu0 %v1822
    %2311 = vmatpush1.bf16.msra.mxu0 %v1821
    %2312 = vmatprep.subr.bf16.mxu0 %v1826
    %2313 = vmatpush1.bf16.msra.mxu0 %v1825
    %2314 = vmatprep.subr.bf16.mxu0 %v1830
    %2315 = vmatpush1.bf16.msra.mxu0 %v1829
    %2316 = vmatprep.subr.bf16.mxu0 %v1834
    %2317 = vmatpush1.bf16.msra.mxu0 %v1833
    %2318 = vmatprep.subr.bf16.mxu0 %v1838
    %2319 = vmatpush1.bf16.msra.mxu0 %v1837
    %2320 = vmatprep.subr.bf16.mxu0 %v1842
    %2321 = vmatpush1.bf16.msra.mxu0 %v1841
    %2322 = vmatprep.subr.bf16.mxu0 %v1846
    %2323 = vmatpush1.bf16.msra.mxu0 %v1845
    %2324 = vmatprep.subr.bf16.mxu0 %v1850
    %2325 = vmatpush1.bf16.msra.mxu0 %v1849
    %2326 = vmatprep.subr.bf16.mxu0 %v1854
    %2327 = vmatpush1.bf16.msra.mxu0 %v1853
    %2328 = vmatprep.subr.bf16.mxu0 %v1858
    %2329 = vmatpush1.bf16.msra.mxu0 %v1857
    %2330 = vmatprep.subr.bf16.mxu0 %v1862
    %2331 = vmatpush1.bf16.msra.mxu0 %v1861
    %2332 = vmatprep.subr.bf16.mxu0 %v1866
    %2333 = vmatpush1.bf16.msra.mxu0 %v1865
    %2334 = vmatprep.subr.bf16.mxu0 %v1870
    %2335 = vmatpush1.bf16.msra.mxu0 %v1869
    %2336 = vmatprep.subr.bf16.mxu0 %v1874
    %2337 = vmatpush1.bf16.msra.mxu0 %v1873
    %2338 = vmatprep.subr.bf16.mxu0 %v1878
    %2339 = vmatpush1.bf16.msra.mxu0 %v1877
    %2340 = vmatprep.subr.bf16.mxu0 %v1882
    %2341 = vmatpush1.bf16.msra.mxu0 %v1881
    %2342 = vmatprep.mubr.bf16.mxu0 %v706
    %2343 = vmatmul.mubr.bf16.gmra.mrb[0].mxu0 %v705
    %v2344 = vpop.f32.mrb[0].mxu0
    %v2345 = vadd.f32 %v2304, %v2344
    %v2346 = vpop.f32.mrb[0].mxu0
    %v2347 = vadd.f32 %v2306, %v2346
    %v2348 = vpop.f32.mrb[0].mxu0
    %v2349 = vpop.f32.mrb[0].mxu0
    %2350 = vdwg.mxu0
    %2351 = vmatprep.subr.bf16.mxu0 %v1886
    %2352 = vmatpush1.bf16.msra.mxu0 %v1885
    %2353 = vmatprep.subr.bf16.mxu0 %v1890
    %2354 = vmatpush1.bf16.msra.mxu0 %v1889
    %2355 = vmatprep.subr.bf16.mxu0 %v1894
    %2356 = vmatpush1.bf16.msra.mxu0 %v1893
    %2357 = vmatprep.subr.bf16.mxu0 %v1898
    %2358 = vmatpush1.bf16.msra.mxu0 %v1897
    %2359 = vmatprep.subr.bf16.mxu0 %v1902
    %2360 = vmatpush1.bf16.msra.mxu0 %v1901
    %2361 = vmatprep.subr.bf16.mxu0 %v1906
    %2362 = vmatpush1.bf16.msra.mxu0 %v1905
    %2363 = vmatprep.subr.bf16.mxu0 %v1910
    %2364 = vmatpush1.bf16.msra.mxu0 %v1909
    %2365 = vmatprep.subr.bf16.mxu0 %v1914
    %2366 = vmatpush1.bf16.msra.mxu0 %v1913
    %2367 = vmatprep.subr.bf16.mxu0 %v1918
    %2368 = vmatpush1.bf16.msra.mxu0 %v1917
    %2369 = vmatprep.subr.bf16.mxu0 %v1922
    %2370 = vmatpush1.bf16.msra.mxu0 %v1921
    %2371 = vmatprep.subr.bf16.mxu0 %v1926
    %2372 = vmatpush1.bf16.msra.mxu0 %v1925
    %2373 = vmatprep.subr.bf16.mxu0 %v1930
    %2374 = vmatpush1.bf16.msra.mxu0 %v1929
    %2375 = vmatprep.subr.bf16.mxu0 %v1934
    %2376 = vmatpush1.bf16.msra.mxu0 %v1933
    %2377 = vmatprep.subr.bf16.mxu0 %v1938
    %2378 = vmatpush1.bf16.msra.mxu0 %v1937
    %2379 = vmatprep.subr.bf16.mxu0 %v1942
    %2380 = vmatpush1.bf16.msra.mxu0 %v1941
    %2381 = vmatprep.subr.bf16.mxu0 %v1946
    %2382 = vmatpush1.bf16.msra.mxu0 %v1945
    %2383 = vmatprep.mubr.bf16.mxu0 %v708
    %2384 = vmatmul.mubr.bf16.gmra.mrb[0].mxu0 %v707
    %v2385 = vpop.f32.mrb[0].mxu0
    %v2386 = vadd.f32 %v2345, %v2385
    %v2387 = vpop.f32.mrb[0].mxu0
    %v2388 = vadd.f32 %v2347, %v2387
    %v2389 = vpop.f32.mrb[0].mxu0
    %v2390 = vpop.f32.mrb[0].mxu0
    %2391 = vdwg.mxu0
    %2392 = vmatprep.subr.bf16.mxu0 %v1950
    %2393 = vmatpush1.bf16.msra.mxu0 %v1949
    %2394 = vmatprep.subr.bf16.mxu0 %v1954
    %2395 = vmatpush1.bf16.msra.mxu0 %v1953
    %2396 = vmatprep.subr.bf16.mxu0 %v1958
    %2397 = vmatpush1.bf16.msra.mxu0 %v1957
    %2398 = vmatprep.subr.bf16.mxu0 %v1962
    %2399 = vmatpush1.bf16.msra.mxu0 %v1961
    %2400 = vmatprep.subr.bf16.mxu0 %v1966
    %2401 = vmatpush1.bf16.msra.mxu0 %v1965
    %2402 = vmatprep.subr.bf16.mxu0 %v1970
    %2403 = vmatpush1.bf16.msra.mxu0 %v1969
    %2404 = vmatprep.subr.bf16.mxu0 %v1974
    %2405 = vmatpush1.bf16.msra.mxu0 %v1973
    %2406 = vmatprep.subr.bf16.mxu0 %v1978
    %2407 = vmatpush1.bf16.msra.mxu0 %v1977
    %2408 = vmatprep.subr.bf16.mxu0 %v1982
    %2409 = vmatpush1.bf16.msra.mxu0 %v1981
    %2410 = vmatprep.subr.bf16.mxu0 %v1986
    %2411 = vmatpush1.bf16.msra.mxu0 %v1985
    %2412 = vmatprep.subr.bf16.mxu0 %v1990
    %2413 = vmatpush1.bf16.msra.mxu0 %v1989
    %2414 = vmatprep.subr.bf16.mxu0 %v1994
    %2415 = vmatpush1.bf16.msra.mxu0 %v1993
    %2416 = vmatprep.subr.bf16.mxu0 %v1998
    %2417 = vmatpush1.bf16.msra.mxu0 %v1997
    %2418 = vmatprep.subr.bf16.mxu0 %v2002
    %2419 = vmatpush1.bf16.msra.mxu0 %v2001
    %2420 = vmatprep.subr.bf16.mxu0 %v2006
    %2421 = vmatpush1.bf16.msra.mxu0 %v2005
    %2422 = vmatprep.subr.bf16.mxu0 %v2010
    %2423 = vmatpush1.bf16.msra.mxu0 %v2009
    %2424 = vmatprep.mubr.bf16.mxu0 %v710
    %2425 = vmatmul.mubr.bf16.gmra.mrb[0].mxu0 %v709
    %v2426 = vpop.f32.mrb[0].mxu0
    %v2427 = vadd.f32 %v2386, %v2426
    %v2428 = vpop.f32.mrb[0].mxu0
    %v2429 = vadd.f32 %v2388, %v2428
    %v2430 = vpop.f32.mrb[0].mxu0
    %v2431 = vpop.f32.mrb[0].mxu0
    %2432 = vdwg.mxu0
    %2433 = vmatprep.subr.bf16.mxu0 %v1760
    %2434 = vmatpush1.bf16.msra.mxu0 %v1759
    %2435 = vmatprep.subr.bf16.mxu0 %v1764
    %2436 = vmatpush1.bf16.msra.mxu0 %v1763
    %2437 = vmatprep.subr.bf16.mxu0 %v1768
    %2438 = vmatpush1.bf16.msra.mxu0 %v1767
    %2439 = vmatprep.subr.bf16.mxu0 %v1772
    %2440 = vmatpush1.bf16.msra.mxu0 %v1771
    %2441 = vmatprep.subr.bf16.mxu0 %v1776
    %2442 = vmatpush1.bf16.msra.mxu0 %v1775
    %2443 = vmatprep.subr.bf16.mxu0 %v1780
    %2444 = vmatpush1.bf16.msra.mxu0 %v1779
    %2445 = vmatprep.subr.bf16.mxu0 %v1784
    %2446 = vmatpush1.bf16.msra.mxu0 %v1783
    %2447 = vmatprep.subr.bf16.mxu0 %v1788
    %2448 = vmatpush1.bf16.msra.mxu0 %v1787
    %2449 = vmatprep.subr.bf16.mxu0 %v1792
    %2450 = vmatpush1.bf16.msra.mxu0 %v1791
    %2451 = vmatprep.subr.bf16.mxu0 %v1796
    %2452 = vmatpush1.bf16.msra.mxu0 %v1795
    %2453 = vmatprep.subr.bf16.mxu0 %v1800
    %2454 = vmatpush1.bf16.msra.mxu0 %v1799
    %2455 = vmatprep.subr.bf16.mxu0 %v1804
    %2456 = vmatpush1.bf16.msra.mxu0 %v1803
    %2457 = vmatprep.subr.bf16.mxu0 %v1808
    %2458 = vmatpush1.bf16.msra.mxu0 %v1807
    %2459 = vmatprep.subr.bf16.mxu0 %v1812
    %2460 = vmatpush1.bf16.msra.mxu0 %v1811
    %2461 = vmatprep.subr.bf16.mxu0 %v1816
    %2462 = vmatpush1.bf16.msra.mxu0 %v1815
    %2463 = vmatprep.subr.bf16.mxu0 %v1820
    %2464 = vmatpush1.bf16.msra.mxu0 %v1819
    %2465 = vmatprep.mubr.bf16.mxu0 %v704
    %2466 = vmatmul.mubr.bf16.gmra.mrb[0].mxu0 %v703
    %v2467 = vpop.f32.mrb[0].mxu0
    %v2468 = vadd.f32 %v980, %v2467
    %v2469 = vpop.f32.mrb[0].mxu0
    %v2470 = vadd.f32 %v984, %v2469
    %v2471 = vpop.f32.mrb[0].mxu0
    %v2472 = vpop.f32.mrb[0].mxu0
    %2473 = vdwg.mxu0
    %2474 = vmatprep.subr.bf16.mxu0 %v1824
    %2475 = vmatpush1.bf16.msra.mxu0 %v1823
    %2476 = vmatprep.subr.bf16.mxu0 %v1828
    %2477 = vmatpush1.bf16.msra.mxu0 %v1827
    %2478 = vmatprep.subr.bf16.mxu0 %v1832
    %2479 = vmatpush1.bf16.msra.mxu0 %v1831
    %2480 = vmatprep.subr.bf16.mxu0 %v1836
    %2481 = vmatpush1.bf16.msra.mxu0 %v1835
    %2482 = vmatprep.subr.bf16.mxu0 %v1840
    %2483 = vmatpush1.bf16.msra.mxu0 %v1839
    %2484 = vmatprep.subr.bf16.mxu0 %v1844
    %2485 = vmatpush1.bf16.msra.mxu0 %v1843
    %2486 = vmatprep.subr.bf16.mxu0 %v1848
    %2487 = vmatpush1.bf16.msra.mxu0 %v1847
    %2488 = vmatprep.subr.bf16.mxu0 %v1852
    %2489 = vmatpush1.bf16.msra.mxu0 %v1851
    %2490 = vmatprep.subr.bf16.mxu0 %v1856
    %2491 = vmatpush1.bf16.msra.mxu0 %v1855
    %2492 = vmatprep.subr.bf16.mxu0 %v1860
    %2493 = vmatpush1.bf16.msra.mxu0 %v1859
    %2494 = vmatprep.subr.bf16.mxu0 %v1864
    %2495 = vmatpush1.bf16.msra.mxu0 %v1863
    %2496 = vmatprep.subr.bf16.mxu0 %v1868
    %2497 = vmatpush1.bf16.msra.mxu0 %v1867
    %2498 = vmatprep.subr.bf16.mxu0 %v1872
    %2499 = vmatpush1.bf16.msra.mxu0 %v1871
    %2500 = vmatprep.subr.bf16.mxu0 %v1876
    %2501 = vmatpush1.bf16.msra.mxu0 %v1875
    %2502 = vmatprep.subr.bf16.mxu0 %v1880
    %2503 = vmatpush1.bf16.msra.mxu0 %v1879
    %2504 = vmatprep.subr.bf16.mxu0 %v1884
    %2505 = vmatpush1.bf16.msra.mxu0 %v1883
    %2506 = vmatprep.mubr.bf16.mxu0 %v706
    %2507 = vmatmul.mubr.bf16.gmra.mrb[0].mxu0 %v705
    %v2508 = vpop.f32.mrb[0].mxu0
    %v2509 = vadd.f32 %v2468, %v2508
    %v2510 = vpop.f32.mrb[0].mxu0
    %v2511 = vadd.f32 %v2470, %v2510
    %v2512 = vpop.f32.mrb[0].mxu0
    %v2513 = vpop.f32.mrb[0].mxu0
    %2514 = vdwg.mxu0
    %2515 = vmatprep.subr.bf16.mxu0 %v1888
    %2516 = vmatpush1.bf16.msra.mxu0 %v1887
    %2517 = vmatprep.subr.bf16.mxu0 %v1892
    %2518 = vmatpush1.bf16.msra.mxu0 %v1891
    %2519 = vmatprep.subr.bf16.mxu0 %v1896
    %2520 = vmatpush1.bf16.msra.mxu0 %v1895
    %2521 = vmatprep.subr.bf16.mxu0 %v1900
    %2522 = vmatpush1.bf16.msra.mxu0 %v1899
    %2523 = vmatprep.subr.bf16.mxu0 %v1904
    %2524 = vmatpush1.bf16.msra.mxu0 %v1903
    %2525 = vmatprep.subr.bf16.mxu0 %v1908
    %2526 = vmatpush1.bf16.msra.mxu0 %v1907
    %2527 = vmatprep.subr.bf16.mxu0 %v1912
    %2528 = vmatpush1.bf16.msra.mxu0 %v1911
    %2529 = vmatprep.subr.bf16.mxu0 %v1916
    %2530 = vmatpush1.bf16.msra.mxu0 %v1915
    %2531 = vmatprep.subr.bf16.mxu0 %v1920
    %2532 = vmatpush1.bf16.msra.mxu0 %v1919
    %2533 = vmatprep.subr.bf16.mxu0 %v1924
    %2534 = vmatpush1.bf16.msra.mxu0 %v1923
    %2535 = vmatprep.subr.bf16.mxu0 %v1928
    %2536 = vmatpush1.bf16.msra.mxu0 %v1927
    %2537 = vmatprep.subr.bf16.mxu0 %v1932
    %2538 = vmatpush1.bf16.msra.mxu0 %v1931
    %2539 = vmatprep.subr.bf16.mxu0 %v1936
    %2540 = vmatpush1.bf16.msra.mxu0 %v1935
    %2541 = vmatprep.subr.bf16.mxu0 %v1940
    %2542 = vmatpush1.bf16.msra.mxu0 %v1939
    %2543 = vmatprep.subr.bf16.mxu0 %v1944
    %2544 = vmatpush1.bf16.msra.mxu0 %v1943
    %2545 = vmatprep.subr.bf16.mxu0 %v1948
    %2546 = vmatpush1.bf16.msra.mxu0 %v1947
    %2547 = vmatprep.mubr.bf16.mxu0 %v708
    %2548 = vmatmul.mubr.bf16.gmra.mrb[0].mxu0 %v707
    %v2549 = vpop.f32.mrb[0].mxu0
    %v2550 = vadd.f32 %v2509, %v2549
    %v2551 = vpop.f32.mrb[0].mxu0
    %v2552 = vadd.f32 %v2511, %v2551
    %v2553 = vpop.f32.mrb[0].mxu0
    %v2554 = vpop.f32.mrb[0].mxu0
    %2555 = vdwg.mxu0
    %2556 = vmatprep.subr.bf16.mxu0 %v1952
    %2557 = vmatpush1.bf16.msra.mxu0 %v1951
    %2558 = vmatprep.subr.bf16.mxu0 %v1956
    %2559 = vmatpush1.bf16.msra.mxu0 %v1955
    %2560 = vmatprep.subr.bf16.mxu0 %v1960
    %2561 = vmatpush1.bf16.msra.mxu0 %v1959
    %2562 = vmatprep.subr.bf16.mxu0 %v1964
    %2563 = vmatpush1.bf16.msra.mxu0 %v1963
    %2564 = vmatprep.subr.bf16.mxu0 %v1968
    %2565 = vmatpush1.bf16.msra.mxu0 %v1967
    %2566 = vmatprep.subr.bf16.mxu0 %v1972
    %2567 = vmatpush1.bf16.msra.mxu0 %v1971
    %2568 = vmatprep.subr.bf16.mxu0 %v1976
    %2569 = vmatpush1.bf16.msra.mxu0 %v1975
    %2570 = vmatprep.subr.bf16.mxu0 %v1980
    %2571 = vmatpush1.bf16.msra.mxu0 %v1979
    %2572 = vmatprep.subr.bf16.mxu0 %v1984
    %2573 = vmatpush1.bf16.msra.mxu0 %v1983
    %2574 = vmatprep.subr.bf16.mxu0 %v1988
    %2575 = vmatpush1.bf16.msra.mxu0 %v1987
    %2576 = vmatprep.subr.bf16.mxu0 %v1992
    %2577 = vmatpush1.bf16.msra.mxu0 %v1991
    %2578 = vmatprep.subr.bf16.mxu0 %v1996
    %2579 = vmatpush1.bf16.msra.mxu0 %v1995
    %2580 = vmatprep.subr.bf16.mxu0 %v2000
    %2581 = vmatpush1.bf16.msra.mxu0 %v1999
    %2582 = vmatprep.subr.bf16.mxu0 %v2004
    %2583 = vmatpush1.bf16.msra.mxu0 %v2003
    %2584 = vmatprep.subr.bf16.mxu0 %v2008
    %2585 = vmatpush1.bf16.msra.mxu0 %v2007
    %2586 = vmatprep.subr.bf16.mxu0 %v2012
    %2587 = vmatpush1.bf16.msra.mxu0 %v2011
    %2588 = vmatprep.mubr.bf16.mxu0 %v710
    %2589 = vmatmul.mubr.bf16.gmra.mrb[0].mxu0 %v709
    %v2590 = vpop.f32.mrb[0].mxu0
    %v2591 = vadd.f32 %v2550, %v2590
    %v2592 = vpop.f32.mrb[0].mxu0
    %v2593 = vadd.f32 %v2552, %v2592
    %v2594 = vpop.f32.mrb[0].mxu0
    %v2595 = vpop.f32.mrb[0].mxu0
    %2596 = vdwg.mxu0
    %v2597 = vmax.f32 %v2427, 0.0
    %v2598 = vmax.f32 %v2429, 0.0
    %v2599 = vmax.f32 %v2591, 0.0
    %v2600 = vmax.f32 %v2593, 0.0
    %v2601 = vld [vmem:[#allocation10] sm:$0xf]
    %v2602 = vld [vmem:[#allocation10 + $0x4] sm:$0xf]
    %v2603 = vld [vmem:[#allocation10 + $0x8] sm:$0xf]
    %v2604 = vld [vmem:[#allocation10 + $0xc] sm:$0xf]
    %v2605 = vld [vmem:[#allocation10 + $0x10] sm:$0xf]
    %v2606 = vld [vmem:[#allocation10 + $0x14] sm:$0xf]
    %v2607 = vld [vmem:[#allocation10 + $0x18] sm:$0xf]
    %v2608 = vld [vmem:[#allocation10 + $0x1c] sm:$0xf]
    %v2609 = vld [vmem:[#allocation10 + $0x20] sm:$0xf]
    %v2610 = vld [vmem:[#allocation10 + $0x24] sm:$0xf]
    %v2611 = vld [vmem:[#allocation10 + $0x28] sm:$0xf]
    %v2612 = vld [vmem:[#allocation10 + $0x2c] sm:$0xf]
    %v2613 = vld [vmem:[#allocation10 + $0x30] sm:$0xf]
    %v2614 = vld [vmem:[#allocation10 + $0x34] sm:$0xf]
    %v2615 = vld [vmem:[#allocation10 + $0x38] sm:$0xf]
    %v2616 = vld [vmem:[#allocation10 + $0x3c] sm:$0xf]
    %v2617 = vld [vmem:[#allocation11 + $0xd] sm:$0x1]
    %v2619 = vlaneseq
    %v2620 = vshrl.u32 %v2619, 7
    %v2621 = vsub.s32 0, %v2620
    %v2622 = vrot.slane %v2617, %v2621
    %v2640 = vunpack.c.l.b16 %v2601
    %v2641 = vunpack.c.l.b16 %v2602
    %v2642 = vunpack.c.l.b16 %v2603
    %v2643 = vunpack.c.l.b16 %v2604
    %v2644 = vunpack.c.l.b16 %v2605
    %v2645 = vunpack.c.l.b16 %v2606
    %v2646 = vunpack.c.l.b16 %v2607
    %v2647 = vunpack.c.l.b16 %v2608
    %v2648 = vunpack.c.l.b16 %v2609
    %v2649 = vunpack.c.l.b16 %v2610
    %v2650 = vunpack.c.l.b16 %v2611
    %v2651 = vunpack.c.l.b16 %v2612
    %v2652 = vunpack.c.l.b16 %v2613
    %v2653 = vunpack.c.l.b16 %v2614
    %v2654 = vunpack.c.l.b16 %v2615
    %v2655 = vunpack.c.l.b16 %v2616
    %v2656 = vpack.c.b16 %v2641, %v2640
    %v2657 = vpack.c.b16 %v2643, %v2642
    %v2658 = vpack.c.b16 %v2645, %v2644
    %v2659 = vpack.c.b16 %v2647, %v2646
    %v2660 = vpack.c.b16 %v2649, %v2648
    %v2661 = vpack.c.b16 %v2651, %v2650
    %v2662 = vpack.c.b16 %v2653, %v2652
    %v2663 = vpack.c.b16 %v2655, %v2654
    %2672 = vmatprep.subr.bf16.mxu0 0
    %2673 = vmatpush1.bf16.msra.mxu0 %v2656
    %2674 = vmatprep.subr.bf16.mxu0 0
    %2675 = vmatpush1.bf16.msra.mxu0 %v2657
    %2676 = vmatprep.subr.bf16.mxu0 0
    %2677 = vmatpush1.bf16.msra.mxu0 %v2658
    %2678 = vmatprep.subr.bf16.mxu0 0
    %2679 = vmatpush1.bf16.msra.mxu0 %v2659
    %2680 = vmatprep.subr.bf16.mxu0 0
    %2681 = vmatpush1.bf16.msra.mxu0 %v2660
    %2682 = vmatprep.subr.bf16.mxu0 0
    %2683 = vmatpush1.bf16.msra.mxu0 %v2661
    %2684 = vmatprep.subr.bf16.mxu0 0
    %2685 = vmatpush1.bf16.msra.mxu0 %v2662
    %2686 = vmatprep.subr.bf16.mxu0 0
    %2687 = vmatpush1.bf16.msra.mxu0 %v2663
    %2688 = vmatprep.subr.bf16.mxu0 0
    %2689 = vmatpush1.bf16.msra.mxu0 0
    %2690 = vmatprep.subr.bf16.mxu0 0
    %2691 = vmatpush1.bf16.msra.mxu0 0
    %2692 = vmatprep.subr.bf16.mxu0 0
    %2693 = vmatpush1.bf16.msra.mxu0 0
    %2694 = vmatprep.subr.bf16.mxu0 0
    %2695 = vmatpush1.bf16.msra.mxu0 0
    %2696 = vmatprep.subr.bf16.mxu0 0
    %2697 = vmatpush1.bf16.msra.mxu0 0
    %2698 = vmatprep.subr.bf16.mxu0 0
    %2699 = vmatpush1.bf16.msra.mxu0 0
    %2700 = vmatprep.subr.bf16.mxu0 0
    %2701 = vmatpush1.bf16.msra.mxu0 0
    %2702 = vmatprep.subr.bf16.mxu0 0
    %2703 = vmatpush1.bf16.msra.mxu0 0
    %2704 = vmatprep.mubr.bf16.mxu0 0
    %2705 = vmatmul.mubr.bf16.gmra.mrb[0].mxu0 %v104
    %v2706 = vpop.f32.mrb[0].mxu0
    %v2707 = vadd.f32 %v2622, %v2706
    %v2708 = vpop.f32.mrb[0].mxu0
    %v2709 = vpop.f32.mrb[0].mxu0
    %v2710 = vpop.f32.mrb[0].mxu0
    %2711 = vdwg.mxu0
    %v2712 = vmax.f32 %v2707, 0.0
    %v2713 = vpack.c.bf16 %v2597, %v2597
    %v2714 = vpack.c.bf16 %v2598, %v2598
    %v2715 = vpack.c.bf16 %v2599, %v2599
    %v2716 = vpack.c.bf16 %v2600, %v2600
    %v2717 = vld [vmem:[#allocation10 + $0x40] sm:$0xf]
    %v2718 = vld [vmem:[#allocation10 + $0x44] sm:$0xf]
    %v2719 = vld [vmem:[#allocation10 + $0x48] sm:$0xf]
    %v2720 = vld [vmem:[#allocation10 + $0x4c] sm:$0xf]
    %v2721 = vld [vmem:[#allocation10 + $0x50] sm:$0xf]
    %v2722 = vld [vmem:[#allocation10 + $0x54] sm:$0xf]
    %v2723 = vld [vmem:[#allocation10 + $0x58] sm:$0xf]
    %v2724 = vld [vmem:[#allocation10 + $0x5c] sm:$0xf]
    %v2725 = vld [vmem:[#allocation10 + $0x60] sm:$0xf]
    %v2726 = vld [vmem:[#allocation10 + $0x64] sm:$0xf]
    %v2727 = vld [vmem:[#allocation10 + $0x68] sm:$0xf]
    %v2728 = vld [vmem:[#allocation10 + $0x6c] sm:$0xf]
    %v2729 = vld [vmem:[#allocation10 + $0x70] sm:$0xf]
    %v2730 = vld [vmem:[#allocation10 + $0x74] sm:$0xf]
    %v2731 = vld [vmem:[#allocation10 + $0x78] sm:$0xf]
    %v2732 = vld [vmem:[#allocation10 + $0x7c] sm:$0xf]
    %v2733 = vld [vmem:[#allocation10 + $0x80] sm:$0xf]
    %v2734 = vld [vmem:[#allocation10 + $0x84] sm:$0xf]
    %v2735 = vld [vmem:[#allocation10 + $0x88] sm:$0xf]
    %v2736 = vld [vmem:[#allocation10 + $0x8c] sm:$0xf]
    %v2737 = vld [vmem:[#allocation10 + $0x90] sm:$0xf]
    %v2738 = vld [vmem:[#allocation10 + $0x94] sm:$0xf]
    %v2739 = vld [vmem:[#allocation10 + $0x98] sm:$0xf]
    %v2740 = vld [vmem:[#allocation10 + $0x9c] sm:$0xf]
    %v2741 = vld [vmem:[#allocation10 + $0xa0] sm:$0xf]
    %v2742 = vld [vmem:[#allocation10 + $0xa4] sm:$0xf]
    %v2743 = vld [vmem:[#allocation10 + $0xa8] sm:$0xf]
    %v2744 = vld [vmem:[#allocation10 + $0xac] sm:$0xf]
    %v2745 = vld [vmem:[#allocation10 + $0xb0] sm:$0xf]
    %v2746 = vld [vmem:[#allocation10 + $0xb4] sm:$0xf]
    %v2747 = vld [vmem:[#allocation10 + $0xb8] sm:$0xf]
    %v2748 = vld [vmem:[#allocation10 + $0xbc] sm:$0xf]
    %v2749 = vld [vmem:[#allocation10 + $0xc0] sm:$0xf]
    %v2750 = vld [vmem:[#allocation10 + $0xc4] sm:$0xf]
    %v2751 = vld [vmem:[#allocation10 + $0xc8] sm:$0xf]
    %v2752 = vld [vmem:[#allocation10 + $0xcc] sm:$0xf]
    %v2753 = vld [vmem:[#allocation10 + $0xd0] sm:$0xf]
    %v2754 = vld [vmem:[#allocation10 + $0xd4] sm:$0xf]
    %v2755 = vld [vmem:[#allocation10 + $0xd8] sm:$0xf]
    %v2756 = vld [vmem:[#allocation10 + $0xdc] sm:$0xf]
    %v2757 = vld [vmem:[#allocation10 + $0xe0] sm:$0xf]
    %v2758 = vld [vmem:[#allocation10 + $0xe4] sm:$0xf]
    %v2759 = vld [vmem:[#allocation10 + $0xe8] sm:$0xf]
    %v2760 = vld [vmem:[#allocation10 + $0xec] sm:$0xf]
    %v2761 = vld [vmem:[#allocation10 + $0xf0] sm:$0xf]
    %v2762 = vld [vmem:[#allocation10 + $0xf4] sm:$0xf]
    %v2763 = vld [vmem:[#allocation10 + $0xf8] sm:$0xf]
    %v2764 = vld [vmem:[#allocation10 + $0xfc] sm:$0xf]
    %v2765 = vld [vmem:[#allocation10 + $0x100] sm:$0xf]
    %v2766 = vld [vmem:[#allocation10 + $0x104] sm:$0xf]
    %v2767 = vld [vmem:[#allocation10 + $0x108] sm:$0xf]
    %v2768 = vld [vmem:[#allocation10 + $0x10c] sm:$0xf]
    %v2769 = vld [vmem:[#allocation10 + $0x110] sm:$0xf]
    %v2770 = vld [vmem:[#allocation10 + $0x114] sm:$0xf]
    %v2771 = vld [vmem:[#allocation10 + $0x118] sm:$0xf]
    %v2772 = vld [vmem:[#allocation10 + $0x11c] sm:$0xf]
    %v2773 = vld [vmem:[#allocation10 + $0x120] sm:$0xf]
    %v2774 = vld [vmem:[#allocation10 + $0x124] sm:$0xf]
    %v2775 = vld [vmem:[#allocation10 + $0x128] sm:$0xf]
    %v2776 = vld [vmem:[#allocation10 + $0x12c] sm:$0xf]
    %v2777 = vld [vmem:[#allocation10 + $0x130] sm:$0xf]
    %v2778 = vld [vmem:[#allocation10 + $0x134] sm:$0xf]
    %v2779 = vld [vmem:[#allocation10 + $0x138] sm:$0xf]
    %v2780 = vld [vmem:[#allocation10 + $0x13c] sm:$0xf]
    %v2781 = vpack.c.bf16 %v2712, %v2712
    %v2782 = vld [vmem:[#allocation10 + $0x140] sm:$0xf]
    %v2783 = vld [vmem:[#allocation10 + $0x144] sm:$0xf]
    %v2784 = vld [vmem:[#allocation10 + $0x148] sm:$0xf]
    %v2785 = vld [vmem:[#allocation10 + $0x14c] sm:$0xf]
    %v2786 = vld [vmem:[#allocation10 + $0x150] sm:$0xf]
    %v2787 = vld [vmem:[#allocation10 + $0x154] sm:$0xf]
    %v2788 = vld [vmem:[#allocation10 + $0x158] sm:$0xf]
    %v2789 = vld [vmem:[#allocation10 + $0x15c] sm:$0xf]
    %v2790 = vld [vmem:[#allocation10 + $0x160] sm:$0xf]
    %v2791 = vld [vmem:[#allocation10 + $0x164] sm:$0xf]
    %v2792 = vld [vmem:[#allocation10 + $0x168] sm:$0xf]
    %v2793 = vld [vmem:[#allocation10 + $0x16c] sm:$0xf]
    %v2794 = vld [vmem:[#allocation10 + $0x170] sm:$0xf]
    %v2795 = vld [vmem:[#allocation10 + $0x174] sm:$0xf]
    %v2796 = vld [vmem:[#allocation10 + $0x178] sm:$0xf]
    %v2797 = vld [vmem:[#allocation10 + $0x17c] sm:$0xf]
    %v2814 = vunpack.c.l.b16 %v2782
    %v2815 = vunpack.c.l.b16 %v2783
    %v2816 = vunpack.c.l.b16 %v2784
    %v2817 = vunpack.c.l.b16 %v2785
    %v2818 = vunpack.c.l.b16 %v2786
    %v2819 = vunpack.c.l.b16 %v2787
    %v2820 = vunpack.c.l.b16 %v2788
    %v2821 = vunpack.c.l.b16 %v2789
    %v2822 = vunpack.c.l.b16 %v2790
    %v2823 = vunpack.c.l.b16 %v2791
    %v2824 = vunpack.c.l.b16 %v2792
    %v2825 = vunpack.c.l.b16 %v2793
    %v2826 = vunpack.c.l.b16 %v2794
    %v2827 = vunpack.c.l.b16 %v2795
    %v2828 = vunpack.c.l.b16 %v2796
    %v2829 = vunpack.c.l.b16 %v2797
    %v2830 = vpack.c.b16 %v2815, %v2814
    %v2831 = vpack.c.b16 %v2817, %v2816
    %v2832 = vpack.c.b16 %v2819, %v2818
    %v2833 = vpack.c.b16 %v2821, %v2820
    %v2834 = vpack.c.b16 %v2823, %v2822
    %v2835 = vpack.c.b16 %v2825, %v2824
    %v2836 = vpack.c.b16 %v2827, %v2826
    %v2837 = vpack.c.b16 %v2829, %v2828
    %2846 = vmatprep.subr.bf16.mxu0 0
    %2847 = vmatpush1.bf16.msra.mxu0 %v2830
    %2848 = vmatprep.subr.bf16.mxu0 0
    %2849 = vmatpush1.bf16.msra.mxu0 %v2831
    %2850 = vmatprep.subr.bf16.mxu0 0
    %2851 = vmatpush1.bf16.msra.mxu0 %v2832
    %2852 = vmatprep.subr.bf16.mxu0 0
    %2853 = vmatpush1.bf16.msra.mxu0 %v2833
    %2854 = vmatprep.subr.bf16.mxu0 0
    %2855 = vmatpush1.bf16.msra.mxu0 %v2834
    %2856 = vmatprep.subr.bf16.mxu0 0
    %2857 = vmatpush1.bf16.msra.mxu0 %v2835
    %2858 = vmatprep.subr.bf16.mxu0 0
    %2859 = vmatpush1.bf16.msra.mxu0 %v2836
    %2860 = vmatprep.subr.bf16.mxu0 0
    %2861 = vmatpush1.bf16.msra.mxu0 %v2837
    %2862 = vmatprep.subr.bf16.mxu0 0
    %2863 = vmatpush1.bf16.msra.mxu0 0
    %2864 = vmatprep.subr.bf16.mxu0 0
    %2865 = vmatpush1.bf16.msra.mxu0 0
    %2866 = vmatprep.subr.bf16.mxu0 0
    %2867 = vmatpush1.bf16.msra.mxu0 0
    %2868 = vmatprep.subr.bf16.mxu0 0
    %2869 = vmatpush1.bf16.msra.mxu0 0
    %2870 = vmatprep.subr.bf16.mxu0 0
    %2871 = vmatpush1.bf16.msra.mxu0 0
    %2872 = vmatprep.subr.bf16.mxu0 0
    %2873 = vmatpush1.bf16.msra.mxu0 0
    %2874 = vmatprep.subr.bf16.mxu0 0
    %2875 = vmatpush1.bf16.msra.mxu0 0
    %2876 = vmatprep.subr.bf16.mxu0 0
    %2877 = vmatpush1.bf16.msra.mxu0 0
    %2878 = vmatprep.mubr.bf16.mxu0 0
    %2879 = vmatmul.mubr.bf16.gmra.mrb[0].mxu0 %v2781
    %v2880 = vpop.f32.mrb[0].mxu0
    %v2881 = vadd.f32 0.0, %v2880
    %v2882 = vpop.f32.mrb[0].mxu0
    %v2883 = vpop.f32.mrb[0].mxu0
    %v2884 = vpop.f32.mrb[0].mxu0
    %2885 = vdwg.mxu0
    %v2950 = vunpack.c.l.b16 %v2717
    %v2951 = vunpack.c.l.b16 %v2718
    %v2952 = vunpack.c.l.b16 %v2719
    %v2953 = vunpack.c.l.b16 %v2720
    %v2954 = vunpack.c.l.b16 %v2721
    %v2955 = vunpack.c.l.b16 %v2722
    %v2956 = vunpack.c.l.b16 %v2723
    %v2957 = vunpack.c.l.b16 %v2724
    %v2958 = vunpack.c.l.b16 %v2725
    %v2959 = vunpack.c.l.b16 %v2726
    %v2960 = vunpack.c.l.b16 %v2727
    %v2961 = vunpack.c.l.b16 %v2728
    %v2962 = vunpack.c.l.b16 %v2729
    %v2963 = vunpack.c.l.b16 %v2730
    %v2964 = vunpack.c.l.b16 %v2731
    %v2965 = vunpack.c.l.b16 %v2732
    %v2966 = vunpack.c.l.b16 %v2733
    %v2967 = vunpack.c.l.b16 %v2734
    %v2968 = vunpack.c.l.b16 %v2735
    %v2969 = vunpack.c.l.b16 %v2736
    %v2970 = vunpack.c.l.b16 %v2737
    %v2971 = vunpack.c.l.b16 %v2738
    %v2972 = vunpack.c.l.b16 %v2739
    %v2973 = vunpack.c.l.b16 %v2740
    %v2974 = vunpack.c.l.b16 %v2741
    %v2975 = vunpack.c.l.b16 %v2742
    %v2976 = vunpack.c.l.b16 %v2743
    %v2977 = vunpack.c.l.b16 %v2744
    %v2978 = vunpack.c.l.b16 %v2745
    %v2979 = vunpack.c.l.b16 %v2746
    %v2980 = vunpack.c.l.b16 %v2747
    %v2981 = vunpack.c.l.b16 %v2748
    %v2982 = vunpack.c.l.b16 %v2749
    %v2983 = vunpack.c.l.b16 %v2750
    %v2984 = vunpack.c.l.b16 %v2751
    %v2985 = vunpack.c.l.b16 %v2752
    %v2986 = vunpack.c.l.b16 %v2753
    %v2987 = vunpack.c.l.b16 %v2754
    %v2988 = vunpack.c.l.b16 %v2755
    %v2989 = vunpack.c.l.b16 %v2756
    %v2990 = vunpack.c.l.b16 %v2757
    %v2991 = vunpack.c.l.b16 %v2758
    %v2992 = vunpack.c.l.b16 %v2759
    %v2993 = vunpack.c.l.b16 %v2760
    %v2994 = vunpack.c.l.b16 %v2761
    %v2995 = vunpack.c.l.b16 %v2762
    %v2996 = vunpack.c.l.b16 %v2763
    %v2997 = vunpack.c.l.b16 %v2764
    %v2998 = vunpack.c.l.b16 %v2765
    %v2999 = vunpack.c.l.b16 %v2766
    %v3000 = vunpack.c.l.b16 %v2767
    %v3001 = vunpack.c.l.b16 %v2768
    %v3002 = vunpack.c.l.b16 %v2769
    %v3003 = vunpack.c.l.b16 %v2770
    %v3004 = vunpack.c.l.b16 %v2771
    %v3005 = vunpack.c.l.b16 %v2772
    %v3006 = vunpack.c.l.b16 %v2773
    %v3007 = vunpack.c.l.b16 %v2774
    %v3008 = vunpack.c.l.b16 %v2775
    %v3009 = vunpack.c.l.b16 %v2776
    %v3010 = vunpack.c.l.b16 %v2777
    %v3011 = vunpack.c.l.b16 %v2778
    %v3012 = vunpack.c.l.b16 %v2779
    %v3013 = vunpack.c.l.b16 %v2780
    %v3014 = vpack.c.b16 %v2951, %v2950
    %v3015 = vpack.c.b16 %v2953, %v2952
    %v3016 = vpack.c.b16 %v2955, %v2954
    %v3017 = vpack.c.b16 %v2957, %v2956
    %v3018 = vpack.c.b16 %v2959, %v2958
    %v3019 = vpack.c.b16 %v2961, %v2960
    %v3020 = vpack.c.b16 %v2963, %v2962
    %v3021 = vpack.c.b16 %v2965, %v2964
    %v3022 = vpack.c.b16 %v2967, %v2966
    %v3023 = vpack.c.b16 %v2969, %v2968
    %v3024 = vpack.c.b16 %v2971, %v2970
    %v3025 = vpack.c.b16 %v2973, %v2972
    %v3026 = vpack.c.b16 %v2975, %v2974
    %v3027 = vpack.c.b16 %v2977, %v2976
    %v3028 = vpack.c.b16 %v2979, %v2978
    %v3029 = vpack.c.b16 %v2981, %v2980
    %v3030 = vpack.c.b16 %v2983, %v2982
    %v3031 = vpack.c.b16 %v2985, %v2984
    %v3032 = vpack.c.b16 %v2987, %v2986
    %v3033 = vpack.c.b16 %v2989, %v2988
    %v3034 = vpack.c.b16 %v2991, %v2990
    %v3035 = vpack.c.b16 %v2993, %v2992
    %v3036 = vpack.c.b16 %v2995, %v2994
    %v3037 = vpack.c.b16 %v2997, %v2996
    %v3038 = vpack.c.b16 %v2999, %v2998
    %v3039 = vpack.c.b16 %v3001, %v3000
    %v3040 = vpack.c.b16 %v3003, %v3002
    %v3041 = vpack.c.b16 %v3005, %v3004
    %v3042 = vpack.c.b16 %v3007, %v3006
    %v3043 = vpack.c.b16 %v3009, %v3008
    %v3044 = vpack.c.b16 %v3011, %v3010
    %v3045 = vpack.c.b16 %v3013, %v3012
    %3078 = vmatprep.subr.bf16.mxu0 0
    %3079 = vmatpush1.bf16.msra.mxu0 %v3014
    %3080 = vmatprep.subr.bf16.mxu0 0
    %3081 = vmatpush1.bf16.msra.mxu0 %v3015
    %3082 = vmatprep.subr.bf16.mxu0 0
    %3083 = vmatpush1.bf16.msra.mxu0 %v3016
    %3084 = vmatprep.subr.bf16.mxu0 0
    %3085 = vmatpush1.bf16.msra.mxu0 %v3017
    %3086 = vmatprep.subr.bf16.mxu0 0
    %3087 = vmatpush1.bf16.msra.mxu0 %v3018
    %3088 = vmatprep.subr.bf16.mxu0 0
    %3089 = vmatpush1.bf16.msra.mxu0 %v3019
    %3090 = vmatprep.subr.bf16.mxu0 0
    %3091 = vmatpush1.bf16.msra.mxu0 %v3020
    %3092 = vmatprep.subr.bf16.mxu0 0
    %3093 = vmatpush1.bf16.msra.mxu0 %v3021
    %3094 = vmatprep.subr.bf16.mxu0 0
    %3095 = vmatpush1.bf16.msra.mxu0 %v3022
    %3096 = vmatprep.subr.bf16.mxu0 0
    %3097 = vmatpush1.bf16.msra.mxu0 %v3023
    %3098 = vmatprep.subr.bf16.mxu0 0
    %3099 = vmatpush1.bf16.msra.mxu0 %v3024
    %3100 = vmatprep.subr.bf16.mxu0 0
    %3101 = vmatpush1.bf16.msra.mxu0 %v3025
    %3102 = vmatprep.subr.bf16.mxu0 0
    %3103 = vmatpush1.bf16.msra.mxu0 %v3026
    %3104 = vmatprep.subr.bf16.mxu0 0
    %3105 = vmatpush1.bf16.msra.mxu0 %v3027
    %3106 = vmatprep.subr.bf16.mxu0 0
    %3107 = vmatpush1.bf16.msra.mxu0 %v3028
    %3108 = vmatprep.subr.bf16.mxu0 0
    %3109 = vmatpush1.bf16.msra.mxu0 %v3029
    %3110 = vmatprep.mubr.bf16.mxu0 %v2714
    %3111 = vmatmul.mubr.bf16.gmra.mrb[0].mxu0 %v2713
    %v3112 = vpop.f32.mrb[0].mxu0
    %v3113 = vadd.f32 %v2881, %v3112
    %v3114 = vpop.f32.mrb[0].mxu0
    %v3115 = vpop.f32.mrb[0].mxu0
    %v3116 = vpop.f32.mrb[0].mxu0
    %3117 = vdwg.mxu0
    %3118 = vmatprep.subr.bf16.mxu0 0
    %3119 = vmatpush1.bf16.msra.mxu0 %v3030
    %3120 = vmatprep.subr.bf16.mxu0 0
    %3121 = vmatpush1.bf16.msra.mxu0 %v3031
    %3122 = vmatprep.subr.bf16.mxu0 0
    %3123 = vmatpush1.bf16.msra.mxu0 %v3032
    %3124 = vmatprep.subr.bf16.mxu0 0
    %3125 = vmatpush1.bf16.msra.mxu0 %v3033
    %3126 = vmatprep.subr.bf16.mxu0 0
    %3127 = vmatpush1.bf16.msra.mxu0 %v3034
    %3128 = vmatprep.subr.bf16.mxu0 0
    %3129 = vmatpush1.bf16.msra.mxu0 %v3035
    %3130 = vmatprep.subr.bf16.mxu0 0
    %3131 = vmatpush1.bf16.msra.mxu0 %v3036
    %3132 = vmatprep.subr.bf16.mxu0 0
    %3133 = vmatpush1.bf16.msra.mxu0 %v3037
    %3134 = vmatprep.subr.bf16.mxu0 0
    %3135 = vmatpush1.bf16.msra.mxu0 %v3038
    %3136 = vmatprep.subr.bf16.mxu0 0
    %3137 = vmatpush1.bf16.msra.mxu0 %v3039
    %3138 = vmatprep.subr.bf16.mxu0 0
    %3139 = vmatpush1.bf16.msra.mxu0 %v3040
    %3140 = vmatprep.subr.bf16.mxu0 0
    %3141 = vmatpush1.bf16.msra.mxu0 %v3041
    %3142 = vmatprep.subr.bf16.mxu0 0
    %3143 = vmatpush1.bf16.msra.mxu0 %v3042
    %3144 = vmatprep.subr.bf16.mxu0 0
    %3145 = vmatpush1.bf16.msra.mxu0 %v3043
    %3146 = vmatprep.subr.bf16.mxu0 0
    %3147 = vmatpush1.bf16.msra.mxu0 %v3044
    %3148 = vmatprep.subr.bf16.mxu0 0
    %3149 = vmatpush1.bf16.msra.mxu0 %v3045
    %3150 = vmatprep.mubr.bf16.mxu0 %v2716
    %3151 = vmatmul.mubr.bf16.gmra.mrb[0].mxu0 %v2715
    %v3152 = vpop.f32.mrb[0].mxu0
    %v3153 = vadd.f32 %v3113, %v3152
    %v3154 = vpop.f32.mrb[0].mxu0
    %v3155 = vpop.f32.mrb[0].mxu0
    %v3156 = vpop.f32.mrb[0].mxu0
    %3157 = vdwg.mxu0
    %v3158 = vld [vmem:[#allocation11 + $0xc] sm:$0x1]
    %v3160 = vlaneseq
    %v3161 = vshrl.u32 %v3160, 7
    %v3162 = vsub.s32 0, %v3161
    %v3163 = vrot.slane %v3158, %v3162
    %v3165 = vadd.f32 %v3153, %v3163
    %v3166 = vmax.f32 %v3165, 0.0
    %v3167 = vpack.c.bf16 %v3166, %v3166
    %v3168 = vld [vmem:[#allocation7 + $0x800] sm:$0xff]
    %v3169 = vld [vmem:[#allocation7 + $0x808] sm:$0xff]
    %v3170 = vld [vmem:[#allocation7 + $0x810] sm:$0xff]
    %v3171 = vld [vmem:[#allocation7 + $0x818] sm:$0xff]
    %v3172 = vld [vmem:[#allocation7 + $0x820] sm:$0xff]
    %v3173 = vld [vmem:[#allocation7 + $0x828] sm:$0xff]
    %v3174 = vld [vmem:[#allocation7 + $0x830] sm:$0xff]
    %v3175 = vld [vmem:[#allocation7 + $0x838] sm:$0xff]
    %v3176 = vld [vmem:[#allocation7 + $0x840] sm:$0xff]
    %v3177 = vld [vmem:[#allocation7 + $0x848] sm:$0xff]
    %v3178 = vld [vmem:[#allocation7 + $0x850] sm:$0xff]
    %v3179 = vld [vmem:[#allocation7 + $0x858] sm:$0xff]
    %v3180 = vld [vmem:[#allocation7 + $0x860] sm:$0xff]
    %v3181 = vld [vmem:[#allocation7 + $0x868] sm:$0xff]
    %v3182 = vld [vmem:[#allocation7 + $0x870] sm:$0xff]
    %v3183 = vld [vmem:[#allocation7 + $0x878] sm:$0xff]
    %v3184 = vld [vmem:[#allocation7 + $0x880] sm:$0xff]
    %v3185 = vld [vmem:[#allocation7 + $0x888] sm:$0xff]
    %v3186 = vld [vmem:[#allocation7 + $0x890] sm:$0xff]
    %v3187 = vld [vmem:[#allocation7 + $0x898] sm:$0xff]
    %v3188 = vld [vmem:[#allocation7 + $0x8a0] sm:$0xff]
    %v3189 = vld [vmem:[#allocation7 + $0x8a8] sm:$0xff]
    %v3190 = vld [vmem:[#allocation7 + $0x8b0] sm:$0xff]
    %v3191 = vld [vmem:[#allocation7 + $0x8b8] sm:$0xff]
    %v3192 = vld [vmem:[#allocation7 + $0x8c0] sm:$0xff]
    %v3193 = vld [vmem:[#allocation7 + $0x8c8] sm:$0xff]
    %v3194 = vld [vmem:[#allocation7 + $0x8d0] sm:$0xff]
    %v3195 = vld [vmem:[#allocation7 + $0x8d8] sm:$0xff]
    %v3196 = vld [vmem:[#allocation7 + $0x8e0] sm:$0xff]
    %v3197 = vld [vmem:[#allocation7 + $0x8e8] sm:$0xff]
    %v3198 = vld [vmem:[#allocation7 + $0x8f0] sm:$0xff]
    %v3199 = vld [vmem:[#allocation7 + $0x8f8] sm:$0xff]
    %v3200 = vld [vmem:[#allocation11 + $0xe] sm:$0xf]
    %v3202 = vlaneseq
    %v3203 = vshrl.u32 %v3202, 7
    %v3204 = vsub.s32 0, %v3203
    %v3205 = vrot.slane %v3200, %v3204
    %v3206 = vlaneseq
    %v3207 = vshrl.u32 %v3206, 7
    %v3208 = vsub.s32 1, %v3207
    %v3209 = vrot.slane %v3200, %v3208
    %v3210 = vlaneseq
    %v3211 = vshrl.u32 %v3210, 7
    %v3212 = vsub.s32 2, %v3211
    %v3213 = vrot.slane %v3200, %v3212
    %v3214 = vlaneseq
    %v3215 = vshrl.u32 %v3214, 7
    %v3216 = vsub.s32 3, %v3215
    %v3217 = vrot.slane %v3200, %v3216
    %v3254 = vunpack.c.l.b16 %v3168
    %v3255 = vunpack.c.h.b16 %v3168
    %v3256 = vunpack.c.l.b16 %v3169
    %v3257 = vunpack.c.h.b16 %v3169
    %v3258 = vunpack.c.l.b16 %v3170
    %v3259 = vunpack.c.h.b16 %v3170
    %v3260 = vunpack.c.l.b16 %v3171
    %v3261 = vunpack.c.h.b16 %v3171
    %v3262 = vunpack.c.l.b16 %v3172
    %v3263 = vunpack.c.h.b16 %v3172
    %v3264 = vunpack.c.l.b16 %v3173
    %v3265 = vunpack.c.h.b16 %v3173
    %v3266 = vunpack.c.l.b16 %v3174
    %v3267 = vunpack.c.h.b16 %v3174
    %v3268 = vunpack.c.l.b16 %v3175
    %v3269 = vunpack.c.h.b16 %v3175
    %v3270 = vunpack.c.l.b16 %v3176
    %v3271 = vunpack.c.h.b16 %v3176
    %v3272 = vunpack.c.l.b16 %v3177
    %v3273 = vunpack.c.h.b16 %v3177
    %v3274 = vunpack.c.l.b16 %v3178
    %v3275 = vunpack.c.h.b16 %v3178
    %v3276 = vunpack.c.l.b16 %v3179
    %v3277 = vunpack.c.h.b16 %v3179
    %v3278 = vunpack.c.l.b16 %v3180
    %v3279 = vunpack.c.h.b16 %v3180
    %v3280 = vunpack.c.l.b16 %v3181
    %v3281 = vunpack.c.h.b16 %v3181
    %v3282 = vunpack.c.l.b16 %v3182
    %v3283 = vunpack.c.h.b16 %v3182
    %v3284 = vunpack.c.l.b16 %v3183
    %v3285 = vunpack.c.h.b16 %v3183
    %v3286 = vunpack.c.l.b16 %v3184
    %v3287 = vunpack.c.h.b16 %v3184
    %v3288 = vunpack.c.l.b16 %v3185
    %v3289 = vunpack.c.h.b16 %v3185
    %v3290 = vunpack.c.l.b16 %v3186
    %v3291 = vunpack.c.h.b16 %v3186
    %v3292 = vunpack.c.l.b16 %v3187
    %v3293 = vunpack.c.h.b16 %v3187
    %v3294 = vunpack.c.l.b16 %v3188
    %v3295 = vunpack.c.h.b16 %v3188
    %v3296 = vunpack.c.l.b16 %v3189
    %v3297 = vunpack.c.h.b16 %v3189
    %v3298 = vunpack.c.l.b16 %v3190
    %v3299 = vunpack.c.h.b16 %v3190
    %v3300 = vunpack.c.l.b16 %v3191
    %v3301 = vunpack.c.h.b16 %v3191
    %v3302 = vunpack.c.l.b16 %v3192
    %v3303 = vunpack.c.h.b16 %v3192
    %v3304 = vunpack.c.l.b16 %v3193
    %v3305 = vunpack.c.h.b16 %v3193
    %v3306 = vunpack.c.l.b16 %v3194
    %v3307 = vunpack.c.h.b16 %v3194
    %v3308 = vunpack.c.l.b16 %v3195
    %v3309 = vunpack.c.h.b16 %v3195
    %v3310 = vunpack.c.l.b16 %v3196
    %v3311 = vunpack.c.h.b16 %v3196
    %v3312 = vunpack.c.l.b16 %v3197
    %v3313 = vunpack.c.h.b16 %v3197
    %v3314 = vunpack.c.l.b16 %v3198
    %v3315 = vunpack.c.h.b16 %v3198
    %v3316 = vunpack.c.l.b16 %v3199
    %v3317 = vunpack.c.h.b16 %v3199
    %v3318 = vpack.c.b16 %v3258, %v3254
    %v3319 = vpack.c.b16 %v3259, %v3255
    %v3320 = vpack.c.b16 %v3260, %v3256
    %v3321 = vpack.c.b16 %v3261, %v3257
    %v3322 = vpack.c.b16 %v3266, %v3262
    %v3323 = vpack.c.b16 %v3267, %v3263
    %v3324 = vpack.c.b16 %v3268, %v3264
    %v3325 = vpack.c.b16 %v3269, %v3265
    %v3326 = vpack.c.b16 %v3274, %v3270
    %v3327 = vpack.c.b16 %v3275, %v3271
    %v3328 = vpack.c.b16 %v3276, %v3272
    %v3329 = vpack.c.b16 %v3277, %v3273
    %v3330 = vpack.c.b16 %v3282, %v3278
    %v3331 = vpack.c.b16 %v3283, %v3279
    %v3332 = vpack.c.b16 %v3284, %v3280
    %v3333 = vpack.c.b16 %v3285, %v3281
    %v3334 = vpack.c.b16 %v3290, %v3286
    %v3335 = vpack.c.b16 %v3291, %v3287
    %v3336 = vpack.c.b16 %v3292, %v3288
    %v3337 = vpack.c.b16 %v3293, %v3289
    %v3338 = vpack.c.b16 %v3298, %v3294
    %v3339 = vpack.c.b16 %v3299, %v3295
    %v3340 = vpack.c.b16 %v3300, %v3296
    %v3341 = vpack.c.b16 %v3301, %v3297
    %v3342 = vpack.c.b16 %v3306, %v3302
    %v3343 = vpack.c.b16 %v3307, %v3303
    %v3344 = vpack.c.b16 %v3308, %v3304
    %v3345 = vpack.c.b16 %v3309, %v3305
    %v3346 = vpack.c.b16 %v3314, %v3310
    %v3347 = vpack.c.b16 %v3315, %v3311
    %v3348 = vpack.c.b16 %v3316, %v3312
    %v3349 = vpack.c.b16 %v3317, %v3313
    %3382 = vmatprep.subr.bf16.mxu0 %v3319
    %3383 = vmatpush1.bf16.msra.mxu0 %v3318
    %3384 = vmatprep.subr.bf16.mxu0 %v3323
    %3385 = vmatpush1.bf16.msra.mxu0 %v3322
    %3386 = vmatprep.subr.bf16.mxu0 %v3327
    %3387 = vmatpush1.bf16.msra.mxu0 %v3326
    %3388 = vmatprep.subr.bf16.mxu0 %v3331
    %3389 = vmatpush1.bf16.msra.mxu0 %v3330
    %3390 = vmatprep.subr.bf16.mxu0 %v3335
    %3391 = vmatpush1.bf16.msra.mxu0 %v3334
    %3392 = vmatprep.subr.bf16.mxu0 %v3339
    %3393 = vmatpush1.bf16.msra.mxu0 %v3338
    %3394 = vmatprep.subr.bf16.mxu0 %v3343
    %3395 = vmatpush1.bf16.msra.mxu0 %v3342
    %3396 = vmatprep.subr.bf16.mxu0 %v3347
    %3397 = vmatpush1.bf16.msra.mxu0 %v3346
    %3398 = vmatprep.subr.bf16.mxu0 0
    %3399 = vmatpush1.bf16.msra.mxu0 0
    %3400 = vmatprep.subr.bf16.mxu0 0
    %3401 = vmatpush1.bf16.msra.mxu0 0
    %3402 = vmatprep.subr.bf16.mxu0 0
    %3403 = vmatpush1.bf16.msra.mxu0 0
    %3404 = vmatprep.subr.bf16.mxu0 0
    %3405 = vmatpush1.bf16.msra.mxu0 0
    %3406 = vmatprep.subr.bf16.mxu0 0
    %3407 = vmatpush1.bf16.msra.mxu0 0
    %3408 = vmatprep.subr.bf16.mxu0 0
    %3409 = vmatpush1.bf16.msra.mxu0 0
    %3410 = vmatprep.subr.bf16.mxu0 0
    %3411 = vmatpush1.bf16.msra.mxu0 0
    %3412 = vmatprep.subr.bf16.mxu0 0
    %3413 = vmatpush1.bf16.msra.mxu0 0
    %3414 = vmatprep.mubr.bf16.mxu0 0
    %3415 = vmatmul.mubr.bf16.gmra.mrb[0].mxu0 %v3167
    %v3416 = vpop.f32.mrb[0].mxu0
    %v3417 = vadd.f32 %v3205, %v3416
    %v3418 = vpop.f32.mrb[0].mxu0
    %v3419 = vadd.f32 %v3209, %v3418
    %v3420 = vpop.f32.mrb[0].mxu0
    %v3421 = vpop.f32.mrb[0].mxu0
    %3422 = vdwg.mxu0
    %3423 = vmatprep.subr.bf16.mxu0 %v3321
    %3424 = vmatpush1.bf16.msra.mxu0 %v3320
    %3425 = vmatprep.subr.bf16.mxu0 %v3325
    %3426 = vmatpush1.bf16.msra.mxu0 %v3324
    %3427 = vmatprep.subr.bf16.mxu0 %v3329
    %3428 = vmatpush1.bf16.msra.mxu0 %v3328
    %3429 = vmatprep.subr.bf16.mxu0 %v3333
    %3430 = vmatpush1.bf16.msra.mxu0 %v3332
    %3431 = vmatprep.subr.bf16.mxu0 %v3337
    %3432 = vmatpush1.bf16.msra.mxu0 %v3336
    %3433 = vmatprep.subr.bf16.mxu0 %v3341
    %3434 = vmatpush1.bf16.msra.mxu0 %v3340
    %3435 = vmatprep.subr.bf16.mxu0 %v3345
    %3436 = vmatpush1.bf16.msra.mxu0 %v3344
    %3437 = vmatprep.subr.bf16.mxu0 %v3349
    %3438 = vmatpush1.bf16.msra.mxu0 %v3348
    %3439 = vmatprep.subr.bf16.mxu0 0
    %3440 = vmatpush1.bf16.msra.mxu0 0
    %3441 = vmatprep.subr.bf16.mxu0 0
    %3442 = vmatpush1.bf16.msra.mxu0 0
    %3443 = vmatprep.subr.bf16.mxu0 0
    %3444 = vmatpush1.bf16.msra.mxu0 0
    %3445 = vmatprep.subr.bf16.mxu0 0
    %3446 = vmatpush1.bf16.msra.mxu0 0
    %3447 = vmatprep.subr.bf16.mxu0 0
    %3448 = vmatpush1.bf16.msra.mxu0 0
    %3449 = vmatprep.subr.bf16.mxu0 0
    %3450 = vmatpush1.bf16.msra.mxu0 0
    %3451 = vmatprep.subr.bf16.mxu0 0
    %3452 = vmatpush1.bf16.msra.mxu0 0
    %3453 = vmatprep.subr.bf16.mxu0 0
    %3454 = vmatpush1.bf16.msra.mxu0 0
    %3455 = vmatprep.mubr.bf16.mxu0 0
    %3456 = vmatmul.mubr.bf16.gmra.mrb[0].mxu0 %v3167
    %v3457 = vpop.f32.mrb[0].mxu0
    %v3458 = vadd.f32 %v3213, %v3457
    %v3459 = vpop.f32.mrb[0].mxu0
    %v3460 = vadd.f32 %v3217, %v3459
    %v3461 = vpop.f32.mrb[0].mxu0
    %v3462 = vpop.f32.mrb[0].mxu0
    %3463 = vdwg.mxu0
    %v3464 = vmax.f32 %v3417, 0.0
    %v3465 = vmax.f32 %v3419, 0.0
    %v3466 = vmax.f32 %v3458, 0.0
    %v3467 = vmax.f32 %v3460, 0.0
    %v3468 = vpack.c.bf16 %v3464, %v3464
    %v3469 = vpack.c.bf16 %v3465, %v3465
    %v3470 = vpack.c.bf16 %v3466, %v3466
    %v3471 = vpack.c.bf16 %v3467, %v3467
    %v3472 = vld [vmem:[#allocation8] sm:$0xff]
    %v3473 = vld [vmem:[#allocation8 + $0x8] sm:$0xff]
    %v3474 = vld [vmem:[#allocation8 + $0x10] sm:$0xff]
    %v3475 = vld [vmem:[#allocation8 + $0x18] sm:$0xff]
    %v3476 = vld [vmem:[#allocation8 + $0x20] sm:$0xff]
    %v3477 = vld [vmem:[#allocation8 + $0x28] sm:$0xff]
    %v3478 = vld [vmem:[#allocation8 + $0x30] sm:$0xff]
    %v3479 = vld [vmem:[#allocation8 + $0x38] sm:$0xff]
    %v3480 = vld [vmem:[#allocation8 + $0x40] sm:$0xff]
    %v3481 = vld [vmem:[#allocation8 + $0x48] sm:$0xff]
    %v3482 = vld [vmem:[#allocation8 + $0x50] sm:$0xff]
    %v3483 = vld [vmem:[#allocation8 + $0x58] sm:$0xff]
    %v3484 = vld [vmem:[#allocation8 + $0x60] sm:$0xff]
    %v3485 = vld [vmem:[#allocation8 + $0x68] sm:$0xff]
    %v3486 = vld [vmem:[#allocation8 + $0x70] sm:$0xff]
    %v3487 = vld [vmem:[#allocation8 + $0x78] sm:$0xff]
    %v3488 = vld [vmem:[#allocation8 + $0x80] sm:$0xff]
    %v3489 = vld [vmem:[#allocation8 + $0x88] sm:$0xff]
    %v3490 = vld [vmem:[#allocation8 + $0x90] sm:$0xff]
    %v3491 = vld [vmem:[#allocation8 + $0x98] sm:$0xff]
    %v3492 = vld [vmem:[#allocation8 + $0xa0] sm:$0xff]
    %v3493 = vld [vmem:[#allocation8 + $0xa8] sm:$0xff]
    %v3494 = vld [vmem:[#allocation8 + $0xb0] sm:$0xff]
    %v3495 = vld [vmem:[#allocation8 + $0xb8] sm:$0xff]
    %v3496 = vld [vmem:[#allocation8 + $0xc0] sm:$0xff]
    %v3497 = vld [vmem:[#allocation8 + $0xc8] sm:$0xff]
    %v3498 = vld [vmem:[#allocation8 + $0xd0] sm:$0xff]
    %v3499 = vld [vmem:[#allocation8 + $0xd8] sm:$0xff]
    %v3500 = vld [vmem:[#allocation8 + $0xe0] sm:$0xff]
    %v3501 = vld [vmem:[#allocation8 + $0xe8] sm:$0xff]
    %v3502 = vld [vmem:[#allocation8 + $0xf0] sm:$0xff]
    %v3503 = vld [vmem:[#allocation8 + $0xf8] sm:$0xff]
    %v3504 = vld [vmem:[#allocation8 + $0x100] sm:$0xff]
    %v3505 = vld [vmem:[#allocation8 + $0x108] sm:$0xff]
    %v3506 = vld [vmem:[#allocation8 + $0x110] sm:$0xff]
    %v3507 = vld [vmem:[#allocation8 + $0x118] sm:$0xff]
    %v3508 = vld [vmem:[#allocation8 + $0x120] sm:$0xff]
    %v3509 = vld [vmem:[#allocation8 + $0x128] sm:$0xff]
    %v3510 = vld [vmem:[#allocation8 + $0x130] sm:$0xff]
    %v3511 = vld [vmem:[#allocation8 + $0x138] sm:$0xff]
    %v3512 = vld [vmem:[#allocation8 + $0x140] sm:$0xff]
    %v3513 = vld [vmem:[#allocation8 + $0x148] sm:$0xff]
    %v3514 = vld [vmem:[#allocation8 + $0x150] sm:$0xff]
    %v3515 = vld [vmem:[#allocation8 + $0x158] sm:$0xff]
    %v3516 = vld [vmem:[#allocation8 + $0x160] sm:$0xff]
    %v3517 = vld [vmem:[#allocation8 + $0x168] sm:$0xff]
    %v3518 = vld [vmem:[#allocation8 + $0x170] sm:$0xff]
    %v3519 = vld [vmem:[#allocation8 + $0x178] sm:$0xff]
    %v3520 = vld [vmem:[#allocation8 + $0x180] sm:$0xff]
    %v3521 = vld [vmem:[#allocation8 + $0x188] sm:$0xff]
    %v3522 = vld [vmem:[#allocation8 + $0x190] sm:$0xff]
    %v3523 = vld [vmem:[#allocation8 + $0x198] sm:$0xff]
    %v3524 = vld [vmem:[#allocation8 + $0x1a0] sm:$0xff]
    %v3525 = vld [vmem:[#allocation8 + $0x1a8] sm:$0xff]
    %v3526 = vld [vmem:[#allocation8 + $0x1b0] sm:$0xff]
    %v3527 = vld [vmem:[#allocation8 + $0x1b8] sm:$0xff]
    %v3528 = vld [vmem:[#allocation8 + $0x1c0] sm:$0xff]
    %v3529 = vld [vmem:[#allocation8 + $0x1c8] sm:$0xff]
    %v3530 = vld [vmem:[#allocation8 + $0x1d0] sm:$0xff]
    %v3531 = vld [vmem:[#allocation8 + $0x1d8] sm:$0xff]
    %v3532 = vld [vmem:[#allocation8 + $0x1e0] sm:$0xff]
    %v3533 = vld [vmem:[#allocation8 + $0x1e8] sm:$0xff]
    %v3534 = vld [vmem:[#allocation8 + $0x1f0] sm:$0xff]
    %v3535 = vld [vmem:[#allocation8 + $0x1f8] sm:$0xff]
    %v3536 = vld [vmem:[#allocation11 + $0x12] sm:$0x3]
    %v3538 = vlaneseq
    %v3539 = vshrl.u32 %v3538, 7
    %v3540 = vsub.s32 0, %v3539
    %v3541 = vrot.slane %v3536, %v3540
    %v3542 = vlaneseq
    %v3543 = vshrl.u32 %v3542, 7
    %v3544 = vsub.s32 1, %v3543
    %v3545 = vrot.slane %v3536, %v3544
    %v3612 = vunpack.c.l.b16 %v3472
    %v3613 = vunpack.c.h.b16 %v3472
    %v3614 = vunpack.c.l.b16 %v3473
    %v3615 = vunpack.c.h.b16 %v3473
    %v3616 = vunpack.c.l.b16 %v3474
    %v3617 = vunpack.c.h.b16 %v3474
    %v3618 = vunpack.c.l.b16 %v3475
    %v3619 = vunpack.c.h.b16 %v3475
    %v3620 = vunpack.c.l.b16 %v3476
    %v3621 = vunpack.c.h.b16 %v3476
    %v3622 = vunpack.c.l.b16 %v3477
    %v3623 = vunpack.c.h.b16 %v3477
    %v3624 = vunpack.c.l.b16 %v3478
    %v3625 = vunpack.c.h.b16 %v3478
    %v3626 = vunpack.c.l.b16 %v3479
    %v3627 = vunpack.c.h.b16 %v3479
    %v3628 = vunpack.c.l.b16 %v3480
    %v3629 = vunpack.c.h.b16 %v3480
    %v3630 = vunpack.c.l.b16 %v3481
    %v3631 = vunpack.c.h.b16 %v3481
    %v3632 = vunpack.c.l.b16 %v3482
    %v3633 = vunpack.c.h.b16 %v3482
    %v3634 = vunpack.c.l.b16 %v3483
    %v3635 = vunpack.c.h.b16 %v3483
    %v3636 = vunpack.c.l.b16 %v3484
    %v3637 = vunpack.c.h.b16 %v3484
    %v3638 = vunpack.c.l.b16 %v3485
    %v3639 = vunpack.c.h.b16 %v3485
    %v3640 = vunpack.c.l.b16 %v3486
    %v3641 = vunpack.c.h.b16 %v3486
    %v3642 = vunpack.c.l.b16 %v3487
    %v3643 = vunpack.c.h.b16 %v3487
    %v3644 = vunpack.c.l.b16 %v3488
    %v3645 = vunpack.c.h.b16 %v3488
    %v3646 = vunpack.c.l.b16 %v3489
    %v3647 = vunpack.c.h.b16 %v3489
    %v3648 = vunpack.c.l.b16 %v3490
    %v3649 = vunpack.c.h.b16 %v3490
    %v3650 = vunpack.c.l.b16 %v3491
    %v3651 = vunpack.c.h.b16 %v3491
    %v3652 = vunpack.c.l.b16 %v3492
    %v3653 = vunpack.c.h.b16 %v3492
    %v3654 = vunpack.c.l.b16 %v3493
    %v3655 = vunpack.c.h.b16 %v3493
    %v3656 = vunpack.c.l.b16 %v3494
    %v3657 = vunpack.c.h.b16 %v3494
    %v3658 = vunpack.c.l.b16 %v3495
    %v3659 = vunpack.c.h.b16 %v3495
    %v3660 = vunpack.c.l.b16 %v3496
    %v3661 = vunpack.c.h.b16 %v3496
    %v3662 = vunpack.c.l.b16 %v3497
    %v3663 = vunpack.c.h.b16 %v3497
    %v3664 = vunpack.c.l.b16 %v3498
    %v3665 = vunpack.c.h.b16 %v3498
    %v3666 = vunpack.c.l.b16 %v3499
    %v3667 = vunpack.c.h.b16 %v3499
    %v3668 = vunpack.c.l.b16 %v3500
    %v3669 = vunpack.c.h.b16 %v3500
    %v3670 = vunpack.c.l.b16 %v3501
    %v3671 = vunpack.c.h.b16 %v3501
    %v3672 = vunpack.c.l.b16 %v3502
    %v3673 = vunpack.c.h.b16 %v3502
    %v3674 = vunpack.c.l.b16 %v3503
    %v3675 = vunpack.c.h.b16 %v3503
    %v3676 = vunpack.c.l.b16 %v3504
    %v3677 = vunpack.c.h.b16 %v3504
    %v3678 = vunpack.c.l.b16 %v3505
    %v3679 = vunpack.c.h.b16 %v3505
    %v3680 = vunpack.c.l.b16 %v3506
    %v3681 = vunpack.c.h.b16 %v3506
    %v3682 = vunpack.c.l.b16 %v3507
    %v3683 = vunpack.c.h.b16 %v3507
    %v3684 = vunpack.c.l.b16 %v3508
    %v3685 = vunpack.c.h.b16 %v3508
    %v3686 = vunpack.c.l.b16 %v3509
    %v3687 = vunpack.c.h.b16 %v3509
    %v3688 = vunpack.c.l.b16 %v3510
    %v3689 = vunpack.c.h.b16 %v3510
    %v3690 = vunpack.c.l.b16 %v3511
    %v3691 = vunpack.c.h.b16 %v3511
    %v3692 = vunpack.c.l.b16 %v3512
    %v3693 = vunpack.c.h.b16 %v3512
    %v3694 = vunpack.c.l.b16 %v3513
    %v3695 = vunpack.c.h.b16 %v3513
    %v3696 = vunpack.c.l.b16 %v3514
    %v3697 = vunpack.c.h.b16 %v3514
    %v3698 = vunpack.c.l.b16 %v3515
    %v3699 = vunpack.c.h.b16 %v3515
    %v3700 = vunpack.c.l.b16 %v3516
    %v3701 = vunpack.c.h.b16 %v3516
    %v3702 = vunpack.c.l.b16 %v3517
    %v3703 = vunpack.c.h.b16 %v3517
    %v3704 = vunpack.c.l.b16 %v3518
    %v3705 = vunpack.c.h.b16 %v3518
    %v3706 = vunpack.c.l.b16 %v3519
    %v3707 = vunpack.c.h.b16 %v3519
    %v3708 = vunpack.c.l.b16 %v3520
    %v3709 = vunpack.c.h.b16 %v3520
    %v3710 = vunpack.c.l.b16 %v3521
    %v3711 = vunpack.c.h.b16 %v3521
    %v3712 = vunpack.c.l.b16 %v3522
    %v3713 = vunpack.c.h.b16 %v3522
    %v3714 = vunpack.c.l.b16 %v3523
    %v3715 = vunpack.c.h.b16 %v3523
    %v3716 = vunpack.c.l.b16 %v3524
    %v3717 = vunpack.c.h.b16 %v3524
    %v3718 = vunpack.c.l.b16 %v3525
    %v3719 = vunpack.c.h.b16 %v3525
    %v3720 = vunpack.c.l.b16 %v3526
    %v3721 = vunpack.c.h.b16 %v3526
    %v3722 = vunpack.c.l.b16 %v3527
    %v3723 = vunpack.c.h.b16 %v3527
    %v3724 = vunpack.c.l.b16 %v3528
    %v3725 = vunpack.c.h.b16 %v3528
    %v3726 = vunpack.c.l.b16 %v3529
    %v3727 = vunpack.c.h.b16 %v3529
    %v3728 = vunpack.c.l.b16 %v3530
    %v3729 = vunpack.c.h.b16 %v3530
    %v3730 = vunpack.c.l.b16 %v3531
    %v3731 = vunpack.c.h.b16 %v3531
    %v3732 = vunpack.c.l.b16 %v3532
    %v3733 = vunpack.c.h.b16 %v3532
    %v3734 = vunpack.c.l.b16 %v3533
    %v3735 = vunpack.c.h.b16 %v3533
    %v3736 = vunpack.c.l.b16 %v3534
    %v3737 = vunpack.c.h.b16 %v3534
    %v3738 = vunpack.c.l.b16 %v3535
    %v3739 = vunpack.c.h.b16 %v3535
    %v3740 = vpack.c.b16 %v3614, %v3612
    %v3741 = vpack.c.b16 %v3615, %v3613
    %v3742 = vpack.c.b16 %v3618, %v3616
    %v3743 = vpack.c.b16 %v3619, %v3617
    %v3744 = vpack.c.b16 %v3622, %v3620
    %v3745 = vpack.c.b16 %v3623, %v3621
    %v3746 = vpack.c.b16 %v3626, %v3624
    %v3747 = vpack.c.b16 %v3627, %v3625
    %v3748 = vpack.c.b16 %v3630, %v3628
    %v3749 = vpack.c.b16 %v3631, %v3629
    %v3750 = vpack.c.b16 %v3634, %v3632
    %v3751 = vpack.c.b16 %v3635, %v3633
    %v3752 = vpack.c.b16 %v3638, %v3636
    %v3753 = vpack.c.b16 %v3639, %v3637
    %v3754 = vpack.c.b16 %v3642, %v3640
    %v3755 = vpack.c.b16 %v3643, %v3641
    %v3756 = vpack.c.b16 %v3646, %v3644
    %v3757 = vpack.c.b16 %v3647, %v3645
    %v3758 = vpack.c.b16 %v3650, %v3648
    %v3759 = vpack.c.b16 %v3651, %v3649
    %v3760 = vpack.c.b16 %v3654, %v3652
    %v3761 = vpack.c.b16 %v3655, %v3653
    %v3762 = vpack.c.b16 %v3658, %v3656
    %v3763 = vpack.c.b16 %v3659, %v3657
    %v3764 = vpack.c.b16 %v3662, %v3660
    %v3765 = vpack.c.b16 %v3663, %v3661
    %v3766 = vpack.c.b16 %v3666, %v3664
    %v3767 = vpack.c.b16 %v3667, %v3665
    %v3768 = vpack.c.b16 %v3670, %v3668
    %v3769 = vpack.c.b16 %v3671, %v3669
    %v3770 = vpack.c.b16 %v3674, %v3672
    %v3771 = vpack.c.b16 %v3675, %v3673
    %v3772 = vpack.c.b16 %v3678, %v3676
    %v3773 = vpack.c.b16 %v3679, %v3677
    %v3774 = vpack.c.b16 %v3682, %v3680
    %v3775 = vpack.c.b16 %v3683, %v3681
    %v3776 = vpack.c.b16 %v3686, %v3684
    %v3777 = vpack.c.b16 %v3687, %v3685
    %v3778 = vpack.c.b16 %v3690, %v3688
    %v3779 = vpack.c.b16 %v3691, %v3689
    %v3780 = vpack.c.b16 %v3694, %v3692
    %v3781 = vpack.c.b16 %v3695, %v3693
    %v3782 = vpack.c.b16 %v3698, %v3696
    %v3783 = vpack.c.b16 %v3699, %v3697
    %v3784 = vpack.c.b16 %v3702, %v3700
    %v3785 = vpack.c.b16 %v3703, %v3701
    %v3786 = vpack.c.b16 %v3706, %v3704
    %v3787 = vpack.c.b16 %v3707, %v3705
    %v3788 = vpack.c.b16 %v3710, %v3708
    %v3789 = vpack.c.b16 %v3711, %v3709
    %v3790 = vpack.c.b16 %v3714, %v3712
    %v3791 = vpack.c.b16 %v3715, %v3713
    %v3792 = vpack.c.b16 %v3718, %v3716
    %v3793 = vpack.c.b16 %v3719, %v3717
    %v3794 = vpack.c.b16 %v3722, %v3720
    %v3795 = vpack.c.b16 %v3723, %v3721
    %v3796 = vpack.c.b16 %v3726, %v3724
    %v3797 = vpack.c.b16 %v3727, %v3725
    %v3798 = vpack.c.b16 %v3730, %v3728
    %v3799 = vpack.c.b16 %v3731, %v3729
    %v3800 = vpack.c.b16 %v3734, %v3732
    %v3801 = vpack.c.b16 %v3735, %v3733
    %v3802 = vpack.c.b16 %v3738, %v3736
    %v3803 = vpack.c.b16 %v3739, %v3737
    %3868 = vmatprep.subr.bf16.mxu0 %v3741
    %3869 = vmatpush1.bf16.msra.mxu0 %v3740
    %3870 = vmatprep.subr.bf16.mxu0 %v3743
    %3871 = vmatpush1.bf16.msra.mxu0 %v3742
    %3872 = vmatprep.subr.bf16.mxu0 %v3745
    %3873 = vmatpush1.bf16.msra.mxu0 %v3744
    %3874 = vmatprep.subr.bf16.mxu0 %v3747
    %3875 = vmatpush1.bf16.msra.mxu0 %v3746
    %3876 = vmatprep.subr.bf16.mxu0 %v3749
    %3877 = vmatpush1.bf16.msra.mxu0 %v3748
    %3878 = vmatprep.subr.bf16.mxu0 %v3751
    %3879 = vmatpush1.bf16.msra.mxu0 %v3750
    %3880 = vmatprep.subr.bf16.mxu0 %v3753
    %3881 = vmatpush1.bf16.msra.mxu0 %v3752
    %3882 = vmatprep.subr.bf16.mxu0 %v3755
    %3883 = vmatpush1.bf16.msra.mxu0 %v3754
    %3884 = vmatprep.subr.bf16.mxu0 %v3757
    %3885 = vmatpush1.bf16.msra.mxu0 %v3756
    %3886 = vmatprep.subr.bf16.mxu0 %v3759
    %3887 = vmatpush1.bf16.msra.mxu0 %v3758
    %3888 = vmatprep.subr.bf16.mxu0 %v3761
    %3889 = vmatpush1.bf16.msra.mxu0 %v3760
    %3890 = vmatprep.subr.bf16.mxu0 %v3763
    %3891 = vmatpush1.bf16.msra.mxu0 %v3762
    %3892 = vmatprep.subr.bf16.mxu0 %v3765
    %3893 = vmatpush1.bf16.msra.mxu0 %v3764
    %3894 = vmatprep.subr.bf16.mxu0 %v3767
    %3895 = vmatpush1.bf16.msra.mxu0 %v3766
    %3896 = vmatprep.subr.bf16.mxu0 %v3769
    %3897 = vmatpush1.bf16.msra.mxu0 %v3768
    %3898 = vmatprep.subr.bf16.mxu0 %v3771
    %3899 = vmatpush1.bf16.msra.mxu0 %v3770
    %3900 = vmatprep.mubr.bf16.mxu0 %v3469
    %3901 = vmatmul.mubr.bf16.gmra.mrb[0].mxu0 %v3468
    %v3902 = vpop.f32.mrb[0].mxu0
    %v3903 = vadd.f32 %v3541, %v3902
    %v3904 = vpop.f32.mrb[0].mxu0
    %v3905 = vadd.f32 %v3545, %v3904
    %v3906 = vpop.f32.mrb[0].mxu0
    %v3907 = vpop.f32.mrb[0].mxu0
    %3908 = vdwg.mxu0
    %3909 = vmatprep.subr.bf16.mxu0 %v3773
    %3910 = vmatpush1.bf16.msra.mxu0 %v3772
    %3911 = vmatprep.subr.bf16.mxu0 %v3775
    %3912 = vmatpush1.bf16.msra.mxu0 %v3774
    %3913 = vmatprep.subr.bf16.mxu0 %v3777
    %3914 = vmatpush1.bf16.msra.mxu0 %v3776
    %3915 = vmatprep.subr.bf16.mxu0 %v3779
    %3916 = vmatpush1.bf16.msra.mxu0 %v3778
    %3917 = vmatprep.subr.bf16.mxu0 %v3781
    %3918 = vmatpush1.bf16.msra.mxu0 %v3780
    %3919 = vmatprep.subr.bf16.mxu0 %v3783
    %3920 = vmatpush1.bf16.msra.mxu0 %v3782
    %3921 = vmatprep.subr.bf16.mxu0 %v3785
    %3922 = vmatpush1.bf16.msra.mxu0 %v3784
    %3923 = vmatprep.subr.bf16.mxu0 %v3787
    %3924 = vmatpush1.bf16.msra.mxu0 %v3786
    %3925 = vmatprep.subr.bf16.mxu0 %v3789
    %3926 = vmatpush1.bf16.msra.mxu0 %v3788
    %3927 = vmatprep.subr.bf16.mxu0 %v3791
    %3928 = vmatpush1.bf16.msra.mxu0 %v3790
    %3929 = vmatprep.subr.bf16.mxu0 %v3793
    %3930 = vmatpush1.bf16.msra.mxu0 %v3792
    %3931 = vmatprep.subr.bf16.mxu0 %v3795
    %3932 = vmatpush1.bf16.msra.mxu0 %v3794
    %3933 = vmatprep.subr.bf16.mxu0 %v3797
    %3934 = vmatpush1.bf16.msra.mxu0 %v3796
    %3935 = vmatprep.subr.bf16.mxu0 %v3799
    %3936 = vmatpush1.bf16.msra.mxu0 %v3798
    %3937 = vmatprep.subr.bf16.mxu0 %v3801
    %3938 = vmatpush1.bf16.msra.mxu0 %v3800
    %3939 = vmatprep.subr.bf16.mxu0 %v3803
    %3940 = vmatpush1.bf16.msra.mxu0 %v3802
    %3941 = vmatprep.mubr.bf16.mxu0 %v3471
    %3942 = vmatmul.mubr.bf16.gmra.mrb[0].mxu0 %v3470
    %v3943 = vpop.f32.mrb[0].mxu0
    %v3944 = vadd.f32 %v3903, %v3943
    %v3945 = vpop.f32.mrb[0].mxu0
    %v3946 = vadd.f32 %v3905, %v3945
    %v3947 = vpop.f32.mrb[0].mxu0
    %v3948 = vpop.f32.mrb[0].mxu0
    %3949 = vdwg.mxu0
    %v3950 = vmax.f32 %v3944, 0.0
    %v3951 = vmax.f32 %v3946, 0.0
    %v3952 = vpack.c.bf16 %v3950, %v3950
    %v3953 = vpack.c.bf16 %v3951, %v3951
    %v3954 = vld [vmem:[#allocation10 + $0x180] sm:$0xf]
    %v3955 = vld [vmem:[#allocation10 + $0x184] sm:$0xf]
    %v3956 = vld [vmem:[#allocation10 + $0x188] sm:$0xf]
    %v3957 = vld [vmem:[#allocation10 + $0x18c] sm:$0xf]
    %v3958 = vld [vmem:[#allocation10 + $0x190] sm:$0xf]
    %v3959 = vld [vmem:[#allocation10 + $0x194] sm:$0xf]
    %v3960 = vld [vmem:[#allocation10 + $0x198] sm:$0xf]
    %v3961 = vld [vmem:[#allocation10 + $0x19c] sm:$0xf]
    %v3962 = vld [vmem:[#allocation10 + $0x1a0] sm:$0xf]
    %v3963 = vld [vmem:[#allocation10 + $0x1a4] sm:$0xf]
    %v3964 = vld [vmem:[#allocation10 + $0x1a8] sm:$0xf]
    %v3965 = vld [vmem:[#allocation10 + $0x1ac] sm:$0xf]
    %v3966 = vld [vmem:[#allocation10 + $0x1b0] sm:$0xf]
    %v3967 = vld [vmem:[#allocation10 + $0x1b4] sm:$0xf]
    %v3968 = vld [vmem:[#allocation10 + $0x1b8] sm:$0xf]
    %v3969 = vld [vmem:[#allocation10 + $0x1bc] sm:$0xf]
    %v3970 = vld [vmem:[#allocation10 + $0x1c0] sm:$0xf]
    %v3971 = vld [vmem:[#allocation10 + $0x1c4] sm:$0xf]
    %v3972 = vld [vmem:[#allocation10 + $0x1c8] sm:$0xf]
    %v3973 = vld [vmem:[#allocation10 + $0x1cc] sm:$0xf]
    %v3974 = vld [vmem:[#allocation10 + $0x1d0] sm:$0xf]
    %v3975 = vld [vmem:[#allocation10 + $0x1d4] sm:$0xf]
    %v3976 = vld [vmem:[#allocation10 + $0x1d8] sm:$0xf]
    %v3977 = vld [vmem:[#allocation10 + $0x1dc] sm:$0xf]
    %v3978 = vld [vmem:[#allocation10 + $0x1e0] sm:$0xf]
    %v3979 = vld [vmem:[#allocation10 + $0x1e4] sm:$0xf]
    %v3980 = vld [vmem:[#allocation10 + $0x1e8] sm:$0xf]
    %v3981 = vld [vmem:[#allocation10 + $0x1ec] sm:$0xf]
    %v3982 = vld [vmem:[#allocation10 + $0x1f0] sm:$0xf]
    %v3983 = vld [vmem:[#allocation10 + $0x1f4] sm:$0xf]
    %v3984 = vld [vmem:[#allocation10 + $0x1f8] sm:$0xf]
    %v3985 = vld [vmem:[#allocation10 + $0x1fc] sm:$0xf]
    %v3986 = vld [vmem:[#allocation11 + $0x14] sm:$0x1]
    %v3988 = vlaneseq
    %v3989 = vshrl.u32 %v3988, 7
    %v3990 = vsub.s32 0, %v3989
    %v3991 = vrot.slane %v3986, %v3990
    %v4025 = vunpack.c.l.b16 %v3954
    %v4026 = vunpack.c.l.b16 %v3955
    %v4027 = vunpack.c.l.b16 %v3956
    %v4028 = vunpack.c.l.b16 %v3957
    %v4029 = vunpack.c.l.b16 %v3958
    %v4030 = vunpack.c.l.b16 %v3959
    %v4031 = vunpack.c.l.b16 %v3960
    %v4032 = vunpack.c.l.b16 %v3961
    %v4033 = vunpack.c.l.b16 %v3962
    %v4034 = vunpack.c.l.b16 %v3963
    %v4035 = vunpack.c.l.b16 %v3964
    %v4036 = vunpack.c.l.b16 %v3965
    %v4037 = vunpack.c.l.b16 %v3966
    %v4038 = vunpack.c.l.b16 %v3967
    %v4039 = vunpack.c.l.b16 %v3968
    %v4040 = vunpack.c.l.b16 %v3969
    %v4041 = vunpack.c.l.b16 %v3970
    %v4042 = vunpack.c.l.b16 %v3971
    %v4043 = vunpack.c.l.b16 %v3972
    %v4044 = vunpack.c.l.b16 %v3973
    %v4045 = vunpack.c.l.b16 %v3974
    %v4046 = vunpack.c.l.b16 %v3975
    %v4047 = vunpack.c.l.b16 %v3976
    %v4048 = vunpack.c.l.b16 %v3977
    %v4049 = vunpack.c.l.b16 %v3978
    %v4050 = vunpack.c.l.b16 %v3979
    %v4051 = vunpack.c.l.b16 %v3980
    %v4052 = vunpack.c.l.b16 %v3981
    %v4053 = vunpack.c.l.b16 %v3982
    %v4054 = vunpack.c.l.b16 %v3983
    %v4055 = vunpack.c.l.b16 %v3984
    %v4056 = vunpack.c.l.b16 %v3985
    %v4057 = vpack.c.b16 %v4026, %v4025
    %v4058 = vpack.c.b16 %v4028, %v4027
    %v4059 = vpack.c.b16 %v4030, %v4029
    %v4060 = vpack.c.b16 %v4032, %v4031
    %v4061 = vpack.c.b16 %v4034, %v4033
    %v4062 = vpack.c.b16 %v4036, %v4035
    %v4063 = vpack.c.b16 %v4038, %v4037
    %v4064 = vpack.c.b16 %v4040, %v4039
    %v4065 = vpack.c.b16 %v4042, %v4041
    %v4066 = vpack.c.b16 %v4044, %v4043
    %v4067 = vpack.c.b16 %v4046, %v4045
    %v4068 = vpack.c.b16 %v4048, %v4047
    %v4069 = vpack.c.b16 %v4050, %v4049
    %v4070 = vpack.c.b16 %v4052, %v4051
    %v4071 = vpack.c.b16 %v4054, %v4053
    %v4072 = vpack.c.b16 %v4056, %v4055
    %4089 = vmatprep.subr.bf16.mxu0 0
    %4090 = vmatpush1.bf16.msra.mxu0 %v4057
    %4091 = vmatprep.subr.bf16.mxu0 0
    %4092 = vmatpush1.bf16.msra.mxu0 %v4058
    %4093 = vmatprep.subr.bf16.mxu0 0
    %4094 = vmatpush1.bf16.msra.mxu0 %v4059
    %4095 = vmatprep.subr.bf16.mxu0 0
    %4096 = vmatpush1.bf16.msra.mxu0 %v4060
    %4097 = vmatprep.subr.bf16.mxu0 0
    %4098 = vmatpush1.bf16.msra.mxu0 %v4061
    %4099 = vmatprep.subr.bf16.mxu0 0
    %4100 = vmatpush1.bf16.msra.mxu0 %v4062
    %4101 = vmatprep.subr.bf16.mxu0 0
    %4102 = vmatpush1.bf16.msra.mxu0 %v4063
    %4103 = vmatprep.subr.bf16.mxu0 0
    %4104 = vmatpush1.bf16.msra.mxu0 %v4064
    %4105 = vmatprep.subr.bf16.mxu0 0
    %4106 = vmatpush1.bf16.msra.mxu0 %v4065
    %4107 = vmatprep.subr.bf16.mxu0 0
    %4108 = vmatpush1.bf16.msra.mxu0 %v4066
    %4109 = vmatprep.subr.bf16.mxu0 0
    %4110 = vmatpush1.bf16.msra.mxu0 %v4067
    %4111 = vmatprep.subr.bf16.mxu0 0
    %4112 = vmatpush1.bf16.msra.mxu0 %v4068
    %4113 = vmatprep.subr.bf16.mxu0 0
    %4114 = vmatpush1.bf16.msra.mxu0 %v4069
    %4115 = vmatprep.subr.bf16.mxu0 0
    %4116 = vmatpush1.bf16.msra.mxu0 %v4070
    %4117 = vmatprep.subr.bf16.mxu0 0
    %4118 = vmatpush1.bf16.msra.mxu0 %v4071
    %4119 = vmatprep.subr.bf16.mxu0 0
    %4120 = vmatpush1.bf16.msra.mxu0 %v4072
    %4121 = vmatprep.mubr.bf16.mxu0 %v3953
    %4122 = vmatmul.mubr.bf16.gmra.mrb[0].mxu0 %v3952
    %v4123 = vpop.f32.mrb[0].mxu0
    %v4124 = vadd.f32 %v3991, %v4123
    %v4125 = vpop.f32.mrb[0].mxu0
    %v4126 = vpop.f32.mrb[0].mxu0
    %v4127 = vpop.f32.mrb[0].mxu0
    %4128 = vdwg.mxu0
    %v4129 = vmax.f32 %v4124, 0.0
    %v4130 = vpack.c.bf16 %v4129, %v4129
    %v4131 = vld [vmem:[#allocation10 + $0x200] sm:$0xf]
    %v4132 = vld [vmem:[#allocation10 + $0x204] sm:$0xf]
    %v4133 = vld [vmem:[#allocation10 + $0x208] sm:$0xf]
    %v4134 = vld [vmem:[#allocation10 + $0x20c] sm:$0xf]
    %v4135 = vld [vmem:[#allocation10 + $0x210] sm:$0xf]
    %v4136 = vld [vmem:[#allocation10 + $0x214] sm:$0xf]
    %v4137 = vld [vmem:[#allocation10 + $0x218] sm:$0xf]
    %v4138 = vld [vmem:[#allocation10 + $0x21c] sm:$0xf]
    %v4139 = vld [vmem:[#allocation10 + $0x220] sm:$0xf]
    %v4140 = vld [vmem:[#allocation10 + $0x224] sm:$0xf]
    %v4141 = vld [vmem:[#allocation10 + $0x228] sm:$0xf]
    %v4142 = vld [vmem:[#allocation10 + $0x22c] sm:$0xf]
    %v4143 = vld [vmem:[#allocation10 + $0x230] sm:$0xf]
    %v4144 = vld [vmem:[#allocation10 + $0x234] sm:$0xf]
    %v4145 = vld [vmem:[#allocation10 + $0x238] sm:$0xf]
    %v4146 = vld [vmem:[#allocation10 + $0x23c] sm:$0xf]
    %v4147 = vld [vmem:[#allocation11 + $0x15] sm:$0x1]
    %v4149 = vlaneseq
    %v4150 = vshrl.u32 %v4149, 7
    %v4151 = vsub.s32 0, %v4150
    %v4152 = vrot.slane %v4147, %v4151
    %v4170 = vunpack.c.l.b16 %v4131
    %v4171 = vunpack.c.l.b16 %v4132
    %v4172 = vunpack.c.l.b16 %v4133
    %v4173 = vunpack.c.l.b16 %v4134
    %v4174 = vunpack.c.l.b16 %v4135
    %v4175 = vunpack.c.l.b16 %v4136
    %v4176 = vunpack.c.l.b16 %v4137
    %v4177 = vunpack.c.l.b16 %v4138
    %v4178 = vunpack.c.l.b16 %v4139
    %v4179 = vunpack.c.l.b16 %v4140
    %v4180 = vunpack.c.l.b16 %v4141
    %v4181 = vunpack.c.l.b16 %v4142
    %v4182 = vunpack.c.l.b16 %v4143
    %v4183 = vunpack.c.l.b16 %v4144
    %v4184 = vunpack.c.l.b16 %v4145
    %v4185 = vunpack.c.l.b16 %v4146
    %v4186 = vpack.c.b16 %v4171, %v4170
    %v4187 = vpack.c.b16 %v4173, %v4172
    %v4188 = vpack.c.b16 %v4175, %v4174
    %v4189 = vpack.c.b16 %v4177, %v4176
    %v4190 = vpack.c.b16 %v4179, %v4178
    %v4191 = vpack.c.b16 %v4181, %v4180
    %v4192 = vpack.c.b16 %v4183, %v4182
    %v4193 = vpack.c.b16 %v4185, %v4184
    %4202 = vmatprep.subr.bf16.mxu0 0
    %4203 = vmatpush1.bf16.msra.mxu0 %v4186
    %4204 = vmatprep.subr.bf16.mxu0 0
    %4205 = vmatpush1.bf16.msra.mxu0 %v4187
    %4206 = vmatprep.subr.bf16.mxu0 0
    %4207 = vmatpush1.bf16.msra.mxu0 %v4188
    %4208 = vmatprep.subr.bf16.mxu0 0
    %4209 = vmatpush1.bf16.msra.mxu0 %v4189
    %4210 = vmatprep.subr.bf16.mxu0 0
    %4211 = vmatpush1.bf16.msra.mxu0 %v4190
    %4212 = vmatprep.subr.bf16.mxu0 0
    %4213 = vmatpush1.bf16.msra.mxu0 %v4191
    %4214 = vmatprep.subr.bf16.mxu0 0
    %4215 = vmatpush1.bf16.msra.mxu0 %v4192
    %4216 = vmatprep.subr.bf16.mxu0 0
    %4217 = vmatpush1.bf16.msra.mxu0 %v4193
    %4218 = vmatprep.subr.bf16.mxu0 0
    %4219 = vmatpush1.bf16.msra.mxu0 0
    %4220 = vmatprep.subr.bf16.mxu0 0
    %4221 = vmatpush1.bf16.msra.mxu0 0
    %4222 = vmatprep.subr.bf16.mxu0 0
    %4223 = vmatpush1.bf16.msra.mxu0 0
    %4224 = vmatprep.subr.bf16.mxu0 0
    %4225 = vmatpush1.bf16.msra.mxu0 0
    %4226 = vmatprep.subr.bf16.mxu0 0
    %4227 = vmatpush1.bf16.msra.mxu0 0
    %4228 = vmatprep.subr.bf16.mxu0 0
    %4229 = vmatpush1.bf16.msra.mxu0 0
    %4230 = vmatprep.subr.bf16.mxu0 0
    %4231 = vmatpush1.bf16.msra.mxu0 0
    %4232 = vmatprep.subr.bf16.mxu0 0
    %4233 = vmatpush1.bf16.msra.mxu0 0
    %4234 = vmatprep.mubr.bf16.mxu0 0
    %4235 = vmatmul.mubr.bf16.gmra.mrb[0].mxu0 %v4130
    %v4236 = vpop.f32.mrb[0].mxu0
    %v4237 = vadd.f32 %v4152, %v4236
    %v4238 = vpop.f32.mrb[0].mxu0
    %v4239 = vpop.f32.mrb[0].mxu0
    %v4240 = vpop.f32.mrb[0].mxu0
    %4241 = vdwg.mxu0
    %v4242 = vmax.f32 %v4237, 0.0
    %v4243 = vpack.c.bf16 %v4242, %v4242
    %v4244 = vld [vmem:[#allocation10 + $0x240] sm:$0xf]
    %v4245 = vld [vmem:[#allocation10 + $0x244] sm:$0xf]
    %v4246 = vld [vmem:[#allocation10 + $0x248] sm:$0xf]
    %v4247 = vld [vmem:[#allocation10 + $0x24c] sm:$0xf]
    %v4248 = vld [vmem:[#allocation10 + $0x250] sm:$0xf]
    %v4249 = vld [vmem:[#allocation10 + $0x254] sm:$0xf]
    %v4250 = vld [vmem:[#allocation10 + $0x258] sm:$0xf]
    %v4251 = vld [vmem:[#allocation10 + $0x25c] sm:$0xf]
    %v4252 = vld [vmem:[#allocation10 + $0x260] sm:$0xf]
    %v4253 = vld [vmem:[#allocation10 + $0x264] sm:$0xf]
    %v4254 = vld [vmem:[#allocation10 + $0x268] sm:$0xf]
    %v4255 = vld [vmem:[#allocation10 + $0x26c] sm:$0xf]
    %v4256 = vld [vmem:[#allocation10 + $0x270] sm:$0xf]
    %v4257 = vld [vmem:[#allocation10 + $0x274] sm:$0xf]
    %v4258 = vld [vmem:[#allocation10 + $0x278] sm:$0xf]
    %v4259 = vld [vmem:[#allocation10 + $0x27c] sm:$0xf]
    %v4260 = vld [vmem:[#allocation11 + $0x16] sm:$0x1]
    %v4262 = vlaneseq
    %v4263 = vshrl.u32 %v4262, 7
    %v4264 = vsub.s32 0, %v4263
    %v4265 = vrot.slane %v4260, %v4264
    %v4283 = vunpack.c.l.b16 %v4244
    %v4284 = vunpack.c.l.b16 %v4245
    %v4285 = vunpack.c.l.b16 %v4246
    %v4286 = vunpack.c.l.b16 %v4247
    %v4287 = vunpack.c.l.b16 %v4248
    %v4288 = vunpack.c.l.b16 %v4249
    %v4289 = vunpack.c.l.b16 %v4250
    %v4290 = vunpack.c.l.b16 %v4251
    %v4291 = vunpack.c.l.b16 %v4252
    %v4292 = vunpack.c.l.b16 %v4253
    %v4293 = vunpack.c.l.b16 %v4254
    %v4294 = vunpack.c.l.b16 %v4255
    %v4295 = vunpack.c.l.b16 %v4256
    %v4296 = vunpack.c.l.b16 %v4257
    %v4297 = vunpack.c.l.b16 %v4258
    %v4298 = vunpack.c.l.b16 %v4259
    %v4299 = vpack.c.b16 %v4284, %v4283
    %v4300 = vpack.c.b16 %v4286, %v4285
    %v4301 = vpack.c.b16 %v4288, %v4287
    %v4302 = vpack.c.b16 %v4290, %v4289
    %v4303 = vpack.c.b16 %v4292, %v4291
    %v4304 = vpack.c.b16 %v4294, %v4293
    %v4305 = vpack.c.b16 %v4296, %v4295
    %v4306 = vpack.c.b16 %v4298, %v4297
    %4315 = vmatprep.subr.bf16.mxu0 0
    %4316 = vmatpush1.bf16.msra.mxu0 %v4299
    %4317 = vmatprep.subr.bf16.mxu0 0
    %4318 = vmatpush1.bf16.msra.mxu0 %v4300
    %4319 = vmatprep.subr.bf16.mxu0 0
    %4320 = vmatpush1.bf16.msra.mxu0 %v4301
    %4321 = vmatprep.subr.bf16.mxu0 0
    %4322 = vmatpush1.bf16.msra.mxu0 %v4302
    %4323 = vmatprep.subr.bf16.mxu0 0
    %4324 = vmatpush1.bf16.msra.mxu0 %v4303
    %4325 = vmatprep.subr.bf16.mxu0 0
    %4326 = vmatpush1.bf16.msra.mxu0 %v4304
    %4327 = vmatprep.subr.bf16.mxu0 0
    %4328 = vmatpush1.bf16.msra.mxu0 %v4305
    %4329 = vmatprep.subr.bf16.mxu0 0
    %4330 = vmatpush1.bf16.msra.mxu0 %v4306
    %4331 = vmatprep.subr.bf16.mxu0 0
    %4332 = vmatpush1.bf16.msra.mxu0 0
    %4333 = vmatprep.subr.bf16.mxu0 0
    %4334 = vmatpush1.bf16.msra.mxu0 0
    %4335 = vmatprep.subr.bf16.mxu0 0
    %4336 = vmatpush1.bf16.msra.mxu0 0
    %4337 = vmatprep.subr.bf16.mxu0 0
    %4338 = vmatpush1.bf16.msra.mxu0 0
    %4339 = vmatprep.subr.bf16.mxu0 0
    %4340 = vmatpush1.bf16.msra.mxu0 0
    %4341 = vmatprep.subr.bf16.mxu0 0
    %4342 = vmatpush1.bf16.msra.mxu0 0
    %4343 = vmatprep.subr.bf16.mxu0 0
    %4344 = vmatpush1.bf16.msra.mxu0 0
    %4345 = vmatprep.subr.bf16.mxu0 0
    %4346 = vmatpush1.bf16.msra.mxu0 0
    %4347 = vmatprep.mubr.bf16.mxu0 0
    %4348 = vmatmul.mubr.bf16.gmra.mrb[0].mxu0 %v4243
    %v4349 = vpop.f32.mrb[0].mxu0
    %v4350 = vadd.f32 %v4265, %v4349
    %v4351 = vpop.f32.mrb[0].mxu0
    %v4352 = vpop.f32.mrb[0].mxu0
    %v4353 = vpop.f32.mrb[0].mxu0
    %4354 = vdwg.mxu0
    %v4355 = vxor.u32 %v4350, 2147483648
    %v4356 = vmul.f32 %v4355, 1.442695
    %v4357 = vpow.pop %v4356
    %v4358 = vadd.f32 %v4357, 1.0
    %v4359 = vrcp.pop %v4358
    %v4360 = vmul.f32 1.0, %v4359
    %v4361 = vpack.c.bf16 %v4360, %v4360
    %4362 = vst [vmem:[#allocation13] sm:$0xf] %v4361
    // Predicated region
    $region50: #{tpu_custom_call.1} parent=1 // pred_check
      _
    $region51: #{tpu_custom_call.1} parent=1 // pred_check_branch
      %4364 = sbr.rel (0) target = $region53
    $region52: #{tpu_custom_call.1} parent=1 // pred_region
      %s4366 = ssub.s32 64, 64
      %4367 = vsyncadd [#allocation4], %s4366
      %s4369 = sshll.u32 [#allocation13], 4
      %s4370 = int_to_ptr.vmem [resolvable:$true] %s4369
      %4372 = dma.vmem_to_hbm [thread:$0]  %s4370, 64, %s6, [#allocation4]
    $region53: #{tpu_custom_call.1} parent=1 // pred_fallthru
      _
    // Predicated region
    $region54: #{tpu_custom_call.1} parent=1 // pred_check
      _
    $region55: #{tpu_custom_call.1} parent=1 // pred_check_branch
      %4374 = sbr.rel (0) target = $region57
    $region56: #{tpu_custom_call.1} parent=1 // pred_region
      %4375 = dma.done [#allocation4], 64
    $region57: #{tpu_custom_call.1} parent=1 // pred_fallthru
      _
    %4376 = vsyncpa [#allocation3], 1
    %4377 = vsyncpa [#allocation6], 1
    %4378 = vsyncpa [#allocation9], 1
    %4379 = vsyncpa [#allocation12], 1
    %4380 = vsyncpa [#allocation4], 1

</llo_original>
